<compile_context>
chip_gen: v6e
topology: v6e:2x2x1
jax: 0.10.0
libtpu: 0.0.40
codegen_flags: <defaults>
</compile_context>

<pallas_src>
import jax
import jax.numpy as jnp
from jax import lax
from jax.experimental import pallas as pl
from jax.experimental.pallas import tpu as pltpu

# ----------------------------- configuration --------------------------------
B = 2            # batch
C_LAT = 4        # latent channels
H = W = 16       # latent spatial size
HW = H * W
S_TXT = 8        # text sequence length
C_CROSS = 32     # cross-attention / hidden dim
N_IMG = 4        # number of image-embedding tokens
D_IMG = 32       # image-embedding dim (== C_CROSS here)
N_IP = 4         # number of ip tokens produced by image_proj_model
HID = 32         # surrogate-unet hidden dim (== C_CROSS)
S_CTX = S_TXT + N_IP   # concatenated context length (text + ip tokens) = 12

F32 = jnp.float32
_EPS = 1e-5


# ----------------------------- fused Pallas kernel ---------------------------
def _ip_adapter_kernel(
    lat_ref,        # (B, C_LAT, HW)    latents, channel-major tokens
    tsin_t_ref,     # (HID, B)          sinusoidal timestep embedding (transposed)
    txt_ref,        # (B, S_TXT, C_CROSS)
    img_ref,        # (B, N_IMG, D_IMG)
    w_qkv_img_ref,  # (D_IMG, 3*D_IMG)  fused image-attn QKV (Q pre-scaled)
    wo_img_ref,     # (D_IMG, D_IMG)
    proj_w_ref,     # (N_IMG*D_IMG, N_IP*C_CROSS)
    proj_b_ref,     # (1, N_IP*C_CROSS)
    ln_g_ref,       # (1, C_CROSS)
    ln_b_ref,       # (1, C_CROSS)
    wt_t_ref,       # (HID, HID)        wt.T
    btin_c_ref,     # (HID, 1)          (bt + bin) folded, channel-major
    win_t_ref,      # (HID, C_LAT)      win.T
    wq_t_ref,       # (HID, HID)        (wq * 1/sqrt(HID)).T
    w_kv_ref,       # (HID, 2*HID)      fused [wk | wv]
    wo_t_ref,       # (HID, HID)        wo.T
    wout_t_ref,     # (C_LAT, HID)      wout.T
    bout_c_ref,     # (C_LAT, 1)
    o_ref,          # (B, C_LAT, HW)    noise prediction, channel-major tokens
    ctx_ref,        # scratch (S_CTX, C_CROSS): concatenated [text ; ip_tokens]
):
    f32 = jnp.float32

    # -- hoist weight loads out of the unrolled per-batch loop ----------------
    w_qkv_img = w_qkv_img_ref[...]
    wo_img = wo_img_ref[...]
    proj_w = proj_w_ref[...]
    proj_b = proj_b_ref[...]
    ln_g = ln_g_ref[...]
    ln_b = ln_b_ref[...]
    win_t = win_t_ref[...]
    wq_t = wq_t_ref[...]
    w_kv = w_kv_ref[...]
    wo_t = wo_t_ref[...]
    wout_t = wout_t_ref[...]
    bout_c = bout_c_ref[...]

    # timestep projection for both batch elements (channel-major: (HID, B));
    # the conv_in bias is pre-folded into btin_c in the wrapper.
    temb_t = (jnp.dot(wt_t_ref[...], tsin_t_ref[...],
                      preferred_element_type=f32) + btin_c_ref[...])

    row_ids = lax.broadcasted_iota(jnp.int32, (N_IP, C_CROSS), 0)

    for b in range(B):  # static unroll, B=2
        # === 1. image_attn_model: single-head self-attention over image tokens
        x_img = img_ref[b]                                            # (4, 32)
        qkv = jnp.dot(x_img, w_qkv_img, preferred_element_type=f32)   # (4, 96)
        q = qkv[:, :D_IMG]                   # 1/sqrt(D) already folded into wq
        k = qkv[:, D_IMG:2 * D_IMG]
        v = qkv[:, 2 * D_IMG:]
        s = jnp.einsum('nd,md->nm', q, k, preferred_element_type=f32)  # (4, 4)
        s = s - jnp.max(s, axis=-1, keepdims=True)
        p = jnp.exp(s)
        p = p * pl.reciprocal(jnp.sum(p, axis=-1, keepdims=True), approx=True)
        attn = jnp.dot(p, v, preferred_element_type=f32)               # (4, 32)
        attn_o = jnp.dot(attn, wo_img, preferred_element_type=f32)     # (4, 32)

        # === 2. image_proj_model: Linear(flatten) -> ip tokens -> LayerNorm
        # flat(1,128) @ proj_w, without materializing the flatten:
        z = proj_b                                                     # (1, 128)
        for n in range(N_IMG):
            z = z + jnp.dot(attn_o[n:n + 1, :],
                            proj_w[n * D_IMG:(n + 1) * D_IMG, :],
                            preferred_element_type=f32)
        # un-flatten (1, N_IP*C) -> (N_IP, C) via masked sublane placement
        ip = jnp.zeros((N_IP, C_CROSS), f32)
        for m in range(N_IP):
            piece = jnp.broadcast_to(z[:, m * C_CROSS:(m + 1) * C_CROSS],
                                     (N_IP, C_CROSS))
            ip = jnp.where(row_ids == m, piece, ip)
        mu = jnp.mean(ip, axis=-1, keepdims=True)
        var = jnp.mean((ip - mu) * (ip - mu), axis=-1, keepdims=True)
        ipn = (ip - mu) * lax.rsqrt(var + _EPS) * ln_g + ln_b          # (4, 32)

        # === 3. concat([text_hidden_states, ip_tokens], dim=1) ==============
        # Materialized in a VMEM scratch with static-slice stores (no in-kernel
        # concatenate op needed); rows 0:8 = text, rows 8:12 = ip tokens.
        ctx_ref[0:S_TXT, :] = txt_ref[b]
        ctx_ref[S_TXT:S_CTX, :] = ipn
        ctx = ctx_ref[...]                                             # (12, 32)

        # === 4. surrogate UNet (channel-major / lane-dense layout) ===========
        x_lat = lat_ref[b]                                             # (4, 256)
        h_t = (jnp.dot(win_t, x_lat, preferred_element_type=f32)
               + temb_t[:, b:b + 1])                                   # (32, 256)
        q_t = jnp.dot(wq_t, h_t, preferred_element_type=f32)           # (32, 256)

        # K/V over the concatenated 12-token context in ONE fused matmul.
        kv = jnp.dot(ctx, w_kv, preferred_element_type=f32)            # (12, 64)
        k_ctx, v_ctx = kv[:, :HID], kv[:, HID:]

        s_ctx = jnp.dot(k_ctx, q_t, preferred_element_type=f32)        # (12, 256)
        mx = jnp.max(s_ctx, axis=0, keepdims=True)                     # (1, 256)
        p_ctx = jnp.exp(s_ctx - mx)
        inv = pl.reciprocal(jnp.sum(p_ctx, axis=0, keepdims=True),
                            approx=True)                               # (1, 256)
        attn_t = jnp.einsum('sh,sw->hw', v_ctx, p_ctx,
                            preferred_element_type=f32) * inv          # (32, 256)
        h_t = h_t + jnp.dot(wo_t, attn_t, preferred_element_type=f32)  # (32, 256)

        # conv_out back to latent channels; lane-dense (C_LAT, HW) store.
        o_ref[b] = (jnp.dot(wout_t, h_t, preferred_element_type=f32) + bout_c)


# ------------------------------- wrapper --------------------------------------
def _timestep_embedding_t(t, dim):
    """Sinusoidal timestep embedding, transposed: returns (dim, B)."""
    half = dim // 2
    freqs = jnp.exp(-jnp.log(10000.0) * jnp.arange(half, dtype=F32) / half)
    args = freqs[:, None] * t.astype(F32)[None, :]                     # (half, B)
    return jnp.concatenate([jnp.sin(args), jnp.cos(args)], axis=0)     # (dim, B)


def init_params(key):
    ks = jax.random.split(key, 16)
    n = lambda k, shape, s=0.05: (s * jax.random.normal(k, shape)).astype(F32)
    return {
        # image_attn_model (self-attention)
        "attn_wq": n(ks[0], (D_IMG, D_IMG)),
        "attn_wk": n(ks[1], (D_IMG, D_IMG)),
        "attn_wv": n(ks[2], (D_IMG, D_IMG)),
        "attn_wo": n(ks[3], (D_IMG, D_IMG)),
        # image_proj_model (Linear + LayerNorm)
        "proj_w": n(ks[4], (N_IMG * D_IMG, N_IP * C_CROSS)),
        "proj_b": jnp.zeros((1, N_IP * C_CROSS), F32),
        "ln_g": jnp.ones((1, C_CROSS), F32),
        "ln_b": jnp.zeros((1, C_CROSS), F32),
        # surrogate unet
        "unet": {
            "wt": n(ks[5], (HID, HID)),
            "bt": jnp.zeros((1, HID), F32),
            "win": n(ks[6], (C_LAT, HID)),
            "bin": jnp.zeros((1, HID), F32),
            "wq": n(ks[7], (HID, HID)),
            "wk": n(ks[8], (HID, HID)),
            "wv": n(ks[9], (HID, HID)),
            "wo": n(ks[10], (HID, HID)),
            "wout": n(ks[11], (HID, C_LAT)),
            "bout": jnp.zeros((1, C_LAT), F32),
        },
    }


@jax.jit
def ip_adapter_forward(noisy_latents, timesteps, encoder_hidden_states,
                       image_embeds, params):
    u = params["unet"]

    # NCHW -> (B, C, H*W): pure reshape, no transpose (channel-major tokens).
    lat = noisy_latents.reshape(B, C_LAT, HW)
    tsin_t = _timestep_embedding_t(timesteps, HID)                     # (HID, B)

    # Weight-side fusion (tiny XLA prep ops, done once per call):
    #   * fuse image-attn QKV, fold 1/sqrt(d) into Q
    #   * fuse UNet K|V, fold 1/sqrt(HID) into wq
    #   * fold conv_in bias into the timestep-projection bias
    img_scale = 1.0 / jnp.sqrt(jnp.asarray(D_IMG, F32))
    unet_scale = 1.0 / jnp.sqrt(jnp.asarray(HID, F32))
    w_qkv_img = jnp.concatenate(
        [params["attn_wq"] * img_scale, params["attn_wk"], params["attn_wv"]],
        axis=1)                                                        # (32, 96)
    w_kv = jnp.concatenate([u["wk"], u["wv"]], axis=1)                 # (32, 64)
    btin_c = (u["bt"] + u["bin"]).reshape(HID, 1)                      # (32, 1)

    out = pl.pallas_call(
        _ip_adapter_kernel,
        out_shape=jax.ShapeDtypeStruct((B, C_LAT, HW), F32),
        scratch_shapes=[pltpu.VMEM((S_CTX, C_CROSS), F32)],
    )(
        lat, tsin_t, encoder_hidden_states, image_embeds,
        w_qkv_img, params["attn_wo"],
        params["proj_w"], params["proj_b"], params["ln_g"], params["ln_b"],
        u["wt"].T, btin_c,
        u["win"].T,
        (u["wq"] * unet_scale).T, w_kv, u["wo"].T,
        u["wout"].T, u["bout"].reshape(C_LAT, 1),
    )
    # (B, C, HW) -> NCHW: pure reshape, no transpose.
    return out.reshape(B, C_LAT, H, W)


# --------------------------------- main ---------------------------------------
if __name__ == "__main__":
    key = jax.random.PRNGKey(0)
    k_lat, k_txt, k_img, k_par = jax.random.split(key, 4)

    noisy_latents = jax.random.normal(k_lat, (B, C_LAT, H, W), dtype=F32)  # NCHW
    timesteps = jnp.array([10, 500], dtype=jnp.int32)
    encoder_hidden_states = jax.random.normal(k_txt, (B, S_TXT, C_CROSS), dtype=F32)
    image_embeds = jax.random.normal(k_img, (B, N_IMG, D_IMG), dtype=F32)
    params = init_params(k_par)

    noise_pred = ip_adapter_forward(
        noisy_latents, timesteps, encoder_hidden_states, image_embeds, params)
    jax.block_until_ready(noise_pred)

    assert noise_pred.shape == (B, C_LAT, H, W)
    assert bool(jnp.all(jnp.isfinite(noise_pred)))
    print("KERNEL_OK")
</pallas_src>

<mosaic_0001>
module attributes {stable_mosaic.version = 11 : i64} {
  func.func @_ip_adapter_kernel(%arg0: memref<2x4x256xf32, #tpu.memory_space<vmem>>, %arg1: memref<32x2xf32, #tpu.memory_space<vmem>>, %arg2: memref<2x8x32xf32, #tpu.memory_space<vmem>>, %arg3: memref<2x4x32xf32, #tpu.memory_space<vmem>>, %arg4: memref<32x96xf32, #tpu.memory_space<vmem>>, %arg5: memref<32x32xf32, #tpu.memory_space<vmem>>, %arg6: memref<128x128xf32, #tpu.memory_space<vmem>>, %arg7: memref<1x128xf32, #tpu.memory_space<vmem>>, %arg8: memref<1x32xf32, #tpu.memory_space<vmem>>, %arg9: memref<1x32xf32, #tpu.memory_space<vmem>>, %arg10: memref<32x32xf32, #tpu.memory_space<vmem>>, %arg11: memref<32x1xf32, #tpu.memory_space<vmem>>, %arg12: memref<32x4xf32, #tpu.memory_space<vmem>>, %arg13: memref<32x32xf32, #tpu.memory_space<vmem>>, %arg14: memref<32x64xf32, #tpu.memory_space<vmem>>, %arg15: memref<32x32xf32, #tpu.memory_space<vmem>>, %arg16: memref<4x32xf32, #tpu.memory_space<vmem>>, %arg17: memref<4x1xf32, #tpu.memory_space<vmem>>, %arg18: memref<2x4x256xf32, #tpu.memory_space<vmem>>, %arg19: memref<12x32xf32, #tpu.memory_space<vmem>>) attributes {dimension_semantics = [], scalar_prefetch = 0 : i64, scratch_operands = 1 : i64, tpu.core_type = #tpu.core_type<tc>} {
    %c0 = arith.constant 0 : index
    %c0_0 = arith.constant 0 : index
    %0 = vector.load %arg4[%c0, %c0_0] : memref<32x96xf32, #tpu.memory_space<vmem>>, vector<32x96xf32>
    %c0_1 = arith.constant 0 : index
    %c0_2 = arith.constant 0 : index
    %1 = vector.load %arg5[%c0_1, %c0_2] : memref<32x32xf32, #tpu.memory_space<vmem>>, vector<32x32xf32>
    %c0_3 = arith.constant 0 : index
    %c0_4 = arith.constant 0 : index
    %2 = vector.load %arg6[%c0_3, %c0_4] : memref<128x128xf32, #tpu.memory_space<vmem>>, vector<128x128xf32>
    %c0_5 = arith.constant 0 : index
    %c0_6 = arith.constant 0 : index
    %3 = vector.load %arg7[%c0_5, %c0_6] : memref<1x128xf32, #tpu.memory_space<vmem>>, vector<1x128xf32>
    %c0_7 = arith.constant 0 : index
    %c0_8 = arith.constant 0 : index
    %4 = vector.load %arg8[%c0_7, %c0_8] : memref<1x32xf32, #tpu.memory_space<vmem>>, vector<1x32xf32>
    %c0_9 = arith.constant 0 : index
    %c0_10 = arith.constant 0 : index
    %5 = vector.load %arg9[%c0_9, %c0_10] : memref<1x32xf32, #tpu.memory_space<vmem>>, vector<1x32xf32>
    %c0_11 = arith.constant 0 : index
    %c0_12 = arith.constant 0 : index
    %6 = vector.load %arg12[%c0_11, %c0_12] : memref<32x4xf32, #tpu.memory_space<vmem>>, vector<32x4xf32>
    %c0_13 = arith.constant 0 : index
    %c0_14 = arith.constant 0 : index
    %7 = vector.load %arg13[%c0_13, %c0_14] : memref<32x32xf32, #tpu.memory_space<vmem>>, vector<32x32xf32>
    %c0_15 = arith.constant 0 : index
    %c0_16 = arith.constant 0 : index
    %8 = vector.load %arg14[%c0_15, %c0_16] : memref<32x64xf32, #tpu.memory_space<vmem>>, vector<32x64xf32>
    %c0_17 = arith.constant 0 : index
    %c0_18 = arith.constant 0 : index
    %9 = vector.load %arg15[%c0_17, %c0_18] : memref<32x32xf32, #tpu.memory_space<vmem>>, vector<32x32xf32>
    %c0_19 = arith.constant 0 : index
    %c0_20 = arith.constant 0 : index
    %10 = vector.load %arg16[%c0_19, %c0_20] : memref<4x32xf32, #tpu.memory_space<vmem>>, vector<4x32xf32>
    %c0_21 = arith.constant 0 : index
    %c0_22 = arith.constant 0 : index
    %11 = vector.load %arg17[%c0_21, %c0_22] : memref<4x1xf32, #tpu.memory_space<vmem>>, vector<4x1xf32>
    %c0_23 = arith.constant 0 : index
    %c0_24 = arith.constant 0 : index
    %12 = vector.load %arg10[%c0_23, %c0_24] : memref<32x32xf32, #tpu.memory_space<vmem>>, vector<32x32xf32>
    %c0_25 = arith.constant 0 : index
    %c0_26 = arith.constant 0 : index
    %13 = vector.load %arg1[%c0_25, %c0_26] : memref<32x2xf32, #tpu.memory_space<vmem>>, vector<32x2xf32>
    %cst = arith.constant dense<0.000000e+00> : vector<32x2xf32>
    %14 = tpu.matmul %12, %13, %cst {dimension_numbers = #tpu.dot_dimension_numbers<[1], [0], [0], [1], [0, 0, 1, 1], [], []>} : vector<32x32xf32>, vector<32x2xf32>, vector<32x2xf32> -> vector<32x2xf32>
    %c0_27 = arith.constant 0 : index
    %c0_28 = arith.constant 0 : index
    %15 = vector.load %arg11[%c0_27, %c0_28] : memref<32x1xf32, #tpu.memory_space<vmem>>, vector<32x1xf32>
    %16 = vector.broadcast %15 : vector<32x1xf32> to vector<32x2xf32>
    %17 = arith.addf %14, %16 : vector<32x2xf32>
    %18 = tpu.iota {dimensions = array<i32: 0>} : vector<4x32xi32>
    %c0_29 = arith.constant 0 : index
    %c0_30 = arith.constant 0 : index
    %c0_31 = arith.constant 0 : index
    %19 = vector.load %arg3[%c0_29, %c0_30, %c0_31] : memref<2x4x32xf32, #tpu.memory_space<vmem>>, vector<1x4x32xf32>
    %20 = vector.shape_cast %19 : vector<1x4x32xf32> to vector<4x32xf32>
    %cst_32 = arith.constant dense<0.000000e+00> : vector<4x96xf32>
    %21 = tpu.matmul %20, %0, %cst_32 {dimension_numbers = #tpu.dot_dimension_numbers<[1], [0], [0], [1], [0, 0, 1, 1], [], []>} : vector<4x32xf32>, vector<32x96xf32>, vector<4x96xf32> -> vector<4x96xf32>
    %22 = vector.extract_strided_slice %21 {offsets = [0, 0], sizes = [4, 32], strides = [1, 1]} : vector<4x96xf32> to vector<4x32xf32>
    %23 = vector.extract_strided_slice %21 {offsets = [0, 32], sizes = [4, 32], strides = [1, 1]} : vector<4x96xf32> to vector<4x32xf32>
    %24 = vector.extract_strided_slice %21 {offsets = [0, 64], sizes = [4, 32], strides = [1, 1]} : vector<4x96xf32> to vector<4x32xf32>
    "tpu.trace_start"() <{level = 10 : i32, message = "nd,md->nm"}> : () -> ()
    %cst_33 = arith.constant dense<0.000000e+00> : vector<4x4xf32>
    %25 = tpu.matmul %22, %23, %cst_33 {dimension_numbers = #tpu.dot_dimension_numbers<[1], [1], [0], [0], [0, 0, 1, 0], [], []>} : vector<4x32xf32>, vector<4x32xf32>, vector<4x4xf32> -> vector<4x4xf32>
    "tpu.trace_stop"() : () -> ()
    %cst_34 = arith.constant dense<0xFF800000> : vector<4xf32>
    %26 = vector.multi_reduction <maximumf>, %25, %cst_34 [1] : vector<4x4xf32> to vector<4xf32>
    %27 = vector.shape_cast %26 : vector<4xf32> to vector<4x1xf32>
    %28 = vector.broadcast %27 : vector<4x1xf32> to vector<4x4xf32>
    %29 = arith.subf %25, %28 : vector<4x4xf32>
    %30 = math.exp %29 : vector<4x4xf32>
    %cst_35 = arith.constant dense<0.000000e+00> : vector<4xf32>
    %31 = vector.multi_reduction <add>, %30, %cst_35 [1] : vector<4x4xf32> to vector<4xf32>
    %32 = vector.shape_cast %31 : vector<4xf32> to vector<4x1xf32>
    %33 = tpu.reciprocal %32 {approx = true} : vector<4x1xf32> -> vector<4x1xf32>
    %34 = vector.broadcast %33 : vector<4x1xf32> to vector<4x4xf32>
    %35 = arith.mulf %30, %34 : vector<4x4xf32>
    %cst_36 = arith.constant dense<0.000000e+00> : vector<4x32xf32>
    %36 = tpu.matmul %35, %24, %cst_36 {dimension_numbers = #tpu.dot_dimension_numbers<[1], [0], [0], [1], [0, 0, 1, 1], [], []>} : vector<4x4xf32>, vector<4x32xf32>, vector<4x32xf32> -> vector<4x32xf32>
    %cst_37 = arith.constant dense<0.000000e+00> : vector<4x32xf32>
    %37 = tpu.matmul %36, %1, %cst_37 {dimension_numbers = #tpu.dot_dimension_numbers<[1], [0], [0], [1], [0, 0, 1, 1], [], []>} : vector<4x32xf32>, vector<32x32xf32>, vector<4x32xf32> -> vector<4x32xf32>
    %38 = vector.extract_strided_slice %37 {offsets = [0, 0], sizes = [1, 32], strides = [1, 1]} : vector<4x32xf32> to vector<1x32xf32>
    %39 = vector.extract_strided_slice %2 {offsets = [0, 0], sizes = [32, 128], strides = [1, 1]} : vector<128x128xf32> to vector<32x128xf32>
    %cst_38 = arith.constant dense<0.000000e+00> : vector<1x128xf32>
    %40 = tpu.matmul %38, %39, %cst_38 {dimension_numbers = #tpu.dot_dimension_numbers<[1], [0], [0], [1], [0, 0, 1, 1], [], []>} : vector<1x32xf32>, vector<32x128xf32>, vector<1x128xf32> -> vector<1x128xf32>
    %41 = arith.addf %3, %40 : vector<1x128xf32>
    %42 = vector.extract_strided_slice %37 {offsets = [1, 0], sizes = [1, 32], strides = [1, 1]} : vector<4x32xf32> to vector<1x32xf32>
    %43 = vector.extract_strided_slice %2 {offsets = [32, 0], sizes = [32, 128], strides = [1, 1]} : vector<128x128xf32> to vector<32x128xf32>
    %cst_39 = arith.constant dense<0.000000e+00> : vector<1x128xf32>
    %44 = tpu.matmul %42, %43, %cst_39 {dimension_numbers = #tpu.dot_dimension_numbers<[1], [0], [0], [1], [0, 0, 1, 1], [], []>} : vector<1x32xf32>, vector<32x128xf32>, vector<1x128xf32> -> vector<1x128xf32>
    %45 = arith.addf %41, %44 : vector<1x128xf32>
    %46 = vector.extract_strided_slice %37 {offsets = [2, 0], sizes = [1, 32], strides = [1, 1]} : vector<4x32xf32> to vector<1x32xf32>
    %47 = vector.extract_strided_slice %2 {offsets = [64, 0], sizes = [32, 128], strides = [1, 1]} : vector<128x128xf32> to vector<32x128xf32>
    %cst_40 = arith.constant dense<0.000000e+00> : vector<1x128xf32>
    %48 = tpu.matmul %46, %47, %cst_40 {dimension_numbers = #tpu.dot_dimension_numbers<[1], [0], [0], [1], [0, 0, 1, 1], [], []>} : vector<1x32xf32>, vector<32x128xf32>, vector<1x128xf32> -> vector<1x128xf32>
    %49 = arith.addf %45, %48 : vector<1x128xf32>
    %50 = vector.extract_strided_slice %37 {offsets = [3, 0], sizes = [1, 32], strides = [1, 1]} : vector<4x32xf32> to vector<1x32xf32>
    %51 = vector.extract_strided_slice %2 {offsets = [96, 0], sizes = [32, 128], strides = [1, 1]} : vector<128x128xf32> to vector<32x128xf32>
    %cst_41 = arith.constant dense<0.000000e+00> : vector<1x128xf32>
    %52 = tpu.matmul %50, %51, %cst_41 {dimension_numbers = #tpu.dot_dimension_numbers<[1], [0], [0], [1], [0, 0, 1, 1], [], []>} : vector<1x32xf32>, vector<32x128xf32>, vector<1x128xf32> -> vector<1x128xf32>
    %53 = arith.addf %49, %52 : vector<1x128xf32>
    %cst_42 = arith.constant 0.000000e+00 : f32
    %54 = vector.broadcast %cst_42 : f32 to vector<4x32xf32>
    %55 = vector.extract_strided_slice %53 {offsets = [0, 0], sizes = [1, 32], strides = [1, 1]} : vector<1x128xf32> to vector<1x32xf32>
    %56 = vector.shape_cast %55 : vector<1x32xf32> to vector<1x32xf32>
    %57 = vector.broadcast %56 : vector<1x32xf32> to vector<4x32xf32>
    %c0_i32 = arith.constant 0 : i32
    %58 = vector.broadcast %c0_i32 : i32 to vector<4x32xi32>
    %59 = arith.cmpi eq, %18, %58 : vector<4x32xi32>
    %60 = arith.select %59, %57, %54 : vector<4x32xi1>, vector<4x32xf32>
    %61 = vector.extract_strided_slice %53 {offsets = [0, 32], sizes = [1, 32], strides = [1, 1]} : vector<1x128xf32> to vector<1x32xf32>
    %62 = vector.shape_cast %61 : vector<1x32xf32> to vector<1x32xf32>
    %63 = vector.broadcast %62 : vector<1x32xf32> to vector<4x32xf32>
    %c1_i32 = arith.constant 1 : i32
    %64 = vector.broadcast %c1_i32 : i32 to vector<4x32xi32>
    %65 = arith.cmpi eq, %18, %64 : vector<4x32xi32>
    %66 = arith.select %65, %63, %60 : vector<4x32xi1>, vector<4x32xf32>
    %67 = vector.extract_strided_slice %53 {offsets = [0, 64], sizes = [1, 32], strides = [1, 1]} : vector<1x128xf32> to vector<1x32xf32>
    %68 = vector.shape_cast %67 : vector<1x32xf32> to vector<1x32xf32>
    %69 = vector.broadcast %68 : vector<1x32xf32> to vector<4x32xf32>
    %c2_i32 = arith.constant 2 : i32
    %70 = vector.broadcast %c2_i32 : i32 to vector<4x32xi32>
    %71 = arith.cmpi eq, %18, %70 : vector<4x32xi32>
    %72 = arith.select %71, %69, %66 : vector<4x32xi1>, vector<4x32xf32>
    %73 = vector.extract_strided_slice %53 {offsets = [0, 96], sizes = [1, 32], strides = [1, 1]} : vector<1x128xf32> to vector<1x32xf32>
    %74 = vector.shape_cast %73 : vector<1x32xf32> to vector<1x32xf32>
    %75 = vector.broadcast %74 : vector<1x32xf32> to vector<4x32xf32>
    %c3_i32 = arith.constant 3 : i32
    %76 = vector.broadcast %c3_i32 : i32 to vector<4x32xi32>
    %77 = arith.cmpi eq, %18, %76 : vector<4x32xi32>
    %78 = arith.select %77, %75, %72 : vector<4x32xi1>, vector<4x32xf32>
    %cst_43 = arith.constant dense<0.000000e+00> : vector<4xf32>
    %79 = vector.multi_reduction <add>, %78, %cst_43 [1] : vector<4x32xf32> to vector<4xf32>
    %80 = vector.shape_cast %79 : vector<4xf32> to vector<4x1xf32>
    %cst_44 = arith.constant 3.200000e+01 : f32
    %81 = vector.broadcast %cst_44 : f32 to vector<4x1xf32>
    %82 = arith.divf %80, %81 : vector<4x1xf32>
    %83 = vector.broadcast %82 : vector<4x1xf32> to vector<4x32xf32>
    %84 = arith.subf %78, %83 : vector<4x32xf32>
    %85 = vector.broadcast %82 : vector<4x1xf32> to vector<4x32xf32>
    %86 = arith.subf %78, %85 : vector<4x32xf32>
    %87 = arith.mulf %84, %86 : vector<4x32xf32>
    %cst_45 = arith.constant dense<0.000000e+00> : vector<4xf32>
    %88 = vector.multi_reduction <add>, %87, %cst_45 [1] : vector<4x32xf32> to vector<4xf32>
    %89 = vector.shape_cast %88 : vector<4xf32> to vector<4x1xf32>
    %cst_46 = arith.constant 3.200000e+01 : f32
    %90 = vector.broadcast %cst_46 : f32 to vector<4x1xf32>
    %91 = arith.divf %89, %90 : vector<4x1xf32>
    %92 = vector.broadcast %82 : vector<4x1xf32> to vector<4x32xf32>
    %93 = arith.subf %78, %92 : vector<4x32xf32>
    %cst_47 = arith.constant 9.99999974E-6 : f32
    %94 = vector.broadcast %cst_47 : f32 to vector<4x1xf32>
    %95 = arith.addf %91, %94 : vector<4x1xf32>
    %96 = math.rsqrt %95 : vector<4x1xf32>
    %97 = vector.broadcast %96 : vector<4x1xf32> to vector<4x32xf32>
    %98 = arith.mulf %93, %97 : vector<4x32xf32>
    %99 = vector.broadcast %4 : vector<1x32xf32> to vector<4x32xf32>
    %100 = arith.mulf %98, %99 : vector<4x32xf32>
    %101 = vector.broadcast %5 : vector<1x32xf32> to vector<4x32xf32>
    %102 = arith.addf %100, %101 : vector<4x32xf32>
    %c0_48 = arith.constant 0 : index
    %c0_49 = arith.constant 0 : index
    %c0_50 = arith.constant 0 : index
    %103 = vector.load %arg2[%c0_48, %c0_49, %c0_50] : memref<2x8x32xf32, #tpu.memory_space<vmem>>, vector<1x8x32xf32>
    %104 = vector.shape_cast %103 : vector<1x8x32xf32> to vector<8x32xf32>
    %c0_51 = arith.constant 0 : index
    %c0_52 = arith.constant 0 : index
    %105 = vector.load %arg19[%c0_51, %c0_52] : memref<12x32xf32, #tpu.memory_space<vmem>>, vector<8x32xf32>
    tpu.vector_store %arg19[%c0_51, %c0_52], %104 {strides = array<i32>} : memref<12x32xf32, #tpu.memory_space<vmem>>, vector<8x32xf32>,
    %c8 = arith.constant 8 : index
    %c0_53 = arith.constant 0 : index
    %106 = vector.load %arg19[%c8, %c0_53] : memref<12x32xf32, #tpu.memory_space<vmem>>, vector<4x32xf32>
    tpu.vector_store %arg19[%c8, %c0_53], %102 {strides = array<i32>} : memref<12x32xf32, #tpu.memory_space<vmem>>, vector<4x32xf32>,
    %c0_54 = arith.constant 0 : index
    %c0_55 = arith.constant 0 : index
    %107 = vector.load %arg19[%c0_54, %c0_55] : memref<12x32xf32, #tpu.memory_space<vmem>>, vector<12x32xf32>
    %c0_56 = arith.constant 0 : index
    %c0_57 = arith.constant 0 : index
    %c0_58 = arith.constant 0 : index
    %108 = vector.load %arg0[%c0_56, %c0_57, %c0_58] : memref<2x4x256xf32, #tpu.memory_space<vmem>>, vector<1x4x256xf32>
    %109 = vector.shape_cast %108 : vector<1x4x256xf32> to vector<4x256xf32>
    %cst_59 = arith.constant dense<0.000000e+00> : vector<32x256xf32>
    %110 = tpu.matmul %6, %109, %cst_59 {dimension_numbers = #tpu.dot_dimension_numbers<[1], [0], [0], [1], [0, 0, 1, 1], [], []>} : vector<32x4xf32>, vector<4x256xf32>, vector<32x256xf32> -> vector<32x256xf32>
    %111 = vector.extract_strided_slice %17 {offsets = [0, 0], sizes = [32, 1], strides = [1, 1]} : vector<32x2xf32> to vector<32x1xf32>
    %112 = vector.broadcast %111 : vector<32x1xf32> to vector<32x256xf32>
    %113 = arith.addf %110, %112 : vector<32x256xf32>
    %cst_60 = arith.constant dense<0.000000e+00> : vector<32x256xf32>
    %114 = tpu.matmul %7, %113, %cst_60 {dimension_numbers = #tpu.dot_dimension_numbers<[1], [0], [0], [1], [0, 0, 1, 1], [], []>} : vector<32x32xf32>, vector<32x256xf32>, vector<32x256xf32> -> vector<32x256xf32>
    %cst_61 = arith.constant dense<0.000000e+00> : vector<12x64xf32>
    %115 = tpu.matmul %107, %8, %cst_61 {dimension_numbers = #tpu.dot_dimension_numbers<[1], [0], [0], [1], [0, 0, 1, 1], [], []>} : vector<12x32xf32>, vector<32x64xf32>, vector<12x64xf32> -> vector<12x64xf32>
    %116 = vector.extract_strided_slice %115 {offsets = [0, 0], sizes = [12, 32], strides = [1, 1]} : vector<12x64xf32> to vector<12x32xf32>
    %117 = vector.extract_strided_slice %115 {offsets = [0, 32], sizes = [12, 32], strides = [1, 1]} : vector<12x64xf32> to vector<12x32xf32>
    %cst_62 = arith.constant dense<0.000000e+00> : vector<12x256xf32>
    %118 = tpu.matmul %116, %114, %cst_62 {dimension_numbers = #tpu.dot_dimension_numbers<[1], [0], [0], [1], [0, 0, 1, 1], [], []>} : vector<12x32xf32>, vector<32x256xf32>, vector<12x256xf32> -> vector<12x256xf32>
    %cst_63 = arith.constant dense<0xFF800000> : vector<256xf32>
    %119 = vector.multi_reduction <maximumf>, %118, %cst_63 [0] : vector<12x256xf32> to vector<256xf32>
    %120 = vector.shape_cast %119 : vector<256xf32> to vector<1x256xf32>
    %121 = vector.broadcast %120 : vector<1x256xf32> to vector<12x256xf32>
    %122 = arith.subf %118, %121 : vector<12x256xf32>
    %123 = math.exp %122 : vector<12x256xf32>
    %cst_64 = arith.constant dense<0.000000e+00> : vector<256xf32>
    %124 = vector.multi_reduction <add>, %123, %cst_64 [0] : vector<12x256xf32> to vector<256xf32>
    %125 = vector.shape_cast %124 : vector<256xf32> to vector<1x256xf32>
    %126 = tpu.reciprocal %125 {approx = true} : vector<1x256xf32> -> vector<1x256xf32>
    "tpu.trace_start"() <{level = 10 : i32, message = "sh,sw->hw"}> : () -> ()
    %cst_65 = arith.constant dense<0.000000e+00> : vector<32x256xf32>
    %127 = tpu.matmul %117, %123, %cst_65 {dimension_numbers = #tpu.dot_dimension_numbers<[0], [0], [1], [1], [0, 1, 1, 1], [], []>} : vector<12x32xf32>, vector<12x256xf32>, vector<32x256xf32> -> vector<32x256xf32>
    "tpu.trace_stop"() : () -> ()
    %128 = vector.broadcast %126 : vector<1x256xf32> to vector<32x256xf32>
    %129 = arith.mulf %127, %128 : vector<32x256xf32>
    %cst_66 = arith.constant dense<0.000000e+00> : vector<32x256xf32>
    %130 = tpu.matmul %9, %129, %cst_66 {dimension_numbers = #tpu.dot_dimension_numbers<[1], [0], [0], [1], [0, 0, 1, 1], [], []>} : vector<32x32xf32>, vector<32x256xf32>, vector<32x256xf32> -> vector<32x256xf32>
    %131 = arith.addf %113, %130 : vector<32x256xf32>
    %cst_67 = arith.constant dense<0.000000e+00> : vector<4x256xf32>
    %132 = tpu.matmul %10, %131, %cst_67 {dimension_numbers = #tpu.dot_dimension_numbers<[1], [0], [0], [1], [0, 0, 1, 1], [], []>} : vector<4x32xf32>, vector<32x256xf32>, vector<4x256xf32> -> vector<4x256xf32>
    %133 = vector.broadcast %11 : vector<4x1xf32> to vector<4x256xf32>
    %134 = arith.addf %132, %133 : vector<4x256xf32>
    %c0_68 = arith.constant 0 : index
    %c0_69 = arith.constant 0 : index
    %c0_70 = arith.constant 0 : index
    %135 = vector.load %arg18[%c0_68, %c0_69, %c0_70] : memref<2x4x256xf32, #tpu.memory_space<vmem>>, vector<1x4x256xf32>
    %136 = vector.shape_cast %135 : vector<1x4x256xf32> to vector<4x256xf32>
    %137 = vector.shape_cast %134 : vector<4x256xf32> to vector<1x4x256xf32>
    tpu.vector_store %arg18[%c0_68, %c0_69, %c0_70], %137 {strides = array<i32>} : memref<2x4x256xf32, #tpu.memory_space<vmem>>, vector<1x4x256xf32>,
    %c1 = arith.constant 1 : index
    %c0_71 = arith.constant 0 : index
    %c0_72 = arith.constant 0 : index
    %138 = vector.load %arg3[%c1, %c0_71, %c0_72] : memref<2x4x32xf32, #tpu.memory_space<vmem>>, vector<1x4x32xf32>
    %139 = vector.shape_cast %138 : vector<1x4x32xf32> to vector<4x32xf32>
    %cst_73 = arith.constant dense<0.000000e+00> : vector<4x96xf32>
    %140 = tpu.matmul %139, %0, %cst_73 {dimension_numbers = #tpu.dot_dimension_numbers<[1], [0], [0], [1], [0, 0, 1, 1], [], []>} : vector<4x32xf32>, vector<32x96xf32>, vector<4x96xf32> -> vector<4x96xf32>
    %141 = vector.extract_strided_slice %140 {offsets = [0, 0], sizes = [4, 32], strides = [1, 1]} : vector<4x96xf32> to vector<4x32xf32>
    %142 = vector.extract_strided_slice %140 {offsets = [0, 32], sizes = [4, 32], strides = [1, 1]} : vector<4x96xf32> to vector<4x32xf32>
    %143 = vector.extract_strided_slice %140 {offsets = [0, 64], sizes = [4, 32], strides = [1, 1]} : vector<4x96xf32> to vector<4x32xf32>
    "tpu.trace_start"() <{level = 10 : i32, message = "nd,md->nm"}> : () -> ()
    %cst_74 = arith.constant dense<0.000000e+00> : vector<4x4xf32>
    %144 = tpu.matmul %141, %142, %cst_74 {dimension_numbers = #tpu.dot_dimension_numbers<[1], [1], [0], [0], [0, 0, 1, 0], [], []>} : vector<4x32xf32>, vector<4x32xf32>, vector<4x4xf32> -> vector<4x4xf32>
    "tpu.trace_stop"() : () -> ()
    %cst_75 = arith.constant dense<0xFF800000> : vector<4xf32>
    %145 = vector.multi_reduction <maximumf>, %144, %cst_75 [1] : vector<4x4xf32> to vector<4xf32>
    %146 = vector.shape_cast %145 : vector<4xf32> to vector<4x1xf32>
    %147 = vector.broadcast %146 : vector<4x1xf32> to vector<4x4xf32>
    %148 = arith.subf %144, %147 : vector<4x4xf32>
    %149 = math.exp %148 : vector<4x4xf32>
    %cst_76 = arith.constant dense<0.000000e+00> : vector<4xf32>
    %150 = vector.multi_reduction <add>, %149, %cst_76 [1] : vector<4x4xf32> to vector<4xf32>
    %151 = vector.shape_cast %150 : vector<4xf32> to vector<4x1xf32>
    %152 = tpu.reciprocal %151 {approx = true} : vector<4x1xf32> -> vector<4x1xf32>
    %153 = vector.broadcast %152 : vector<4x1xf32> to vector<4x4xf32>
    %154 = arith.mulf %149, %153 : vector<4x4xf32>
    %cst_77 = arith.constant dense<0.000000e+00> : vector<4x32xf32>
    %155 = tpu.matmul %154, %143, %cst_77 {dimension_numbers = #tpu.dot_dimension_numbers<[1], [0], [0], [1], [0, 0, 1, 1], [], []>} : vector<4x4xf32>, vector<4x32xf32>, vector<4x32xf32> -> vector<4x32xf32>
    %cst_78 = arith.constant dense<0.000000e+00> : vector<4x32xf32>
    %156 = tpu.matmul %155, %1, %cst_78 {dimension_numbers = #tpu.dot_dimension_numbers<[1], [0], [0], [1], [0, 0, 1, 1], [], []>} : vector<4x32xf32>, vector<32x32xf32>, vector<4x32xf32> -> vector<4x32xf32>
    %157 = vector.extract_strided_slice %156 {offsets = [0, 0], sizes = [1, 32], strides = [1, 1]} : vector<4x32xf32> to vector<1x32xf32>
    %158 = vector.extract_strided_slice %2 {offsets = [0, 0], sizes = [32, 128], strides = [1, 1]} : vector<128x128xf32> to vector<32x128xf32>
    %cst_79 = arith.constant dense<0.000000e+00> : vector<1x128xf32>
    %159 = tpu.matmul %157, %158, %cst_79 {dimension_numbers = #tpu.dot_dimension_numbers<[1], [0], [0], [1], [0, 0, 1, 1], [], []>} : vector<1x32xf32>, vector<32x128xf32>, vector<1x128xf32> -> vector<1x128xf32>
    %160 = arith.addf %3, %159 : vector<1x128xf32>
    %161 = vector.extract_strided_slice %156 {offsets = [1, 0], sizes = [1, 32], strides = [1, 1]} : vector<4x32xf32> to vector<1x32xf32>
    %162 = vector.extract_strided_slice %2 {offsets = [32, 0], sizes = [32, 128], strides = [1, 1]} : vector<128x128xf32> to vector<32x128xf32>
    %cst_80 = arith.constant dense<0.000000e+00> : vector<1x128xf32>
    %163 = tpu.matmul %161, %162, %cst_80 {dimension_numbers = #tpu.dot_dimension_numbers<[1], [0], [0], [1], [0, 0, 1, 1], [], []>} : vector<1x32xf32>, vector<32x128xf32>, vector<1x128xf32> -> vector<1x128xf32>
    %164 = arith.addf %160, %163 : vector<1x128xf32>
    %165 = vector.extract_strided_slice %156 {offsets = [2, 0], sizes = [1, 32], strides = [1, 1]} : vector<4x32xf32> to vector<1x32xf32>
    %166 = vector.extract_strided_slice %2 {offsets = [64, 0], sizes = [32, 128], strides = [1, 1]} : vector<128x128xf32> to vector<32x128xf32>
    %cst_81 = arith.constant dense<0.000000e+00> : vector<1x128xf32>
    %167 = tpu.matmul %165, %166, %cst_81 {dimension_numbers = #tpu.dot_dimension_numbers<[1], [0], [0], [1], [0, 0, 1, 1], [], []>} : vector<1x32xf32>, vector<32x128xf32>, vector<1x128xf32> -> vector<1x128xf32>
    %168 = arith.addf %164, %167 : vector<1x128xf32>
    %169 = vector.extract_strided_slice %156 {offsets = [3, 0], sizes = [1, 32], strides = [1, 1]} : vector<4x32xf32> to vector<1x32xf32>
    %170 = vector.extract_strided_slice %2 {offsets = [96, 0], sizes = [32, 128], strides = [1, 1]} : vector<128x128xf32> to vector<32x128xf32>
    %cst_82 = arith.constant dense<0.000000e+00> : vector<1x128xf32>
    %171 = tpu.matmul %169, %170, %cst_82 {dimension_numbers = #tpu.dot_dimension_numbers<[1], [0], [0], [1], [0, 0, 1, 1], [], []>} : vector<1x32xf32>, vector<32x128xf32>, vector<1x128xf32> -> vector<1x128xf32>
    %172 = arith.addf %168, %171 : vector<1x128xf32>
    %cst_83 = arith.constant 0.000000e+00 : f32
    %173 = vector.broadcast %cst_83 : f32 to vector<4x32xf32>
    %174 = vector.extract_strided_slice %172 {offsets = [0, 0], sizes = [1, 32], strides = [1, 1]} : vector<1x128xf32> to vector<1x32xf32>
    %175 = vector.shape_cast %174 : vector<1x32xf32> to vector<1x32xf32>
    %176 = vector.broadcast %175 : vector<1x32xf32> to vector<4x32xf32>
    %c0_i32_84 = arith.constant 0 : i32
    %177 = vector.broadcast %c0_i32_84 : i32 to vector<4x32xi32>
    %178 = arith.cmpi eq, %18, %177 : vector<4x32xi32>
    %179 = arith.select %178, %176, %173 : vector<4x32xi1>, vector<4x32xf32>
    %180 = vector.extract_strided_slice %172 {offsets = [0, 32], sizes = [1, 32], strides = [1, 1]} : vector<1x128xf32> to vector<1x32xf32>
    %181 = vector.shape_cast %180 : vector<1x32xf32> to vector<1x32xf32>
    %182 = vector.broadcast %181 : vector<1x32xf32> to vector<4x32xf32>
    %c1_i32_85 = arith.constant 1 : i32
    %183 = vector.broadcast %c1_i32_85 : i32 to vector<4x32xi32>
    %184 = arith.cmpi eq, %18, %183 : vector<4x32xi32>
    %185 = arith.select %184, %182, %179 : vector<4x32xi1>, vector<4x32xf32>
    %186 = vector.extract_strided_slice %172 {offsets = [0, 64], sizes = [1, 32], strides = [1, 1]} : vector<1x128xf32> to vector<1x32xf32>
    %187 = vector.shape_cast %186 : vector<1x32xf32> to vector<1x32xf32>
    %188 = vector.broadcast %187 : vector<1x32xf32> to vector<4x32xf32>
    %c2_i32_86 = arith.constant 2 : i32
    %189 = vector.broadcast %c2_i32_86 : i32 to vector<4x32xi32>
    %190 = arith.cmpi eq, %18, %189 : vector<4x32xi32>
    %191 = arith.select %190, %188, %185 : vector<4x32xi1>, vector<4x32xf32>
    %192 = vector.extract_strided_slice %172 {offsets = [0, 96], sizes = [1, 32], strides = [1, 1]} : vector<1x128xf32> to vector<1x32xf32>
    %193 = vector.shape_cast %192 : vector<1x32xf32> to vector<1x32xf32>
    %194 = vector.broadcast %193 : vector<1x32xf32> to vector<4x32xf32>
    %c3_i32_87 = arith.constant 3 : i32
    %195 = vector.broadcast %c3_i32_87 : i32 to vector<4x32xi32>
    %196 = arith.cmpi eq, %18, %195 : vector<4x32xi32>
    %197 = arith.select %196, %194, %191 : vector<4x32xi1>, vector<4x32xf32>
    %cst_88 = arith.constant dense<0.000000e+00> : vector<4xf32>
    %198 = vector.multi_reduction <add>, %197, %cst_88 [1] : vector<4x32xf32> to vector<4xf32>
    %199 = vector.shape_cast %198 : vector<4xf32> to vector<4x1xf32>
    %cst_89 = arith.constant 3.200000e+01 : f32
    %200 = vector.broadcast %cst_89 : f32 to vector<4x1xf32>
    %201 = arith.divf %199, %200 : vector<4x1xf32>
    %202 = vector.broadcast %201 : vector<4x1xf32> to vector<4x32xf32>
    %203 = arith.subf %197, %202 : vector<4x32xf32>
    %204 = vector.broadcast %201 : vector<4x1xf32> to vector<4x32xf32>
    %205 = arith.subf %197, %204 : vector<4x32xf32>
    %206 = arith.mulf %203, %205 : vector<4x32xf32>
    %cst_90 = arith.constant dense<0.000000e+00> : vector<4xf32>
    %207 = vector.multi_reduction <add>, %206, %cst_90 [1] : vector<4x32xf32> to vector<4xf32>
    %208 = vector.shape_cast %207 : vector<4xf32> to vector<4x1xf32>
    %cst_91 = arith.constant 3.200000e+01 : f32
    %209 = vector.broadcast %cst_91 : f32 to vector<4x1xf32>
    %210 = arith.divf %208, %209 : vector<4x1xf32>
    %211 = vector.broadcast %201 : vector<4x1xf32> to vector<4x32xf32>
    %212 = arith.subf %197, %211 : vector<4x32xf32>
    %cst_92 = arith.constant 9.99999974E-6 : f32
    %213 = vector.broadcast %cst_92 : f32 to vector<4x1xf32>
    %214 = arith.addf %210, %213 : vector<4x1xf32>
    %215 = math.rsqrt %214 : vector<4x1xf32>
    %216 = vector.broadcast %215 : vector<4x1xf32> to vector<4x32xf32>
    %217 = arith.mulf %212, %216 : vector<4x32xf32>
    %218 = vector.broadcast %4 : vector<1x32xf32> to vector<4x32xf32>
    %219 = arith.mulf %217, %218 : vector<4x32xf32>
    %220 = vector.broadcast %5 : vector<1x32xf32> to vector<4x32xf32>
    %221 = arith.addf %219, %220 : vector<4x32xf32>
    %c1_93 = arith.constant 1 : index
    %c0_94 = arith.constant 0 : index
    %c0_95 = arith.constant 0 : index
    %222 = vector.load %arg2[%c1_93, %c0_94, %c0_95] : memref<2x8x32xf32, #tpu.memory_space<vmem>>, vector<1x8x32xf32>
    %223 = vector.shape_cast %222 : vector<1x8x32xf32> to vector<8x32xf32>
    %c0_96 = arith.constant 0 : index
    %c0_97 = arith.constant 0 : index
    %224 = vector.load %arg19[%c0_96, %c0_97] : memref<12x32xf32, #tpu.memory_space<vmem>>, vector<8x32xf32>
    tpu.vector_store %arg19[%c0_96, %c0_97], %223 {strides = array<i32>} : memref<12x32xf32, #tpu.memory_space<vmem>>, vector<8x32xf32>,
    %c8_98 = arith.constant 8 : index
    %c0_99 = arith.constant 0 : index
    %225 = vector.load %arg19[%c8_98, %c0_99] : memref<12x32xf32, #tpu.memory_space<vmem>>, vector<4x32xf32>
    tpu.vector_store %arg19[%c8_98, %c0_99], %221 {strides = array<i32>} : memref<12x32xf32, #tpu.memory_space<vmem>>, vector<4x32xf32>,
    %c0_100 = arith.constant 0 : index
    %c0_101 = arith.constant 0 : index
    %226 = vector.load %arg19[%c0_100, %c0_101] : memref<12x32xf32, #tpu.memory_space<vmem>>, vector<12x32xf32>
    %c1_102 = arith.constant 1 : index
    %c0_103 = arith.constant 0 : index
    %c0_104 = arith.constant 0 : index
    %227 = vector.load %arg0[%c1_102, %c0_103, %c0_104] : memref<2x4x256xf32, #tpu.memory_space<vmem>>, vector<1x4x256xf32>
    %228 = vector.shape_cast %227 : vector<1x4x256xf32> to vector<4x256xf32>
    %cst_105 = arith.constant dense<0.000000e+00> : vector<32x256xf32>
    %229 = tpu.matmul %6, %228, %cst_105 {dimension_numbers = #tpu.dot_dimension_numbers<[1], [0], [0], [1], [0, 0, 1, 1], [], []>} : vector<32x4xf32>, vector<4x256xf32>, vector<32x256xf32> -> vector<32x256xf32>
    %230 = vector.extract_strided_slice %17 {offsets = [0, 1], sizes = [32, 1], strides = [1, 1]} : vector<32x2xf32> to vector<32x1xf32>
    %231 = vector.broadcast %230 : vector<32x1xf32> to vector<32x256xf32>
    %232 = arith.addf %229, %231 : vector<32x256xf32>
    %cst_106 = arith.constant dense<0.000000e+00> : vector<32x256xf32>
    %233 = tpu.matmul %7, %232, %cst_106 {dimension_numbers = #tpu.dot_dimension_numbers<[1], [0], [0], [1], [0, 0, 1, 1], [], []>} : vector<32x32xf32>, vector<32x256xf32>, vector<32x256xf32> -> vector<32x256xf32>
    %cst_107 = arith.constant dense<0.000000e+00> : vector<12x64xf32>
    %234 = tpu.matmul %226, %8, %cst_107 {dimension_numbers = #tpu.dot_dimension_numbers<[1], [0], [0], [1], [0, 0, 1, 1], [], []>} : vector<12x32xf32>, vector<32x64xf32>, vector<12x64xf32> -> vector<12x64xf32>
    %235 = vector.extract_strided_slice %234 {offsets = [0, 0], sizes = [12, 32], strides = [1, 1]} : vector<12x64xf32> to vector<12x32xf32>
    %236 = vector.extract_strided_slice %234 {offsets = [0, 32], sizes = [12, 32], strides = [1, 1]} : vector<12x64xf32> to vector<12x32xf32>
    %cst_108 = arith.constant dense<0.000000e+00> : vector<12x256xf32>
    %237 = tpu.matmul %235, %233, %cst_108 {dimension_numbers = #tpu.dot_dimension_numbers<[1], [0], [0], [1], [0, 0, 1, 1], [], []>} : vector<12x32xf32>, vector<32x256xf32>, vector<12x256xf32> -> vector<12x256xf32>
    %cst_109 = arith.constant dense<0xFF800000> : vector<256xf32>
    %238 = vector.multi_reduction <maximumf>, %237, %cst_109 [0] : vector<12x256xf32> to vector<256xf32>
    %239 = vector.shape_cast %238 : vector<256xf32> to vector<1x256xf32>
    %240 = vector.broadcast %239 : vector<1x256xf32> to vector<12x256xf32>
    %241 = arith.subf %237, %240 : vector<12x256xf32>
    %242 = math.exp %241 : vector<12x256xf32>
    %cst_110 = arith.constant dense<0.000000e+00> : vector<256xf32>
    %243 = vector.multi_reduction <add>, %242, %cst_110 [0] : vector<12x256xf32> to vector<256xf32>
    %244 = vector.shape_cast %243 : vector<256xf32> to vector<1x256xf32>
    %245 = tpu.reciprocal %244 {approx = true} : vector<1x256xf32> -> vector<1x256xf32>
    "tpu.trace_start"() <{level = 10 : i32, message = "sh,sw->hw"}> : () -> ()
    %cst_111 = arith.constant dense<0.000000e+00> : vector<32x256xf32>
    %246 = tpu.matmul %236, %242, %cst_111 {dimension_numbers = #tpu.dot_dimension_numbers<[0], [0], [1], [1], [0, 1, 1, 1], [], []>} : vector<12x32xf32>, vector<12x256xf32>, vector<32x256xf32> -> vector<32x256xf32>
    "tpu.trace_stop"() : () -> ()
    %247 = vector.broadcast %245 : vector<1x256xf32> to vector<32x256xf32>
    %248 = arith.mulf %246, %247 : vector<32x256xf32>
    %cst_112 = arith.constant dense<0.000000e+00> : vector<32x256xf32>
    %249 = tpu.matmul %9, %248, %cst_112 {dimension_numbers = #tpu.dot_dimension_numbers<[1], [0], [0], [1], [0, 0, 1, 1], [], []>} : vector<32x32xf32>, vector<32x256xf32>, vector<32x256xf32> -> vector<32x256xf32>
    %250 = arith.addf %232, %249 : vector<32x256xf32>
    %cst_113 = arith.constant dense<0.000000e+00> : vector<4x256xf32>
    %251 = tpu.matmul %10, %250, %cst_113 {dimension_numbers = #tpu.dot_dimension_numbers<[1], [0], [0], [1], [0, 0, 1, 1], [], []>} : vector<4x32xf32>, vector<32x256xf32>, vector<4x256xf32> -> vector<4x256xf32>
    %252 = vector.broadcast %11 : vector<4x1xf32> to vector<4x256xf32>
    %253 = arith.addf %251, %252 : vector<4x256xf32>
    %c1_114 = arith.constant 1 : index
    %c0_115 = arith.constant 0 : index
    %c0_116 = arith.constant 0 : index
    %254 = vector.load %arg18[%c1_114, %c0_115, %c0_116] : memref<2x4x256xf32, #tpu.memory_space<vmem>>, vector<1x4x256xf32>
    %255 = vector.shape_cast %254 : vector<1x4x256xf32> to vector<4x256xf32>
    %256 = vector.shape_cast %253 : vector<4x256xf32> to vector<1x4x256xf32>
    tpu.vector_store %arg18[%c1_114, %c0_115, %c0_116], %256 {strides = array<i32>} : memref<2x4x256xf32, #tpu.memory_space<vmem>>, vector<1x4x256xf32>,
    return
  }
}

</mosaic_0001>

<llo_original>
// kernel: ip_adapter_forward.1
$region0: #{ip_adapter_forward.1}
  #allocation0 [shape = 'u32[]', space=smem, size = 0x4, offset = 0x4, fixed_abs, tag = 'smem constant byte address 0x4 - core index']
  #allocation1 [shape = 'u32[144,128]{1,0:T(1,128)}', space=vmem, size = 0x12000, scoped, tag = 'internal scratch']
  #allocation2 [shape = 'f32[12,32]{1,0:T(8,128)}', space=vmem, size = 0x2000, scoped, tag = 'scratch operand']
  %s0 = inlined_call_operand.vmem [shape: f32[2,4,256], index: 0, kind: input, shape index: {}]
  %s1 = inlined_call_operand.vmem [shape: f32[32,2], index: 1, kind: input, shape index: {}]
  %s2 = inlined_call_operand.vmem [shape: f32[2,8,32], index: 2, kind: input, shape index: {}]
  %s3 = inlined_call_operand.vmem [shape: f32[2,4,32], index: 3, kind: input, shape index: {}]
  %s4 = inlined_call_operand.vmem [shape: f32[32,96], index: 4, kind: input, shape index: {}]
  %s5 = inlined_call_operand.vmem [shape: f32[32,32], index: 5, kind: input, shape index: {}]
  %s6 = inlined_call_operand.vmem [shape: f32[128,128], index: 6, kind: input, shape index: {}]
  %s7 = inlined_call_operand.vmem [shape: f32[1,128], index: 7, kind: input, shape index: {}]
  %s8 = inlined_call_operand.vmem [shape: f32[1,32], index: 8, kind: input, shape index: {}]
  %s9 = inlined_call_operand.vmem [shape: f32[1,32], index: 9, kind: input, shape index: {}]
  %s10 = inlined_call_operand.vmem [shape: f32[32,32], index: 10, kind: input, shape index: {}]
  %s11 = inlined_call_operand.vmem [shape: f32[32,1], index: 11, kind: input, shape index: {}]
  %s12 = inlined_call_operand.vmem [shape: f32[32,4], index: 12, kind: input, shape index: {}]
  %s13 = inlined_call_operand.vmem [shape: f32[32,32], index: 13, kind: input, shape index: {}]
  %s14 = inlined_call_operand.vmem [shape: f32[32,64], index: 14, kind: input, shape index: {}]
  %s15 = inlined_call_operand.vmem [shape: f32[32,32], index: 15, kind: input, shape index: {}]
  %s16 = inlined_call_operand.vmem [shape: f32[4,32], index: 16, kind: input, shape index: {}]
  %s17 = inlined_call_operand.vmem [shape: f32[4,1], index: 17, kind: input, shape index: {}]
  %s18 = inlined_call_operand.vmem [shape: f32[2,4,256], index: 18, kind: output, shape index: {}]
  %s19 = sld [smem:[#allocation0]]
  $region82: #{ip_adapter_forward.1} parent=0
    _
  %s21 = ssub.s32 1, %s19
  %s22 = scalar_select 0, %s21, %s19
  // Predicated region
  $region2: #{ip_adapter_forward.1} parent=0 // pred_check
    _
  $region3: #{ip_adapter_forward.1} parent=0 // pred_check_branch
    %24 = sbr.rel (0) target = $region5
  $region4: #{ip_adapter_forward.1} parent=0 // pred_region
    _
  $region5: #{ip_adapter_forward.1} parent=0 // pred_fallthru
    _
  // Predicated region
  $region6: #{ip_adapter_forward.1} parent=0 // pred_check
    _
  $region7: #{ip_adapter_forward.1} parent=0 // pred_check_branch
    %26 = sbr.rel (0) target = $region9
  $region8: #{ip_adapter_forward.1} parent=0 // pred_region
    _
  $region9: #{ip_adapter_forward.1} parent=0 // pred_fallthru
    _
  // Predicated region
  $region10: #{ip_adapter_forward.1} parent=0 // pred_check
    _
  $region11: #{ip_adapter_forward.1} parent=0 // pred_check_branch
    %28 = sbr.rel (0) target = $region13
  $region12: #{ip_adapter_forward.1} parent=0 // pred_region
    _
  $region13: #{ip_adapter_forward.1} parent=0 // pred_fallthru
    _
  // Predicated region
  $region14: #{ip_adapter_forward.1} parent=0 // pred_check
    _
  $region15: #{ip_adapter_forward.1} parent=0 // pred_check_branch
    %30 = sbr.rel (0) target = $region17
  $region16: #{ip_adapter_forward.1} parent=0 // pred_region
    _
  $region17: #{ip_adapter_forward.1} parent=0 // pred_fallthru
    _
  // Predicated region
  $region18: #{ip_adapter_forward.1} parent=0 // pred_check
    _
  $region19: #{ip_adapter_forward.1} parent=0 // pred_check_branch
    %32 = sbr.rel (0) target = $region21
  $region20: #{ip_adapter_forward.1} parent=0 // pred_region
    _
  $region21: #{ip_adapter_forward.1} parent=0 // pred_fallthru
    _
  // Predicated region
  $region22: #{ip_adapter_forward.1} parent=0 // pred_check
    _
  $region23: #{ip_adapter_forward.1} parent=0 // pred_check_branch
    %34 = sbr.rel (0) target = $region25
  $region24: #{ip_adapter_forward.1} parent=0 // pred_region
    _
  $region25: #{ip_adapter_forward.1} parent=0 // pred_fallthru
    _
  // Predicated region
  $region26: #{ip_adapter_forward.1} parent=0 // pred_check
    _
  $region27: #{ip_adapter_forward.1} parent=0 // pred_check_branch
    %36 = sbr.rel (0) target = $region29
  $region28: #{ip_adapter_forward.1} parent=0 // pred_region
    _
  $region29: #{ip_adapter_forward.1} parent=0 // pred_fallthru
    _
  // Predicated region
  $region30: #{ip_adapter_forward.1} parent=0 // pred_check
    _
  $region31: #{ip_adapter_forward.1} parent=0 // pred_check_branch
    %38 = sbr.rel (0) target = $region33
  $region32: #{ip_adapter_forward.1} parent=0 // pred_region
    _
  $region33: #{ip_adapter_forward.1} parent=0 // pred_fallthru
    _
  // Predicated region
  $region34: #{ip_adapter_forward.1} parent=0 // pred_check
    _
  $region35: #{ip_adapter_forward.1} parent=0 // pred_check_branch
    %40 = sbr.rel (0) target = $region37
  $region36: #{ip_adapter_forward.1} parent=0 // pred_region
    _
  $region37: #{ip_adapter_forward.1} parent=0 // pred_fallthru
    _
  // Predicated region
  $region38: #{ip_adapter_forward.1} parent=0 // pred_check
    _
  $region39: #{ip_adapter_forward.1} parent=0 // pred_check_branch
    %42 = sbr.rel (0) target = $region41
  $region40: #{ip_adapter_forward.1} parent=0 // pred_region
    _
  $region41: #{ip_adapter_forward.1} parent=0 // pred_fallthru
    _
  // Predicated region
  $region42: #{ip_adapter_forward.1} parent=0 // pred_check
    _
  $region43: #{ip_adapter_forward.1} parent=0 // pred_check_branch
    %44 = sbr.rel (0) target = $region45
  $region44: #{ip_adapter_forward.1} parent=0 // pred_region
    _
  $region45: #{ip_adapter_forward.1} parent=0 // pred_fallthru
    _
  // Predicated region
  $region46: #{ip_adapter_forward.1} parent=0 // pred_check
    _
  $region47: #{ip_adapter_forward.1} parent=0 // pred_check_branch
    %46 = sbr.rel (0) target = $region49
  $region48: #{ip_adapter_forward.1} parent=0 // pred_region
    _
  $region49: #{ip_adapter_forward.1} parent=0 // pred_fallthru
    _
  // Predicated region
  $region50: #{ip_adapter_forward.1} parent=0 // pred_check
    _
  $region51: #{ip_adapter_forward.1} parent=0 // pred_check_branch
    %48 = sbr.rel (0) target = $region53
  $region52: #{ip_adapter_forward.1} parent=0 // pred_region
    _
  $region53: #{ip_adapter_forward.1} parent=0 // pred_fallthru
    _
  // Predicated region
  $region54: #{ip_adapter_forward.1} parent=0 // pred_check
    _
  $region55: #{ip_adapter_forward.1} parent=0 // pred_check_branch
    %50 = sbr.rel (0) target = $region57
  $region56: #{ip_adapter_forward.1} parent=0 // pred_region
    _
  $region57: #{ip_adapter_forward.1} parent=0 // pred_fallthru
    _
  // Predicated region
  $region58: #{ip_adapter_forward.1} parent=0 // pred_check
    _
  $region59: #{ip_adapter_forward.1} parent=0 // pred_check_branch
    %52 = sbr.rel (0) target = $region61
  $region60: #{ip_adapter_forward.1} parent=0 // pred_region
    _
  $region61: #{ip_adapter_forward.1} parent=0 // pred_fallthru
    _
  // Predicated region
  $region62: #{ip_adapter_forward.1} parent=0 // pred_check
    _
  $region63: #{ip_adapter_forward.1} parent=0 // pred_check_branch
    %54 = sbr.rel (0) target = $region65
  $region64: #{ip_adapter_forward.1} parent=0 // pred_region
    _
  $region65: #{ip_adapter_forward.1} parent=0 // pred_fallthru
    _
  // Predicated region
  $region66: #{ip_adapter_forward.1} parent=0 // pred_check
    _
  $region67: #{ip_adapter_forward.1} parent=0 // pred_check_branch
    %56 = sbr.rel (0) target = $region69
  $region68: #{ip_adapter_forward.1} parent=0 // pred_region
    _
  $region69: #{ip_adapter_forward.1} parent=0 // pred_fallthru
    _
  // Predicated region
  $region70: #{ip_adapter_forward.1} parent=0 // pred_check
    _
  $region71: #{ip_adapter_forward.1} parent=0 // pred_check_branch
    %58 = sbr.rel (0) target = $region73
  $region72: #{ip_adapter_forward.1} parent=0 // pred_region
    _
  $region73: #{ip_adapter_forward.1} parent=0 // pred_fallthru
    _
  %v59 = vld [vmem:[%s4] sm:$0xff]
  %v60 = vld [vmem:[%s4 + $0x8] sm:$0xff]
  %v61 = vld [vmem:[%s4 + $0x10] sm:$0xff]
  %v62 = vld [vmem:[%s4 + $0x18] sm:$0xff]
  %v63 = vld [vmem:[%s5] sm:$0xff]
  %v64 = vld [vmem:[%s5 + $0x8] sm:$0xff]
  %v65 = vld [vmem:[%s5 + $0x10] sm:$0xff]
  %v66 = vld [vmem:[%s5 + $0x18] sm:$0xff]
  %v67 = vld [vmem:[%s6] sm:$0xff]
  %v68 = vld [vmem:[%s6 + $0x8] sm:$0xff]
  %v69 = vld [vmem:[%s6 + $0x10] sm:$0xff]
  %v70 = vld [vmem:[%s6 + $0x18] sm:$0xff]
  %v71 = vld [vmem:[%s6 + $0x20] sm:$0xff]
  %v72 = vld [vmem:[%s6 + $0x28] sm:$0xff]
  %v73 = vld [vmem:[%s6 + $0x30] sm:$0xff]
  %v74 = vld [vmem:[%s6 + $0x38] sm:$0xff]
  %v75 = vld [vmem:[%s6 + $0x40] sm:$0xff]
  %v76 = vld [vmem:[%s6 + $0x48] sm:$0xff]
  %v77 = vld [vmem:[%s6 + $0x50] sm:$0xff]
  %v78 = vld [vmem:[%s6 + $0x58] sm:$0xff]
  %v79 = vld [vmem:[%s6 + $0x60] sm:$0xff]
  %v80 = vld [vmem:[%s6 + $0x68] sm:$0xff]
  %v81 = vld [vmem:[%s6 + $0x70] sm:$0xff]
  %v82 = vld [vmem:[%s6 + $0x78] sm:$0xff]
  %v83 = vld [vmem:[%s7] sm:$0x1]
  %v84 = vld [vmem:[%s8] sm:$0x1]
  %v85 = vld [vmem:[%s9] sm:$0x1]
  %v86 = vld [vmem:[%s12] sm:$0xff]
  %v87 = vld [vmem:[%s12 + $0x8] sm:$0xff]
  %v88 = vld [vmem:[%s12 + $0x10] sm:$0xff]
  %v89 = vld [vmem:[%s12 + $0x18] sm:$0xff]
  %v90 = vld [vmem:[%s13] sm:$0xff]
  %v91 = vld [vmem:[%s13 + $0x8] sm:$0xff]
  %v92 = vld [vmem:[%s13 + $0x10] sm:$0xff]
  %v93 = vld [vmem:[%s13 + $0x18] sm:$0xff]
  %v94 = vld [vmem:[%s14] sm:$0xff]
  %v95 = vld [vmem:[%s14 + $0x8] sm:$0xff]
  %v96 = vld [vmem:[%s14 + $0x10] sm:$0xff]
  %v97 = vld [vmem:[%s14 + $0x18] sm:$0xff]
  %v98 = vld [vmem:[%s15] sm:$0xff]
  %v99 = vld [vmem:[%s15 + $0x8] sm:$0xff]
  %v100 = vld [vmem:[%s15 + $0x10] sm:$0xff]
  %v101 = vld [vmem:[%s15 + $0x18] sm:$0xff]
  %v102 = vld [vmem:[%s16] sm:$0xf]
  %v103 = vld [vmem:[%s17] sm:$0xf]
  %v104 = vld [vmem:[%s10] sm:$0xff]
  %v105 = vld [vmem:[%s10 + $0x8] sm:$0xff]
  %v106 = vld [vmem:[%s10 + $0x10] sm:$0xff]
  %v107 = vld [vmem:[%s10 + $0x18] sm:$0xff]
  %v108 = vld [vmem:[%s1] sm:$0xff]
  %v109 = vld [vmem:[%s1 + $0x8] sm:$0xff]
  %v110 = vld [vmem:[%s1 + $0x10] sm:$0xff]
  %v111 = vld [vmem:[%s1 + $0x18] sm:$0xff]
  %v112 = vld [vmem:[%s11] sm:$0xff]
  %v113 = vld [vmem:[%s11 + $0x8] sm:$0xff]
  %v114 = vld [vmem:[%s11 + $0x10] sm:$0xff]
  %v115 = vld [vmem:[%s11 + $0x18] sm:$0xff]
  %117 = vset.pattern.permute.xlu0 0
  %118 = vperm.xlu0 %117, %v112
  %v119 = vpop.permute.xlu0 %118
  %122 = vset.pattern.permute.xlu0 0
  %123 = vperm.xlu0 %122, %v113
  %v124 = vpop.permute.xlu0 %123
  %127 = vset.pattern.permute.xlu0 0
  %128 = vperm.xlu0 %127, %v114
  %v129 = vpop.permute.xlu0 %128
  %132 = vset.pattern.permute.xlu0 0
  %133 = vperm.xlu0 %132, %v115
  %v134 = vpop.permute.xlu0 %133
  %vm136 = vcmask 261120
  %v138 = vsel %vm136, %v104, 0
  %v141 = vsel %vm136, %v105, 0
  %v144 = vsel %vm136, %v106, 0
  %v147 = vsel %vm136, %v107, 0
  %149 = vmatprep.subr.mxu0 0.0
  %150 = vmatpush1.msra.mxu0 0.0
  %151 = vmatprep.subr.mxu0 0.0
  %152 = vmatpush1.msra.mxu0 0.0
  %153 = vmatprep.subr.mxu0 0.0
  %154 = vmatpush1.msra.mxu0 0.0
  %155 = vmatprep.subr.mxu0 0.0
  %156 = vmatpush1.msra.mxu0 0.0
  %157 = vmatprep.subr.mxu0 0.0
  %158 = vmatpush1.msra.mxu0 0.0
  %159 = vmatprep.subr.mxu0 0.0
  %160 = vmatpush1.msra.mxu0 0.0
  %161 = vmatprep.subr.mxu0 0.0
  %162 = vmatpush1.msra.mxu0 0.0
  %163 = vmatprep.subr.mxu0 0.0
  %164 = vmatpush1.msra.mxu0 0.0
  %165 = vmatprep.subr.mxu0 0.0
  %166 = vmatpush1.msra.mxu0 0.0
  %167 = vmatprep.subr.mxu0 0.0
  %168 = vmatpush1.msra.mxu0 0.0
  %169 = vmatprep.subr.mxu0 0.0
  %170 = vmatpush1.msra.mxu0 0.0
  %171 = vmatprep.subr.mxu0 0.0
  %172 = vmatpush1.msra.mxu0 0.0
  %173 = vmatprep.subr.mxu0 0.0
  %174 = vmatpush1.msra.mxu0 %v111
  %175 = vmatprep.subr.mxu0 0.0
  %176 = vmatpush1.msra.mxu0 %v110
  %177 = vmatprep.subr.mxu0 0.0
  %178 = vmatpush1.msra.mxu0 %v109
  %179 = vmatprep.subr.mxu0 0.0
  %180 = vmatpush1.msra.mxu0 %v108
  %181 = vmatprep.subr.mxu0 0.0
  %182 = vmatpush2.msra.mxu0 0.0
  %183 = vmatprep.subr.mxu0 0.0
  %184 = vmatpush2.msra.mxu0 0.0
  %185 = vmatprep.subr.mxu0 0.0
  %186 = vmatpush2.msra.mxu0 0.0
  %187 = vmatprep.subr.mxu0 0.0
  %188 = vmatpush2.msra.mxu0 0.0
  %189 = vmatprep.subr.mxu0 0.0
  %190 = vmatpush2.msra.mxu0 0.0
  %191 = vmatprep.subr.mxu0 0.0
  %192 = vmatpush2.msra.mxu0 0.0
  %193 = vmatprep.subr.mxu0 0.0
  %194 = vmatpush2.msra.mxu0 0.0
  %195 = vmatprep.subr.mxu0 0.0
  %196 = vmatpush2.msra.mxu0 0.0
  %197 = vmatprep.subr.mxu0 0.0
  %198 = vmatpush2.msra.mxu0 0.0
  %199 = vmatprep.subr.mxu0 0.0
  %200 = vmatpush2.msra.mxu0 0.0
  %201 = vmatprep.subr.mxu0 0.0
  %202 = vmatpush2.msra.mxu0 0.0
  %203 = vmatprep.subr.mxu0 0.0
  %204 = vmatpush2.msra.mxu0 0.0
  %205 = vmatprep.subr.mxu0 0.0
  %206 = vmatpush2.msra.mxu0 0.0
  %207 = vmatprep.subr.mxu0 0.0
  %208 = vmatpush2.msra.mxu0 0.0
  %209 = vmatprep.subr.mxu0 0.0
  %210 = vmatpush2.msra.mxu0 0.0
  %211 = vmatprep.subr.mxu0 0.0
  %212 = vmatpush2.msra.mxu0 0.0
  %213 = vmatprep.mubr.f32.mxu0 0.0
  %214 = vmatmul.mubr.f32.gmra.mxu0 %v138
  %v215 = vpop.f32.mrf.mxu0
  %v216 = vadd.f32 %v119, %v215
  %v217 = vpop.f32.mrf.mxu0
  %218 = vmatprep.mubr.f32.mxu0 0.0
  %219 = vmatmul.mubr.f32.gmra.mxu0 %v141
  %v220 = vpop.f32.mrf.mxu0
  %v221 = vadd.f32 %v124, %v220
  %v222 = vpop.f32.mrf.mxu0
  %223 = vmatprep.mubr.f32.mxu0 0.0
  %224 = vmatmul.mubr.f32.gmra.mxu0 %v144
  %v225 = vpop.f32.mrf.mxu0
  %v226 = vadd.f32 %v129, %v225
  %v227 = vpop.f32.mrf.mxu0
  %228 = vmatprep.mubr.f32.mxu0 0.0
  %229 = vmatmul.mubr.f32.gmra.mxu0 %v147
  %v230 = vpop.f32.mrf.mxu0
  %v231 = vadd.f32 %v134, %v230
  %v232 = vpop.f32.mrf.mxu0
  %233 = vdwg.mxu0
  %v234 = vlaneseq
  %v235 = vshrl.u32 %v234, 7
  %v236 = vld [vmem:[%s3] sm:$0xf]
  %v238 = vsel %vm136, %v236, 0
  %240 = vmatprep.subr.mxu0 0.0
  %241 = vmatpush1.msra.mxu0 0.0
  %242 = vmatprep.subr.mxu0 0.0
  %243 = vmatpush1.msra.mxu0 0.0
  %244 = vmatprep.subr.mxu0 0.0
  %245 = vmatpush1.msra.mxu0 0.0
  %246 = vmatprep.subr.mxu0 0.0
  %247 = vmatpush1.msra.mxu0 0.0
  %248 = vmatprep.subr.mxu0 0.0
  %249 = vmatpush1.msra.mxu0 0.0
  %250 = vmatprep.subr.mxu0 0.0
  %251 = vmatpush1.msra.mxu0 0.0
  %252 = vmatprep.subr.mxu0 0.0
  %253 = vmatpush1.msra.mxu0 0.0
  %254 = vmatprep.subr.mxu0 0.0
  %255 = vmatpush1.msra.mxu0 0.0
  %256 = vmatprep.subr.mxu0 0.0
  %257 = vmatpush1.msra.mxu0 0.0
  %258 = vmatprep.subr.mxu0 0.0
  %259 = vmatpush1.msra.mxu0 0.0
  %260 = vmatprep.subr.mxu0 0.0
  %261 = vmatpush1.msra.mxu0 0.0
  %262 = vmatprep.subr.mxu0 0.0
  %263 = vmatpush1.msra.mxu0 0.0
  %264 = vmatprep.subr.mxu0 0.0
  %265 = vmatpush1.msra.mxu0 %v62
  %266 = vmatprep.subr.mxu0 0.0
  %267 = vmatpush1.msra.mxu0 %v61
  %268 = vmatprep.subr.mxu0 0.0
  %269 = vmatpush1.msra.mxu0 %v60
  %270 = vmatprep.subr.mxu0 0.0
  %271 = vmatpush1.msra.mxu0 %v59
  %272 = vmatprep.subr.mxu0 0.0
  %273 = vmatpush2.msra.mxu0 0.0
  %274 = vmatprep.subr.mxu0 0.0
  %275 = vmatpush2.msra.mxu0 0.0
  %276 = vmatprep.subr.mxu0 0.0
  %277 = vmatpush2.msra.mxu0 0.0
  %278 = vmatprep.subr.mxu0 0.0
  %279 = vmatpush2.msra.mxu0 0.0
  %280 = vmatprep.subr.mxu0 0.0
  %281 = vmatpush2.msra.mxu0 0.0
  %282 = vmatprep.subr.mxu0 0.0
  %283 = vmatpush2.msra.mxu0 0.0
  %284 = vmatprep.subr.mxu0 0.0
  %285 = vmatpush2.msra.mxu0 0.0
  %286 = vmatprep.subr.mxu0 0.0
  %287 = vmatpush2.msra.mxu0 0.0
  %288 = vmatprep.subr.mxu0 0.0
  %289 = vmatpush2.msra.mxu0 0.0
  %290 = vmatprep.subr.mxu0 0.0
  %291 = vmatpush2.msra.mxu0 0.0
  %292 = vmatprep.subr.mxu0 0.0
  %293 = vmatpush2.msra.mxu0 0.0
  %294 = vmatprep.subr.mxu0 0.0
  %295 = vmatpush2.msra.mxu0 0.0
  %296 = vmatprep.subr.mxu0 0.0
  %297 = vmatpush2.msra.mxu0 0.0
  %298 = vmatprep.subr.mxu0 0.0
  %299 = vmatpush2.msra.mxu0 0.0
  %300 = vmatprep.subr.mxu0 0.0
  %301 = vmatpush2.msra.mxu0 0.0
  %302 = vmatprep.subr.mxu0 0.0
  %303 = vmatpush2.msra.mxu0 0.0
  %304 = vmatprep.mubr.f32.mxu0 0.0
  %305 = vmatmul.mubr.f32.gmra.mxu0 %v238
  %v306 = vpop.f32.mrf.mxu0
  %v307 = vadd.f32 0.0, %v306
  %v308 = vpop.f32.mrf.mxu0
  %309 = vdwg.mxu0
  %311 = vrot.lane.b32.xlu0 %v307, 96
  %v312 = vpop.permute.xlu0 %311
  %v313 = vsel %vm136, %v307, 0
  %v315 = vsel %vm136, %v312, 0
  %317 = vmatprep.subr.mxu0 0.0
  %318 = vmatpush1.xpose.msra.mxu0 0.0
  %319 = vmatprep.subr.mxu0 0.0
  %320 = vmatpush1.xpose.msra.mxu0 0.0
  %321 = vmatprep.subr.mxu0 0.0
  %322 = vmatpush1.xpose.msra.mxu0 0.0
  %323 = vmatprep.subr.mxu0 0.0
  %324 = vmatpush1.xpose.msra.mxu0 0.0
  %325 = vmatprep.subr.mxu0 0.0
  %326 = vmatpush1.xpose.msra.mxu0 0.0
  %327 = vmatprep.subr.mxu0 0.0
  %328 = vmatpush1.xpose.msra.mxu0 0.0
  %329 = vmatprep.subr.mxu0 0.0
  %330 = vmatpush1.xpose.msra.mxu0 0.0
  %331 = vmatprep.subr.mxu0 0.0
  %332 = vmatpush1.xpose.msra.mxu0 0.0
  %333 = vmatprep.subr.mxu0 0.0
  %334 = vmatpush1.xpose.msra.mxu0 0.0
  %335 = vmatprep.subr.mxu0 0.0
  %336 = vmatpush1.xpose.msra.mxu0 0.0
  %337 = vmatprep.subr.mxu0 0.0
  %338 = vmatpush1.xpose.msra.mxu0 0.0
  %339 = vmatprep.subr.mxu0 0.0
  %340 = vmatpush1.xpose.msra.mxu0 0.0
  %341 = vmatprep.subr.mxu0 0.0
  %342 = vmatpush1.xpose.msra.mxu0 0.0
  %343 = vmatprep.subr.mxu0 0.0
  %344 = vmatpush1.xpose.msra.mxu0 0.0
  %345 = vmatprep.subr.mxu0 0.0
  %346 = vmatpush1.xpose.msra.mxu0 0.0
  %347 = vmatprep.subr.mxu0 0.0
  %348 = vmatpush1.xpose.msra.mxu0 %v315
  %349 = vmatprep.subr.mxu0 0.0
  %350 = vmatpush2.xpose.msra.mxu0 0.0
  %351 = vmatprep.subr.mxu0 0.0
  %352 = vmatpush2.xpose.msra.mxu0 0.0
  %353 = vmatprep.subr.mxu0 0.0
  %354 = vmatpush2.xpose.msra.mxu0 0.0
  %355 = vmatprep.subr.mxu0 0.0
  %356 = vmatpush2.xpose.msra.mxu0 0.0
  %357 = vmatprep.subr.mxu0 0.0
  %358 = vmatpush2.xpose.msra.mxu0 0.0
  %359 = vmatprep.subr.mxu0 0.0
  %360 = vmatpush2.xpose.msra.mxu0 0.0
  %361 = vmatprep.subr.mxu0 0.0
  %362 = vmatpush2.xpose.msra.mxu0 0.0
  %363 = vmatprep.subr.mxu0 0.0
  %364 = vmatpush2.xpose.msra.mxu0 0.0
  %365 = vmatprep.subr.mxu0 0.0
  %366 = vmatpush2.xpose.msra.mxu0 0.0
  %367 = vmatprep.subr.mxu0 0.0
  %368 = vmatpush2.xpose.msra.mxu0 0.0
  %369 = vmatprep.subr.mxu0 0.0
  %370 = vmatpush2.xpose.msra.mxu0 0.0
  %371 = vmatprep.subr.mxu0 0.0
  %372 = vmatpush2.xpose.msra.mxu0 0.0
  %373 = vmatprep.subr.mxu0 0.0
  %374 = vmatpush2.xpose.msra.mxu0 0.0
  %375 = vmatprep.subr.mxu0 0.0
  %376 = vmatpush2.xpose.msra.mxu0 0.0
  %377 = vmatprep.subr.mxu0 0.0
  %378 = vmatpush2.xpose.msra.mxu0 0.0
  %379 = vmatprep.subr.mxu0 0.0
  %380 = vmatpush2.xpose.msra.mxu0 0.0
  %381 = vmatprep.mubr.f32.mxu0 0.0
  %382 = vmatmul.mubr.f32.gmra.mxu0 %v313
  %v383 = vpop.f32.mrf.mxu0
  %v384 = vadd.f32 0.0, %v383
  %v385 = vpop.f32.mrf.mxu0
  %386 = vdwg.mxu0
  %vm387 = vcmask 27648
  %v388 = vsel %vm387, %v384, -inf
  %389 = vmax.xlane.f32.xlu0 %v388
  %v390 = vpop.xlane.xlu0 %389
  %v391 = vsub.f32 %v384, %v390
  %v392 = vmul.f32 %v391, 1.442695
  %v393 = vpow.pop %v392
  %v394 = vsel %vm387, %v393, 0.0
  %395 = vadd.xlane.f32.xlu0 %v394
  %v396 = vpop.xlane.xlu0 %395
  %v397 = vrcp.pop %v396
  %v398 = vmul.f32 %v393, %v397
  %399 = vrot.lane.b32.xlu0 %v307, 64
  %v400 = vpop.permute.xlu0 %399
  %vm401 = vcmask 31744
  %v403 = vsel %vm401, %v398, 0
  %vm405 = vcmask 1043456
  %v406 = vsel %vm405, %v400, 0
  %408 = vmatprep.subr.mxu0 0.0
  %409 = vmatpush1.msra.mxu0 0.0
  %410 = vmatprep.subr.mxu0 0.0
  %411 = vmatpush1.msra.mxu0 0.0
  %412 = vmatprep.subr.mxu0 0.0
  %413 = vmatpush1.msra.mxu0 0.0
  %414 = vmatprep.subr.mxu0 0.0
  %415 = vmatpush1.msra.mxu0 0.0
  %416 = vmatprep.subr.mxu0 0.0
  %417 = vmatpush1.msra.mxu0 0.0
  %418 = vmatprep.subr.mxu0 0.0
  %419 = vmatpush1.msra.mxu0 0.0
  %420 = vmatprep.subr.mxu0 0.0
  %421 = vmatpush1.msra.mxu0 0.0
  %422 = vmatprep.subr.mxu0 0.0
  %423 = vmatpush1.msra.mxu0 0.0
  %424 = vmatprep.subr.mxu0 0.0
  %425 = vmatpush1.msra.mxu0 0.0
  %426 = vmatprep.subr.mxu0 0.0
  %427 = vmatpush1.msra.mxu0 0.0
  %428 = vmatprep.subr.mxu0 0.0
  %429 = vmatpush1.msra.mxu0 0.0
  %430 = vmatprep.subr.mxu0 0.0
  %431 = vmatpush1.msra.mxu0 0.0
  %432 = vmatprep.subr.mxu0 0.0
  %433 = vmatpush1.msra.mxu0 0.0
  %434 = vmatprep.subr.mxu0 0.0
  %435 = vmatpush1.msra.mxu0 0.0
  %436 = vmatprep.subr.mxu0 0.0
  %437 = vmatpush1.msra.mxu0 0.0
  %438 = vmatprep.subr.mxu0 0.0
  %439 = vmatpush1.msra.mxu0 %v406
  %440 = vmatprep.subr.mxu0 0.0
  %441 = vmatpush2.msra.mxu0 0.0
  %442 = vmatprep.subr.mxu0 0.0
  %443 = vmatpush2.msra.mxu0 0.0
  %444 = vmatprep.subr.mxu0 0.0
  %445 = vmatpush2.msra.mxu0 0.0
  %446 = vmatprep.subr.mxu0 0.0
  %447 = vmatpush2.msra.mxu0 0.0
  %448 = vmatprep.subr.mxu0 0.0
  %449 = vmatpush2.msra.mxu0 0.0
  %450 = vmatprep.subr.mxu0 0.0
  %451 = vmatpush2.msra.mxu0 0.0
  %452 = vmatprep.subr.mxu0 0.0
  %453 = vmatpush2.msra.mxu0 0.0
  %454 = vmatprep.subr.mxu0 0.0
  %455 = vmatpush2.msra.mxu0 0.0
  %456 = vmatprep.subr.mxu0 0.0
  %457 = vmatpush2.msra.mxu0 0.0
  %458 = vmatprep.subr.mxu0 0.0
  %459 = vmatpush2.msra.mxu0 0.0
  %460 = vmatprep.subr.mxu0 0.0
  %461 = vmatpush2.msra.mxu0 0.0
  %462 = vmatprep.subr.mxu0 0.0
  %463 = vmatpush2.msra.mxu0 0.0
  %464 = vmatprep.subr.mxu0 0.0
  %465 = vmatpush2.msra.mxu0 0.0
  %466 = vmatprep.subr.mxu0 0.0
  %467 = vmatpush2.msra.mxu0 0.0
  %468 = vmatprep.subr.mxu0 0.0
  %469 = vmatpush2.msra.mxu0 0.0
  %470 = vmatprep.subr.mxu0 0.0
  %471 = vmatpush2.msra.mxu0 0.0
  %472 = vmatprep.mubr.f32.mxu0 0.0
  %473 = vmatmul.mubr.f32.gmra.mxu0 %v403
  %v474 = vpop.f32.mrf.mxu0
  %v475 = vadd.f32 0.0, %v474
  %v476 = vpop.f32.mrf.mxu0
  %477 = vdwg.mxu0
  %v479 = vsel %vm136, %v475, 0
  %481 = vmatprep.subr.mxu0 0.0
  %482 = vmatpush1.msra.mxu0 0.0
  %483 = vmatprep.subr.mxu0 0.0
  %484 = vmatpush1.msra.mxu0 0.0
  %485 = vmatprep.subr.mxu0 0.0
  %486 = vmatpush1.msra.mxu0 0.0
  %487 = vmatprep.subr.mxu0 0.0
  %488 = vmatpush1.msra.mxu0 0.0
  %489 = vmatprep.subr.mxu0 0.0
  %490 = vmatpush1.msra.mxu0 0.0
  %491 = vmatprep.subr.mxu0 0.0
  %492 = vmatpush1.msra.mxu0 0.0
  %493 = vmatprep.subr.mxu0 0.0
  %494 = vmatpush1.msra.mxu0 0.0
  %495 = vmatprep.subr.mxu0 0.0
  %496 = vmatpush1.msra.mxu0 0.0
  %497 = vmatprep.subr.mxu0 0.0
  %498 = vmatpush1.msra.mxu0 0.0
  %499 = vmatprep.subr.mxu0 0.0
  %500 = vmatpush1.msra.mxu0 0.0
  %501 = vmatprep.subr.mxu0 0.0
  %502 = vmatpush1.msra.mxu0 0.0
  %503 = vmatprep.subr.mxu0 0.0
  %504 = vmatpush1.msra.mxu0 0.0
  %505 = vmatprep.subr.mxu0 0.0
  %506 = vmatpush1.msra.mxu0 %v66
  %507 = vmatprep.subr.mxu0 0.0
  %508 = vmatpush1.msra.mxu0 %v65
  %509 = vmatprep.subr.mxu0 0.0
  %510 = vmatpush1.msra.mxu0 %v64
  %511 = vmatprep.subr.mxu0 0.0
  %512 = vmatpush1.msra.mxu0 %v63
  %513 = vmatprep.subr.mxu0 0.0
  %514 = vmatpush2.msra.mxu0 0.0
  %515 = vmatprep.subr.mxu0 0.0
  %516 = vmatpush2.msra.mxu0 0.0
  %517 = vmatprep.subr.mxu0 0.0
  %518 = vmatpush2.msra.mxu0 0.0
  %519 = vmatprep.subr.mxu0 0.0
  %520 = vmatpush2.msra.mxu0 0.0
  %521 = vmatprep.subr.mxu0 0.0
  %522 = vmatpush2.msra.mxu0 0.0
  %523 = vmatprep.subr.mxu0 0.0
  %524 = vmatpush2.msra.mxu0 0.0
  %525 = vmatprep.subr.mxu0 0.0
  %526 = vmatpush2.msra.mxu0 0.0
  %527 = vmatprep.subr.mxu0 0.0
  %528 = vmatpush2.msra.mxu0 0.0
  %529 = vmatprep.subr.mxu0 0.0
  %530 = vmatpush2.msra.mxu0 0.0
  %531 = vmatprep.subr.mxu0 0.0
  %532 = vmatpush2.msra.mxu0 0.0
  %533 = vmatprep.subr.mxu0 0.0
  %534 = vmatpush2.msra.mxu0 0.0
  %535 = vmatprep.subr.mxu0 0.0
  %536 = vmatpush2.msra.mxu0 0.0
  %537 = vmatprep.subr.mxu0 0.0
  %538 = vmatpush2.msra.mxu0 0.0
  %539 = vmatprep.subr.mxu0 0.0
  %540 = vmatpush2.msra.mxu0 0.0
  %541 = vmatprep.subr.mxu0 0.0
  %542 = vmatpush2.msra.mxu0 0.0
  %543 = vmatprep.subr.mxu0 0.0
  %544 = vmatpush2.msra.mxu0 0.0
  %545 = vmatprep.mubr.f32.mxu0 0.0
  %546 = vmatmul.mubr.f32.gmra.mxu0 %v479
  %v547 = vpop.f32.mrf.mxu0
  %v548 = vadd.f32 0.0, %v547
  %v549 = vpop.f32.mrf.mxu0
  %550 = vdwg.mxu0
  %v552 = vsel %vm136, %v548, 0
  %554 = vmatprep.subr.mxu0 0.0
  %555 = vmatpush1.msra.mxu0 0.0
  %556 = vmatprep.subr.mxu0 0.0
  %557 = vmatpush1.msra.mxu0 0.0
  %558 = vmatprep.subr.mxu0 0.0
  %559 = vmatpush1.msra.mxu0 0.0
  %560 = vmatprep.subr.mxu0 0.0
  %561 = vmatpush1.msra.mxu0 0.0
  %562 = vmatprep.subr.mxu0 0.0
  %563 = vmatpush1.msra.mxu0 0.0
  %564 = vmatprep.subr.mxu0 0.0
  %565 = vmatpush1.msra.mxu0 0.0
  %566 = vmatprep.subr.mxu0 0.0
  %567 = vmatpush1.msra.mxu0 0.0
  %568 = vmatprep.subr.mxu0 0.0
  %569 = vmatpush1.msra.mxu0 0.0
  %570 = vmatprep.subr.mxu0 0.0
  %571 = vmatpush1.msra.mxu0 0.0
  %572 = vmatprep.subr.mxu0 0.0
  %573 = vmatpush1.msra.mxu0 0.0
  %574 = vmatprep.subr.mxu0 0.0
  %575 = vmatpush1.msra.mxu0 0.0
  %576 = vmatprep.subr.mxu0 0.0
  %577 = vmatpush1.msra.mxu0 0.0
  %578 = vmatprep.subr.mxu0 0.0
  %579 = vmatpush1.msra.mxu0 %v70
  %580 = vmatprep.subr.mxu0 0.0
  %581 = vmatpush1.msra.mxu0 %v69
  %582 = vmatprep.subr.mxu0 0.0
  %583 = vmatpush1.msra.mxu0 %v68
  %584 = vmatprep.subr.mxu0 0.0
  %585 = vmatpush1.msra.mxu0 %v67
  %586 = vmatprep.subr.mxu0 0.0
  %587 = vmatpush2.msra.mxu0 0.0
  %588 = vmatprep.subr.mxu0 0.0
  %589 = vmatpush2.msra.mxu0 0.0
  %590 = vmatprep.subr.mxu0 0.0
  %591 = vmatpush2.msra.mxu0 0.0
  %592 = vmatprep.subr.mxu0 0.0
  %593 = vmatpush2.msra.mxu0 0.0
  %594 = vmatprep.subr.mxu0 0.0
  %595 = vmatpush2.msra.mxu0 0.0
  %596 = vmatprep.subr.mxu0 0.0
  %597 = vmatpush2.msra.mxu0 0.0
  %598 = vmatprep.subr.mxu0 0.0
  %599 = vmatpush2.msra.mxu0 0.0
  %600 = vmatprep.subr.mxu0 0.0
  %601 = vmatpush2.msra.mxu0 0.0
  %602 = vmatprep.subr.mxu0 0.0
  %603 = vmatpush2.msra.mxu0 0.0
  %604 = vmatprep.subr.mxu0 0.0
  %605 = vmatpush2.msra.mxu0 0.0
  %606 = vmatprep.subr.mxu0 0.0
  %607 = vmatpush2.msra.mxu0 0.0
  %608 = vmatprep.subr.mxu0 0.0
  %609 = vmatpush2.msra.mxu0 0.0
  %610 = vmatprep.subr.mxu0 0.0
  %611 = vmatpush2.msra.mxu0 0.0
  %612 = vmatprep.subr.mxu0 0.0
  %613 = vmatpush2.msra.mxu0 0.0
  %614 = vmatprep.subr.mxu0 0.0
  %615 = vmatpush2.msra.mxu0 0.0
  %616 = vmatprep.subr.mxu0 0.0
  %617 = vmatpush2.msra.mxu0 0.0
  %618 = vmatprep.mubr.f32.mxu0 0.0
  %619 = vmatmul.mubr.f32.gmra.mxu0 %v552
  %v620 = vpop.f32.mrf.mxu0
  %v621 = vadd.f32 0.0, %v620
  %v622 = vpop.f32.mrf.mxu0
  %623 = vdwg.mxu0
  %v624 = vadd.f32 %v83, %v621
  %v625 = vrot.slane %v548, 1
  %v626 = vsel %vm136, %v625, 0
  %628 = vmatprep.subr.mxu0 0.0
  %629 = vmatpush1.msra.mxu0 0.0
  %630 = vmatprep.subr.mxu0 0.0
  %631 = vmatpush1.msra.mxu0 0.0
  %632 = vmatprep.subr.mxu0 0.0
  %633 = vmatpush1.msra.mxu0 0.0
  %634 = vmatprep.subr.mxu0 0.0
  %635 = vmatpush1.msra.mxu0 0.0
  %636 = vmatprep.subr.mxu0 0.0
  %637 = vmatpush1.msra.mxu0 0.0
  %638 = vmatprep.subr.mxu0 0.0
  %639 = vmatpush1.msra.mxu0 0.0
  %640 = vmatprep.subr.mxu0 0.0
  %641 = vmatpush1.msra.mxu0 0.0
  %642 = vmatprep.subr.mxu0 0.0
  %643 = vmatpush1.msra.mxu0 0.0
  %644 = vmatprep.subr.mxu0 0.0
  %645 = vmatpush1.msra.mxu0 0.0
  %646 = vmatprep.subr.mxu0 0.0
  %647 = vmatpush1.msra.mxu0 0.0
  %648 = vmatprep.subr.mxu0 0.0
  %649 = vmatpush1.msra.mxu0 0.0
  %650 = vmatprep.subr.mxu0 0.0
  %651 = vmatpush1.msra.mxu0 0.0
  %652 = vmatprep.subr.mxu0 0.0
  %653 = vmatpush1.msra.mxu0 %v74
  %654 = vmatprep.subr.mxu0 0.0
  %655 = vmatpush1.msra.mxu0 %v73
  %656 = vmatprep.subr.mxu0 0.0
  %657 = vmatpush1.msra.mxu0 %v72
  %658 = vmatprep.subr.mxu0 0.0
  %659 = vmatpush1.msra.mxu0 %v71
  %660 = vmatprep.subr.mxu0 0.0
  %661 = vmatpush2.msra.mxu0 0.0
  %662 = vmatprep.subr.mxu0 0.0
  %663 = vmatpush2.msra.mxu0 0.0
  %664 = vmatprep.subr.mxu0 0.0
  %665 = vmatpush2.msra.mxu0 0.0
  %666 = vmatprep.subr.mxu0 0.0
  %667 = vmatpush2.msra.mxu0 0.0
  %668 = vmatprep.subr.mxu0 0.0
  %669 = vmatpush2.msra.mxu0 0.0
  %670 = vmatprep.subr.mxu0 0.0
  %671 = vmatpush2.msra.mxu0 0.0
  %672 = vmatprep.subr.mxu0 0.0
  %673 = vmatpush2.msra.mxu0 0.0
  %674 = vmatprep.subr.mxu0 0.0
  %675 = vmatpush2.msra.mxu0 0.0
  %676 = vmatprep.subr.mxu0 0.0
  %677 = vmatpush2.msra.mxu0 0.0
  %678 = vmatprep.subr.mxu0 0.0
  %679 = vmatpush2.msra.mxu0 0.0
  %680 = vmatprep.subr.mxu0 0.0
  %681 = vmatpush2.msra.mxu0 0.0
  %682 = vmatprep.subr.mxu0 0.0
  %683 = vmatpush2.msra.mxu0 0.0
  %684 = vmatprep.subr.mxu0 0.0
  %685 = vmatpush2.msra.mxu0 0.0
  %686 = vmatprep.subr.mxu0 0.0
  %687 = vmatpush2.msra.mxu0 0.0
  %688 = vmatprep.subr.mxu0 0.0
  %689 = vmatpush2.msra.mxu0 0.0
  %690 = vmatprep.subr.mxu0 0.0
  %691 = vmatpush2.msra.mxu0 0.0
  %692 = vmatprep.mubr.f32.mxu0 0.0
  %693 = vmatmul.mubr.f32.gmra.mxu0 %v626
  %v694 = vpop.f32.mrf.mxu0
  %v695 = vadd.f32 0.0, %v694
  %v696 = vpop.f32.mrf.mxu0
  %697 = vdwg.mxu0
  %v698 = vadd.f32 %v624, %v695
  %v699 = vrot.slane %v548, 2
  %v700 = vsel %vm136, %v699, 0
  %702 = vmatprep.subr.mxu0 0.0
  %703 = vmatpush1.msra.mxu0 0.0
  %704 = vmatprep.subr.mxu0 0.0
  %705 = vmatpush1.msra.mxu0 0.0
  %706 = vmatprep.subr.mxu0 0.0
  %707 = vmatpush1.msra.mxu0 0.0
  %708 = vmatprep.subr.mxu0 0.0
  %709 = vmatpush1.msra.mxu0 0.0
  %710 = vmatprep.subr.mxu0 0.0
  %711 = vmatpush1.msra.mxu0 0.0
  %712 = vmatprep.subr.mxu0 0.0
  %713 = vmatpush1.msra.mxu0 0.0
  %714 = vmatprep.subr.mxu0 0.0
  %715 = vmatpush1.msra.mxu0 0.0
  %716 = vmatprep.subr.mxu0 0.0
  %717 = vmatpush1.msra.mxu0 0.0
  %718 = vmatprep.subr.mxu0 0.0
  %719 = vmatpush1.msra.mxu0 0.0
  %720 = vmatprep.subr.mxu0 0.0
  %721 = vmatpush1.msra.mxu0 0.0
  %722 = vmatprep.subr.mxu0 0.0
  %723 = vmatpush1.msra.mxu0 0.0
  %724 = vmatprep.subr.mxu0 0.0
  %725 = vmatpush1.msra.mxu0 0.0
  %726 = vmatprep.subr.mxu0 0.0
  %727 = vmatpush1.msra.mxu0 %v78
  %728 = vmatprep.subr.mxu0 0.0
  %729 = vmatpush1.msra.mxu0 %v77
  %730 = vmatprep.subr.mxu0 0.0
  %731 = vmatpush1.msra.mxu0 %v76
  %732 = vmatprep.subr.mxu0 0.0
  %733 = vmatpush1.msra.mxu0 %v75
  %734 = vmatprep.subr.mxu0 0.0
  %735 = vmatpush2.msra.mxu0 0.0
  %736 = vmatprep.subr.mxu0 0.0
  %737 = vmatpush2.msra.mxu0 0.0
  %738 = vmatprep.subr.mxu0 0.0
  %739 = vmatpush2.msra.mxu0 0.0
  %740 = vmatprep.subr.mxu0 0.0
  %741 = vmatpush2.msra.mxu0 0.0
  %742 = vmatprep.subr.mxu0 0.0
  %743 = vmatpush2.msra.mxu0 0.0
  %744 = vmatprep.subr.mxu0 0.0
  %745 = vmatpush2.msra.mxu0 0.0
  %746 = vmatprep.subr.mxu0 0.0
  %747 = vmatpush2.msra.mxu0 0.0
  %748 = vmatprep.subr.mxu0 0.0
  %749 = vmatpush2.msra.mxu0 0.0
  %750 = vmatprep.subr.mxu0 0.0
  %751 = vmatpush2.msra.mxu0 0.0
  %752 = vmatprep.subr.mxu0 0.0
  %753 = vmatpush2.msra.mxu0 0.0
  %754 = vmatprep.subr.mxu0 0.0
  %755 = vmatpush2.msra.mxu0 0.0
  %756 = vmatprep.subr.mxu0 0.0
  %757 = vmatpush2.msra.mxu0 0.0
  %758 = vmatprep.subr.mxu0 0.0
  %759 = vmatpush2.msra.mxu0 0.0
  %760 = vmatprep.subr.mxu0 0.0
  %761 = vmatpush2.msra.mxu0 0.0
  %762 = vmatprep.subr.mxu0 0.0
  %763 = vmatpush2.msra.mxu0 0.0
  %764 = vmatprep.subr.mxu0 0.0
  %765 = vmatpush2.msra.mxu0 0.0
  %766 = vmatprep.mubr.f32.mxu0 0.0
  %767 = vmatmul.mubr.f32.gmra.mxu0 %v700
  %v768 = vpop.f32.mrf.mxu0
  %v769 = vadd.f32 0.0, %v768
  %v770 = vpop.f32.mrf.mxu0
  %771 = vdwg.mxu0
  %v772 = vadd.f32 %v698, %v769
  %v773 = vrot.slane %v548, 3
  %v774 = vsel %vm136, %v773, 0
  %776 = vmatprep.subr.mxu0 0.0
  %777 = vmatpush1.msra.mxu0 0.0
  %778 = vmatprep.subr.mxu0 0.0
  %779 = vmatpush1.msra.mxu0 0.0
  %780 = vmatprep.subr.mxu0 0.0
  %781 = vmatpush1.msra.mxu0 0.0
  %782 = vmatprep.subr.mxu0 0.0
  %783 = vmatpush1.msra.mxu0 0.0
  %784 = vmatprep.subr.mxu0 0.0
  %785 = vmatpush1.msra.mxu0 0.0
  %786 = vmatprep.subr.mxu0 0.0
  %787 = vmatpush1.msra.mxu0 0.0
  %788 = vmatprep.subr.mxu0 0.0
  %789 = vmatpush1.msra.mxu0 0.0
  %790 = vmatprep.subr.mxu0 0.0
  %791 = vmatpush1.msra.mxu0 0.0
  %792 = vmatprep.subr.mxu0 0.0
  %793 = vmatpush1.msra.mxu0 0.0
  %794 = vmatprep.subr.mxu0 0.0
  %795 = vmatpush1.msra.mxu0 0.0
  %796 = vmatprep.subr.mxu0 0.0
  %797 = vmatpush1.msra.mxu0 0.0
  %798 = vmatprep.subr.mxu0 0.0
  %799 = vmatpush1.msra.mxu0 0.0
  %800 = vmatprep.subr.mxu0 0.0
  %801 = vmatpush1.msra.mxu0 %v82
  %802 = vmatprep.subr.mxu0 0.0
  %803 = vmatpush1.msra.mxu0 %v81
  %804 = vmatprep.subr.mxu0 0.0
  %805 = vmatpush1.msra.mxu0 %v80
  %806 = vmatprep.subr.mxu0 0.0
  %807 = vmatpush1.msra.mxu0 %v79
  %808 = vmatprep.subr.mxu0 0.0
  %809 = vmatpush2.msra.mxu0 0.0
  %810 = vmatprep.subr.mxu0 0.0
  %811 = vmatpush2.msra.mxu0 0.0
  %812 = vmatprep.subr.mxu0 0.0
  %813 = vmatpush2.msra.mxu0 0.0
  %814 = vmatprep.subr.mxu0 0.0
  %815 = vmatpush2.msra.mxu0 0.0
  %816 = vmatprep.subr.mxu0 0.0
  %817 = vmatpush2.msra.mxu0 0.0
  %818 = vmatprep.subr.mxu0 0.0
  %819 = vmatpush2.msra.mxu0 0.0
  %820 = vmatprep.subr.mxu0 0.0
  %821 = vmatpush2.msra.mxu0 0.0
  %822 = vmatprep.subr.mxu0 0.0
  %823 = vmatpush2.msra.mxu0 0.0
  %824 = vmatprep.subr.mxu0 0.0
  %825 = vmatpush2.msra.mxu0 0.0
  %826 = vmatprep.subr.mxu0 0.0
  %827 = vmatpush2.msra.mxu0 0.0
  %828 = vmatprep.subr.mxu0 0.0
  %829 = vmatpush2.msra.mxu0 0.0
  %830 = vmatprep.subr.mxu0 0.0
  %831 = vmatpush2.msra.mxu0 0.0
  %832 = vmatprep.subr.mxu0 0.0
  %833 = vmatpush2.msra.mxu0 0.0
  %834 = vmatprep.subr.mxu0 0.0
  %835 = vmatpush2.msra.mxu0 0.0
  %836 = vmatprep.subr.mxu0 0.0
  %837 = vmatpush2.msra.mxu0 0.0
  %838 = vmatprep.subr.mxu0 0.0
  %839 = vmatpush2.msra.mxu0 0.0
  %840 = vmatprep.mubr.f32.mxu0 0.0
  %841 = vmatmul.mubr.f32.gmra.mxu0 %v774
  %v842 = vpop.f32.mrf.mxu0
  %v843 = vadd.f32 0.0, %v842
  %v844 = vpop.f32.mrf.mxu0
  %845 = vdwg.mxu0
  %v846 = vadd.f32 %v772, %v843
  %v848 = vlaneseq
  %v849 = vshrl.u32 %v848, 7
  %v850 = vsub.s32 0, %v849
  %v851 = vrot.slane %v846, %v850
  %vm853 = vcmp.eq.s32.totalorder %v235, 0
  %v854 = vsel %vm853, %v851, 0.0
  %vm855 = vcmp.eq.s32.totalorder %v235, 1
  %857 = vrot.lane.b32.xlu0 %v854, 32
  %v858 = vpop.permute.xlu0 %857
  %v860 = vsel %vm855, %v851, %v858
  %vm861 = vcmp.eq.s32.totalorder %v235, 2
  %863 = vrot.lane.b32.xlu0 %v860, 32
  %v864 = vpop.permute.xlu0 %863
  %v866 = vsel %vm861, %v851, %v864
  %vm867 = vcmp.eq.s32.totalorder %v235, 3
  %869 = vrot.lane.b32.xlu0 %v866, 32
  %v870 = vpop.permute.xlu0 %869
  %v872 = vsel %vm867, %v851, %v870
  %874 = vrot.lane.b32.xlu0 %v872, 32
  %v875 = vpop.permute.xlu0 %874
  %vm877 = vcmask 257024
  %v878 = vsel %vm877, %v875, 0.0
  %879 = vadd.xlane.f32.xlu0 %v878
  %v880 = vpop.xlane.xlu0 %879
  %v881 = vrcp.pop 32.0
  %v882 = vmul.f32 %v880, %v881
  %v883 = vsub.f32 %v872, %v882
  %v884 = vmul.f32 %v883, %v883
  %886 = vrot.lane.b32.xlu0 %v884, 32
  %v887 = vpop.permute.xlu0 %886
  %v889 = vsel %vm877, %v887, 0.0
  %890 = vadd.xlane.f32.xlu0 %v889
  %v891 = vpop.xlane.xlu0 %890
  %v892 = vmul.f32 %v891, %v881
  %v893 = vadd.f32 %v892, 1e-05
  %v894 = vrsqrt.pop %v893
  %v895 = vmul.f32 %v883, %v894
  %v897 = vlaneseq
  %v898 = vshrl.u32 %v897, 7
  %v899 = vsub.s32 0, %v898
  %v900 = vrot.slane %v84, %v899
  %901 = vrot.lane.b32.xlu0 %v900, 96
  %v902 = vpop.permute.xlu0 %901
  %v904 = vmul.f32 %v895, %v902
  %v906 = vlaneseq
  %v907 = vshrl.u32 %v906, 7
  %v908 = vsub.s32 0, %v907
  %v909 = vrot.slane %v85, %v908
  %910 = vrot.lane.b32.xlu0 %v909, 96
  %v911 = vpop.permute.xlu0 %910
  %v913 = vadd.f32 %v904, %v911
  %v914 = vld [vmem:[%s2] sm:$0xff]
  %915 = vst.msk [vmem:[#allocation2] sm:$0xff] %vm136, %v914
  %917 = vrot.lane.b32.xlu0 %v913, 32
  %v918 = vpop.permute.xlu0 %917
  %920 = vst.msk [vmem:[#allocation2 + $0x8] sm:$0xf] %vm877, %v918
  %v921 = vld [vmem:[#allocation2] sm:$0xff]
  %v922 = vld [vmem:[#allocation2 + $0x8] sm:$0xf]
  %v923 = vld [vmem:[%s0] sm:$0xff]
  %925 = vset.pattern.permute.xlu0 0
  %926 = vperm.xlu0 %925, %v216
  %v927 = vpop.permute.xlu0 %926
  %930 = vset.pattern.permute.xlu0 0
  %931 = vperm.xlu0 %930, %v221
  %v932 = vpop.permute.xlu0 %931
  %935 = vset.pattern.permute.xlu0 0
  %936 = vperm.xlu0 %935, %v226
  %v937 = vpop.permute.xlu0 %936
  %940 = vset.pattern.permute.xlu0 0
  %941 = vperm.xlu0 %940, %v231
  %v942 = vpop.permute.xlu0 %941
  %v945 = vcombine.high %v923, %v923
  %v947 = vsel %vm401, %v86, 0
  %v950 = vsel %vm401, %v87, 0
  %v953 = vsel %vm401, %v88, 0
  %v956 = vsel %vm401, %v89, 0
  %v958 = vsel %vm405, %v923, 0
  %v960 = vsel %vm405, %v945, 0
  %962 = vmatprep.subr.mxu0 0.0
  %963 = vmatpush1.msra.mxu0 0.0
  %964 = vmatprep.subr.mxu0 0.0
  %965 = vmatpush1.msra.mxu0 0.0
  %966 = vmatprep.subr.mxu0 0.0
  %967 = vmatpush1.msra.mxu0 0.0
  %968 = vmatprep.subr.mxu0 0.0
  %969 = vmatpush1.msra.mxu0 0.0
  %970 = vmatprep.subr.mxu0 0.0
  %971 = vmatpush1.msra.mxu0 0.0
  %972 = vmatprep.subr.mxu0 0.0
  %973 = vmatpush1.msra.mxu0 0.0
  %974 = vmatprep.subr.mxu0 0.0
  %975 = vmatpush1.msra.mxu0 0.0
  %976 = vmatprep.subr.mxu0 0.0
  %977 = vmatpush1.msra.mxu0 0.0
  %978 = vmatprep.subr.mxu0 0.0
  %979 = vmatpush1.msra.mxu0 0.0
  %980 = vmatprep.subr.mxu0 0.0
  %981 = vmatpush1.msra.mxu0 0.0
  %982 = vmatprep.subr.mxu0 0.0
  %983 = vmatpush1.msra.mxu0 0.0
  %984 = vmatprep.subr.mxu0 0.0
  %985 = vmatpush1.msra.mxu0 0.0
  %986 = vmatprep.subr.mxu0 0.0
  %987 = vmatpush1.msra.mxu0 0.0
  %988 = vmatprep.subr.mxu0 0.0
  %989 = vmatpush1.msra.mxu0 0.0
  %990 = vmatprep.subr.mxu0 0.0
  %991 = vmatpush1.msra.mxu0 0.0
  %992 = vmatprep.subr.mxu0 %v960
  %993 = vmatpush1.msra.mxu0 %v958
  %994 = vmatprep.subr.mxu0 0.0
  %995 = vmatpush2.msra.mxu0 0.0
  %996 = vmatprep.subr.mxu0 0.0
  %997 = vmatpush2.msra.mxu0 0.0
  %998 = vmatprep.subr.mxu0 0.0
  %999 = vmatpush2.msra.mxu0 0.0
  %1000 = vmatprep.subr.mxu0 0.0
  %1001 = vmatpush2.msra.mxu0 0.0
  %1002 = vmatprep.subr.mxu0 0.0
  %1003 = vmatpush2.msra.mxu0 0.0
  %1004 = vmatprep.subr.mxu0 0.0
  %1005 = vmatpush2.msra.mxu0 0.0
  %1006 = vmatprep.subr.mxu0 0.0
  %1007 = vmatpush2.msra.mxu0 0.0
  %1008 = vmatprep.subr.mxu0 0.0
  %1009 = vmatpush2.msra.mxu0 0.0
  %1010 = vmatprep.subr.mxu0 0.0
  %1011 = vmatpush2.msra.mxu0 0.0
  %1012 = vmatprep.subr.mxu0 0.0
  %1013 = vmatpush2.msra.mxu0 0.0
  %1014 = vmatprep.subr.mxu0 0.0
  %1015 = vmatpush2.msra.mxu0 0.0
  %1016 = vmatprep.subr.mxu0 0.0
  %1017 = vmatpush2.msra.mxu0 0.0
  %1018 = vmatprep.subr.mxu0 0.0
  %1019 = vmatpush2.msra.mxu0 0.0
  %1020 = vmatprep.subr.mxu0 0.0
  %1021 = vmatpush2.msra.mxu0 0.0
  %1022 = vmatprep.subr.mxu0 0.0
  %1023 = vmatpush2.msra.mxu0 0.0
  %1024 = vmatprep.subr.mxu0 0.0
  %1025 = vmatpush2.msra.mxu0 0.0
  %1026 = vmatprep.mubr.f32.mxu0 0.0
  %1027 = vmatmul.mubr.f32.gmra.mxu0 %v947
  %v1028 = vpop.f32.mrf.mxu0
  %v1029 = vadd.f32 %v927, %v1028
  %v1030 = vpop.f32.mrf.mxu0
  %v1031 = vadd.f32 %v927, %v1030
  %1032 = vmatprep.mubr.f32.mxu0 0.0
  %1033 = vmatmul.mubr.f32.gmra.mxu0 %v950
  %v1034 = vpop.f32.mrf.mxu0
  %v1035 = vadd.f32 %v932, %v1034
  %v1036 = vpop.f32.mrf.mxu0
  %v1037 = vadd.f32 %v932, %v1036
  %1038 = vmatprep.mubr.f32.mxu0 0.0
  %1039 = vmatmul.mubr.f32.gmra.mxu0 %v953
  %v1040 = vpop.f32.mrf.mxu0
  %v1041 = vadd.f32 %v937, %v1040
  %v1042 = vpop.f32.mrf.mxu0
  %v1043 = vadd.f32 %v937, %v1042
  %1044 = vmatprep.mubr.f32.mxu0 0.0
  %1045 = vmatmul.mubr.f32.gmra.mxu0 %v956
  %v1046 = vpop.f32.mrf.mxu0
  %v1047 = vadd.f32 %v942, %v1046
  %v1048 = vpop.f32.mrf.mxu0
  %v1049 = vadd.f32 %v942, %v1048
  %1050 = vdwg.mxu0
  %v1052 = vsel %vm136, %v90, 0
  %v1055 = vsel %vm136, %v91, 0
  %v1058 = vsel %vm136, %v92, 0
  %v1061 = vsel %vm136, %v93, 0
  %1063 = vmatprep.subr.mxu0 0.0
  %1064 = vmatpush1.msra.mxu0 0.0
  %1065 = vmatprep.subr.mxu0 0.0
  %1066 = vmatpush1.msra.mxu0 0.0
  %1067 = vmatprep.subr.mxu0 0.0
  %1068 = vmatpush1.msra.mxu0 0.0
  %1069 = vmatprep.subr.mxu0 0.0
  %1070 = vmatpush1.msra.mxu0 0.0
  %1071 = vmatprep.subr.mxu0 0.0
  %1072 = vmatpush1.msra.mxu0 0.0
  %1073 = vmatprep.subr.mxu0 0.0
  %1074 = vmatpush1.msra.mxu0 0.0
  %1075 = vmatprep.subr.mxu0 0.0
  %1076 = vmatpush1.msra.mxu0 0.0
  %1077 = vmatprep.subr.mxu0 0.0
  %1078 = vmatpush1.msra.mxu0 0.0
  %1079 = vmatprep.subr.mxu0 0.0
  %1080 = vmatpush1.msra.mxu0 0.0
  %1081 = vmatprep.subr.mxu0 0.0
  %1082 = vmatpush1.msra.mxu0 0.0
  %1083 = vmatprep.subr.mxu0 0.0
  %1084 = vmatpush1.msra.mxu0 0.0
  %1085 = vmatprep.subr.mxu0 0.0
  %1086 = vmatpush1.msra.mxu0 0.0
  %1087 = vmatprep.subr.mxu0 %v1049
  %1088 = vmatpush1.msra.mxu0 %v1047
  %1089 = vmatprep.subr.mxu0 %v1043
  %1090 = vmatpush1.msra.mxu0 %v1041
  %1091 = vmatprep.subr.mxu0 %v1037
  %1092 = vmatpush1.msra.mxu0 %v1035
  %1093 = vmatprep.subr.mxu0 %v1031
  %1094 = vmatpush1.msra.mxu0 %v1029
  %1095 = vmatprep.subr.mxu0 0.0
  %1096 = vmatpush2.msra.mxu0 0.0
  %1097 = vmatprep.subr.mxu0 0.0
  %1098 = vmatpush2.msra.mxu0 0.0
  %1099 = vmatprep.subr.mxu0 0.0
  %1100 = vmatpush2.msra.mxu0 0.0
  %1101 = vmatprep.subr.mxu0 0.0
  %1102 = vmatpush2.msra.mxu0 0.0
  %1103 = vmatprep.subr.mxu0 0.0
  %1104 = vmatpush2.msra.mxu0 0.0
  %1105 = vmatprep.subr.mxu0 0.0
  %1106 = vmatpush2.msra.mxu0 0.0
  %1107 = vmatprep.subr.mxu0 0.0
  %1108 = vmatpush2.msra.mxu0 0.0
  %1109 = vmatprep.subr.mxu0 0.0
  %1110 = vmatpush2.msra.mxu0 0.0
  %1111 = vmatprep.subr.mxu0 0.0
  %1112 = vmatpush2.msra.mxu0 0.0
  %1113 = vmatprep.subr.mxu0 0.0
  %1114 = vmatpush2.msra.mxu0 0.0
  %1115 = vmatprep.subr.mxu0 0.0
  %1116 = vmatpush2.msra.mxu0 0.0
  %1117 = vmatprep.subr.mxu0 0.0
  %1118 = vmatpush2.msra.mxu0 0.0
  %1119 = vmatprep.subr.mxu0 0.0
  %1120 = vmatpush2.msra.mxu0 0.0
  %1121 = vmatprep.subr.mxu0 0.0
  %1122 = vmatpush2.msra.mxu0 0.0
  %1123 = vmatprep.subr.mxu0 0.0
  %1124 = vmatpush2.msra.mxu0 0.0
  %1125 = vmatprep.subr.mxu0 0.0
  %1126 = vmatpush2.msra.mxu0 0.0
  %1127 = vmatprep.mubr.f32.mxu0 0.0
  %1128 = vmatmul.mubr.f32.gmra.mxu0 %v1052
  %v1129 = vpop.f32.mrf.mxu0
  %v1130 = vadd.f32 0.0, %v1129
  %v1131 = vpop.f32.mrf.mxu0
  %v1132 = vadd.f32 0.0, %v1131
  %1133 = vmatprep.mubr.f32.mxu0 0.0
  %1134 = vmatmul.mubr.f32.gmra.mxu0 %v1055
  %v1135 = vpop.f32.mrf.mxu0
  %v1136 = vadd.f32 0.0, %v1135
  %v1137 = vpop.f32.mrf.mxu0
  %v1138 = vadd.f32 0.0, %v1137
  %1139 = vmatprep.mubr.f32.mxu0 0.0
  %1140 = vmatmul.mubr.f32.gmra.mxu0 %v1058
  %v1141 = vpop.f32.mrf.mxu0
  %v1142 = vadd.f32 0.0, %v1141
  %v1143 = vpop.f32.mrf.mxu0
  %v1144 = vadd.f32 0.0, %v1143
  %1145 = vmatprep.mubr.f32.mxu0 0.0
  %1146 = vmatmul.mubr.f32.gmra.mxu0 %v1061
  %v1147 = vpop.f32.mrf.mxu0
  %v1148 = vadd.f32 0.0, %v1147
  %v1149 = vpop.f32.mrf.mxu0
  %v1150 = vadd.f32 0.0, %v1149
  %1151 = vdwg.mxu0
  %v1153 = vsel %vm136, %v921, 0
  %v1156 = vsel %vm136, %v922, 0
  %1158 = vmatprep.subr.mxu0 0.0
  %1159 = vmatpush1.msra.mxu0 0.0
  %1160 = vmatprep.subr.mxu0 0.0
  %1161 = vmatpush1.msra.mxu0 0.0
  %1162 = vmatprep.subr.mxu0 0.0
  %1163 = vmatpush1.msra.mxu0 0.0
  %1164 = vmatprep.subr.mxu0 0.0
  %1165 = vmatpush1.msra.mxu0 0.0
  %1166 = vmatprep.subr.mxu0 0.0
  %1167 = vmatpush1.msra.mxu0 0.0
  %1168 = vmatprep.subr.mxu0 0.0
  %1169 = vmatpush1.msra.mxu0 0.0
  %1170 = vmatprep.subr.mxu0 0.0
  %1171 = vmatpush1.msra.mxu0 0.0
  %1172 = vmatprep.subr.mxu0 0.0
  %1173 = vmatpush1.msra.mxu0 0.0
  %1174 = vmatprep.subr.mxu0 0.0
  %1175 = vmatpush1.msra.mxu0 0.0
  %1176 = vmatprep.subr.mxu0 0.0
  %1177 = vmatpush1.msra.mxu0 0.0
  %1178 = vmatprep.subr.mxu0 0.0
  %1179 = vmatpush1.msra.mxu0 0.0
  %1180 = vmatprep.subr.mxu0 0.0
  %1181 = vmatpush1.msra.mxu0 0.0
  %1182 = vmatprep.subr.mxu0 0.0
  %1183 = vmatpush1.msra.mxu0 %v97
  %1184 = vmatprep.subr.mxu0 0.0
  %1185 = vmatpush1.msra.mxu0 %v96
  %1186 = vmatprep.subr.mxu0 0.0
  %1187 = vmatpush1.msra.mxu0 %v95
  %1188 = vmatprep.subr.mxu0 0.0
  %1189 = vmatpush1.msra.mxu0 %v94
  %1190 = vmatprep.subr.mxu0 0.0
  %1191 = vmatpush2.msra.mxu0 0.0
  %1192 = vmatprep.subr.mxu0 0.0
  %1193 = vmatpush2.msra.mxu0 0.0
  %1194 = vmatprep.subr.mxu0 0.0
  %1195 = vmatpush2.msra.mxu0 0.0
  %1196 = vmatprep.subr.mxu0 0.0
  %1197 = vmatpush2.msra.mxu0 0.0
  %1198 = vmatprep.subr.mxu0 0.0
  %1199 = vmatpush2.msra.mxu0 0.0
  %1200 = vmatprep.subr.mxu0 0.0
  %1201 = vmatpush2.msra.mxu0 0.0
  %1202 = vmatprep.subr.mxu0 0.0
  %1203 = vmatpush2.msra.mxu0 0.0
  %1204 = vmatprep.subr.mxu0 0.0
  %1205 = vmatpush2.msra.mxu0 0.0
  %1206 = vmatprep.subr.mxu0 0.0
  %1207 = vmatpush2.msra.mxu0 0.0
  %1208 = vmatprep.subr.mxu0 0.0
  %1209 = vmatpush2.msra.mxu0 0.0
  %1210 = vmatprep.subr.mxu0 0.0
  %1211 = vmatpush2.msra.mxu0 0.0
  %1212 = vmatprep.subr.mxu0 0.0
  %1213 = vmatpush2.msra.mxu0 0.0
  %1214 = vmatprep.subr.mxu0 0.0
  %1215 = vmatpush2.msra.mxu0 0.0
  %1216 = vmatprep.subr.mxu0 0.0
  %1217 = vmatpush2.msra.mxu0 0.0
  %1218 = vmatprep.subr.mxu0 0.0
  %1219 = vmatpush2.msra.mxu0 0.0
  %1220 = vmatprep.subr.mxu0 0.0
  %1221 = vmatpush2.msra.mxu0 0.0
  %1222 = vmatprep.mubr.f32.mxu0 0.0
  %1223 = vmatmul.mubr.f32.gmra.mxu0 %v1153
  %v1224 = vpop.f32.mrf.mxu0
  %v1225 = vadd.f32 0.0, %v1224
  %v1226 = vpop.f32.mrf.mxu0
  %1227 = vmatprep.mubr.f32.mxu0 0.0
  %1228 = vmatmul.mubr.f32.gmra.mxu0 %v1156
  %v1229 = vpop.f32.mrf.mxu0
  %v1230 = vadd.f32 0.0, %v1229
  %v1231 = vpop.f32.mrf.mxu0
  %1232 = vdwg.mxu0
  %v1234 = vsel %vm136, %v1225, 0
  %v1237 = vsel %vm136, %v1230, 0
  %1239 = vmatprep.subr.mxu0 0.0
  %1240 = vmatpush1.msra.mxu0 0.0
  %1241 = vmatprep.subr.mxu0 0.0
  %1242 = vmatpush1.msra.mxu0 0.0
  %1243 = vmatprep.subr.mxu0 0.0
  %1244 = vmatpush1.msra.mxu0 0.0
  %1245 = vmatprep.subr.mxu0 0.0
  %1246 = vmatpush1.msra.mxu0 0.0
  %1247 = vmatprep.subr.mxu0 0.0
  %1248 = vmatpush1.msra.mxu0 0.0
  %1249 = vmatprep.subr.mxu0 0.0
  %1250 = vmatpush1.msra.mxu0 0.0
  %1251 = vmatprep.subr.mxu0 0.0
  %1252 = vmatpush1.msra.mxu0 0.0
  %1253 = vmatprep.subr.mxu0 0.0
  %1254 = vmatpush1.msra.mxu0 0.0
  %1255 = vmatprep.subr.mxu0 0.0
  %1256 = vmatpush1.msra.mxu0 0.0
  %1257 = vmatprep.subr.mxu0 0.0
  %1258 = vmatpush1.msra.mxu0 0.0
  %1259 = vmatprep.subr.mxu0 0.0
  %1260 = vmatpush1.msra.mxu0 0.0
  %1261 = vmatprep.subr.mxu0 0.0
  %1262 = vmatpush1.msra.mxu0 0.0
  %1263 = vmatprep.subr.mxu0 %v1150
  %1264 = vmatpush1.msra.mxu0 %v1148
  %1265 = vmatprep.subr.mxu0 %v1144
  %1266 = vmatpush1.msra.mxu0 %v1142
  %1267 = vmatprep.subr.mxu0 %v1138
  %1268 = vmatpush1.msra.mxu0 %v1136
  %1269 = vmatprep.subr.mxu0 %v1132
  %1270 = vmatpush1.msra.mxu0 %v1130
  %1271 = vmatprep.subr.mxu0 0.0
  %1272 = vmatpush2.msra.mxu0 0.0
  %1273 = vmatprep.subr.mxu0 0.0
  %1274 = vmatpush2.msra.mxu0 0.0
  %1275 = vmatprep.subr.mxu0 0.0
  %1276 = vmatpush2.msra.mxu0 0.0
  %1277 = vmatprep.subr.mxu0 0.0
  %1278 = vmatpush2.msra.mxu0 0.0
  %1279 = vmatprep.subr.mxu0 0.0
  %1280 = vmatpush2.msra.mxu0 0.0
  %1281 = vmatprep.subr.mxu0 0.0
  %1282 = vmatpush2.msra.mxu0 0.0
  %1283 = vmatprep.subr.mxu0 0.0
  %1284 = vmatpush2.msra.mxu0 0.0
  %1285 = vmatprep.subr.mxu0 0.0
  %1286 = vmatpush2.msra.mxu0 0.0
  %1287 = vmatprep.subr.mxu0 0.0
  %1288 = vmatpush2.msra.mxu0 0.0
  %1289 = vmatprep.subr.mxu0 0.0
  %1290 = vmatpush2.msra.mxu0 0.0
  %1291 = vmatprep.subr.mxu0 0.0
  %1292 = vmatpush2.msra.mxu0 0.0
  %1293 = vmatprep.subr.mxu0 0.0
  %1294 = vmatpush2.msra.mxu0 0.0
  %1295 = vmatprep.subr.mxu0 0.0
  %1296 = vmatpush2.msra.mxu0 0.0
  %1297 = vmatprep.subr.mxu0 0.0
  %1298 = vmatpush2.msra.mxu0 0.0
  %1299 = vmatprep.subr.mxu0 0.0
  %1300 = vmatpush2.msra.mxu0 0.0
  %1301 = vmatprep.subr.mxu0 0.0
  %1302 = vmatpush2.msra.mxu0 0.0
  %1303 = vmatprep.mubr.f32.mxu0 0.0
  %1304 = vmatmul.mubr.f32.gmra.mxu0 %v1234
  %v1305 = vpop.f32.mrf.mxu0
  %v1306 = vadd.f32 0.0, %v1305
  %v1307 = vpop.f32.mrf.mxu0
  %v1308 = vadd.f32 0.0, %v1307
  %1309 = vmatprep.mubr.f32.mxu0 0.0
  %1310 = vmatmul.mubr.f32.gmra.mxu0 %v1237
  %v1311 = vpop.f32.mrf.mxu0
  %v1312 = vadd.f32 0.0, %v1311
  %v1313 = vpop.f32.mrf.mxu0
  %v1314 = vadd.f32 0.0, %v1313
  %1315 = vdwg.mxu0
  %v1316 = vsel %vm405, %v1312, -inf
  %v1317 = vmax.f32 %v1306, %v1316
  %v1318 = vrot.slane %v1317, 4
  %v1319 = vmax.f32 %v1317, %v1318
  %v1320 = vrot.slane %v1319, 2
  %v1321 = vmax.f32 %v1319, %v1320
  %v1322 = vrot.slane %v1321, 1
  %v1323 = vmax.f32 %v1321, %v1322
  %v1324 = vsel %vm405, %v1314, -inf
  %v1325 = vmax.f32 %v1308, %v1324
  %v1326 = vrot.slane %v1325, 4
  %v1327 = vmax.f32 %v1325, %v1326
  %v1328 = vrot.slane %v1327, 2
  %v1329 = vmax.f32 %v1327, %v1328
  %v1330 = vrot.slane %v1329, 1
  %v1331 = vmax.f32 %v1329, %v1330
  %v1332 = vsub.f32 %v1306, %v1323
  %v1333 = vsub.f32 %v1308, %v1331
  %v1334 = vsub.f32 %v1312, %v1323
  %v1335 = vsub.f32 %v1314, %v1331
  %v1336 = vmul.f32 %v1332, 1.442695
  %v1337 = vpow.pop %v1336
  %v1338 = vmul.f32 %v1333, 1.442695
  %v1339 = vpow.pop %v1338
  %v1340 = vmul.f32 %v1334, 1.442695
  %v1341 = vpow.pop %v1340
  %v1342 = vmul.f32 %v1335, 1.442695
  %v1343 = vpow.pop %v1342
  %v1344 = vsel %vm405, %v1341, 0.0
  %v1345 = vadd.f32 %v1337, %v1344
  %v1346 = vrot.slane %v1345, 4
  %v1347 = vadd.f32 %v1345, %v1346
  %v1348 = vrot.slane %v1347, 2
  %v1349 = vadd.f32 %v1347, %v1348
  %v1350 = vrot.slane %v1349, 1
  %v1351 = vadd.f32 %v1349, %v1350
  %v1352 = vsel %vm405, %v1343, 0.0
  %v1353 = vadd.f32 %v1339, %v1352
  %v1354 = vrot.slane %v1353, 4
  %v1355 = vadd.f32 %v1353, %v1354
  %v1356 = vrot.slane %v1355, 2
  %v1357 = vadd.f32 %v1355, %v1356
  %v1358 = vrot.slane %v1357, 1
  %v1359 = vadd.f32 %v1357, %v1358
  %v1360 = vrcp.pop %v1351
  %v1361 = vrcp.pop %v1359
  %1362 = vrot.lane.b32.xlu0 %v1225, 96
  %v1363 = vpop.permute.xlu0 %1362
  %1364 = vrot.lane.b32.xlu0 %v1230, 96
  %v1365 = vpop.permute.xlu0 %1364
  %1368 = vxpose.xlu0.b32.start [1/16] %v1363, 128
  %1369 = vxpose.xlu0.b32.cont [2/16] %v1365, 128
  %1370 = vxpose.xlu0.b32.cont [3/16] 0.0, 128
  %1371 = vxpose.xlu0.b32.cont [4/16] 0.0, 128
  %1372 = vxpose.xlu0.b32.cont [5/16] 0.0, 128
  %1373 = vxpose.xlu0.b32.cont [6/16] 0.0, 128
  %1374 = vxpose.xlu0.b32.cont [7/16] 0.0, 128
  %1375 = vxpose.xlu0.b32.cont [8/16] 0.0, 128
  %1376 = vxpose.xlu0.b32.cont [9/16] 0.0, 128
  %1377 = vxpose.xlu0.b32.cont [10/16] 0.0, 128
  %1378 = vxpose.xlu0.b32.cont [11/16] 0.0, 128
  %1379 = vxpose.xlu0.b32.cont [12/16] 0.0, 128
  %1380 = vxpose.xlu0.b32.cont [13/16] 0.0, 128
  %1381 = vxpose.xlu0.b32.cont [14/16] 0.0, 128
  %1382 = vxpose.xlu0.b32.cont [15/16] 0.0, 128
  %1383 = vxpose.xlu0.b32.end [16/16] 0.0, 128
  %v1384 = vpop.trf.xlu0
  %v1385 = vpop.trf.xlu0
  %v1386 = vpop.trf.xlu0
  %v1387 = vpop.trf.xlu0
  %v1388 = vpop.trf.xlu0
  %v1389 = vpop.trf.xlu0
  %v1390 = vpop.trf.xlu0
  %v1391 = vpop.trf.xlu0
  %v1392 = vpop.trf.xlu0
  %v1393 = vpop.trf.xlu0
  %v1394 = vpop.trf.xlu0
  %v1395 = vpop.trf.xlu0
  %v1396 = vpop.trf.xlu0
  %v1397 = vpop.trf.xlu0
  %v1398 = vpop.trf.xlu0
  %v1399 = vpop.trf.xlu0
  %vm1400 = vcmask 97280
  %v1402 = vsel %vm1400, %v1384, 0
  %v1405 = vsel %vm1400, %v1385, 0
  %v1408 = vsel %vm1400, %v1386, 0
  %v1411 = vsel %vm1400, %v1387, 0
  %v1414 = vsel %vm405, %v1341, 0
  %v1417 = vsel %vm405, %v1343, 0
  %1419 = vmatprep.subr.mxu0 0.0
  %1420 = vmatpush1.msra.mxu0 0.0
  %1421 = vmatprep.subr.mxu0 0.0
  %1422 = vmatpush1.msra.mxu0 0.0
  %1423 = vmatprep.subr.mxu0 0.0
  %1424 = vmatpush1.msra.mxu0 0.0
  %1425 = vmatprep.subr.mxu0 0.0
  %1426 = vmatpush1.msra.mxu0 0.0
  %1427 = vmatprep.subr.mxu0 0.0
  %1428 = vmatpush1.msra.mxu0 0.0
  %1429 = vmatprep.subr.mxu0 0.0
  %1430 = vmatpush1.msra.mxu0 0.0
  %1431 = vmatprep.subr.mxu0 0.0
  %1432 = vmatpush1.msra.mxu0 0.0
  %1433 = vmatprep.subr.mxu0 0.0
  %1434 = vmatpush1.msra.mxu0 0.0
  %1435 = vmatprep.subr.mxu0 0.0
  %1436 = vmatpush1.msra.mxu0 0.0
  %1437 = vmatprep.subr.mxu0 0.0
  %1438 = vmatpush1.msra.mxu0 0.0
  %1439 = vmatprep.subr.mxu0 0.0
  %1440 = vmatpush1.msra.mxu0 0.0
  %1441 = vmatprep.subr.mxu0 0.0
  %1442 = vmatpush1.msra.mxu0 0.0
  %1443 = vmatprep.subr.mxu0 0.0
  %1444 = vmatpush1.msra.mxu0 0.0
  %1445 = vmatprep.subr.mxu0 0.0
  %1446 = vmatpush1.msra.mxu0 0.0
  %1447 = vmatprep.subr.mxu0 %v1417
  %1448 = vmatpush1.msra.mxu0 %v1414
  %1449 = vmatprep.subr.mxu0 %v1339
  %1450 = vmatpush1.msra.mxu0 %v1337
  %1451 = vmatprep.subr.mxu0 0.0
  %1452 = vmatpush2.msra.mxu0 0.0
  %1453 = vmatprep.subr.mxu0 0.0
  %1454 = vmatpush2.msra.mxu0 0.0
  %1455 = vmatprep.subr.mxu0 0.0
  %1456 = vmatpush2.msra.mxu0 0.0
  %1457 = vmatprep.subr.mxu0 0.0
  %1458 = vmatpush2.msra.mxu0 0.0
  %1459 = vmatprep.subr.mxu0 0.0
  %1460 = vmatpush2.msra.mxu0 0.0
  %1461 = vmatprep.subr.mxu0 0.0
  %1462 = vmatpush2.msra.mxu0 0.0
  %1463 = vmatprep.subr.mxu0 0.0
  %1464 = vmatpush2.msra.mxu0 0.0
  %1465 = vmatprep.subr.mxu0 0.0
  %1466 = vmatpush2.msra.mxu0 0.0
  %1467 = vmatprep.subr.mxu0 0.0
  %1468 = vmatpush2.msra.mxu0 0.0
  %1469 = vmatprep.subr.mxu0 0.0
  %1470 = vmatpush2.msra.mxu0 0.0
  %1471 = vmatprep.subr.mxu0 0.0
  %1472 = vmatpush2.msra.mxu0 0.0
  %1473 = vmatprep.subr.mxu0 0.0
  %1474 = vmatpush2.msra.mxu0 0.0
  %1475 = vmatprep.subr.mxu0 0.0
  %1476 = vmatpush2.msra.mxu0 0.0
  %1477 = vmatprep.subr.mxu0 0.0
  %1478 = vmatpush2.msra.mxu0 0.0
  %1479 = vmatprep.subr.mxu0 0.0
  %1480 = vmatpush2.msra.mxu0 0.0
  %1481 = vmatprep.subr.mxu0 0.0
  %1482 = vmatpush2.msra.mxu0 0.0
  %1483 = vmatprep.mubr.f32.mxu0 0.0
  %1484 = vmatmul.mubr.f32.gmra.mxu0 %v1402
  %v1485 = vpop.f32.mrf.mxu0
  %v1486 = vadd.f32 0.0, %v1485
  %v1487 = vpop.f32.mrf.mxu0
  %v1488 = vadd.f32 0.0, %v1487
  %1489 = vmatprep.mubr.f32.mxu0 0.0
  %1490 = vmatmul.mubr.f32.gmra.mxu0 %v1405
  %v1491 = vpop.f32.mrf.mxu0
  %v1492 = vadd.f32 0.0, %v1491
  %v1493 = vpop.f32.mrf.mxu0
  %v1494 = vadd.f32 0.0, %v1493
  %1495 = vmatprep.mubr.f32.mxu0 0.0
  %1496 = vmatmul.mubr.f32.gmra.mxu0 %v1408
  %v1497 = vpop.f32.mrf.mxu0
  %v1498 = vadd.f32 0.0, %v1497
  %v1499 = vpop.f32.mrf.mxu0
  %v1500 = vadd.f32 0.0, %v1499
  %1501 = vmatprep.mubr.f32.mxu0 0.0
  %1502 = vmatmul.mubr.f32.gmra.mxu0 %v1411
  %v1503 = vpop.f32.mrf.mxu0
  %v1504 = vadd.f32 0.0, %v1503
  %v1505 = vpop.f32.mrf.mxu0
  %v1506 = vadd.f32 0.0, %v1505
  %1507 = vdwg.mxu0
  %v1508 = vmul.f32 %v1486, %v1360
  %v1509 = vmul.f32 %v1488, %v1361
  %v1510 = vmul.f32 %v1492, %v1360
  %v1511 = vmul.f32 %v1494, %v1361
  %v1512 = vmul.f32 %v1498, %v1360
  %v1513 = vmul.f32 %v1500, %v1361
  %v1514 = vmul.f32 %v1504, %v1360
  %v1515 = vmul.f32 %v1506, %v1361
  %v1517 = vsel %vm136, %v98, 0
  %v1520 = vsel %vm136, %v99, 0
  %v1523 = vsel %vm136, %v100, 0
  %v1526 = vsel %vm136, %v101, 0
  %1528 = vmatprep.subr.mxu0 0.0
  %1529 = vmatpush1.msra.mxu0 0.0
  %1530 = vmatprep.subr.mxu0 0.0
  %1531 = vmatpush1.msra.mxu0 0.0
  %1532 = vmatprep.subr.mxu0 0.0
  %1533 = vmatpush1.msra.mxu0 0.0
  %1534 = vmatprep.subr.mxu0 0.0
  %1535 = vmatpush1.msra.mxu0 0.0
  %1536 = vmatprep.subr.mxu0 0.0
  %1537 = vmatpush1.msra.mxu0 0.0
  %1538 = vmatprep.subr.mxu0 0.0
  %1539 = vmatpush1.msra.mxu0 0.0
  %1540 = vmatprep.subr.mxu0 0.0
  %1541 = vmatpush1.msra.mxu0 0.0
  %1542 = vmatprep.subr.mxu0 0.0
  %1543 = vmatpush1.msra.mxu0 0.0
  %1544 = vmatprep.subr.mxu0 0.0
  %1545 = vmatpush1.msra.mxu0 0.0
  %1546 = vmatprep.subr.mxu0 0.0
  %1547 = vmatpush1.msra.mxu0 0.0
  %1548 = vmatprep.subr.mxu0 0.0
  %1549 = vmatpush1.msra.mxu0 0.0
  %1550 = vmatprep.subr.mxu0 0.0
  %1551 = vmatpush1.msra.mxu0 0.0
  %1552 = vmatprep.subr.mxu0 %v1515
  %1553 = vmatpush1.msra.mxu0 %v1514
  %1554 = vmatprep.subr.mxu0 %v1513
  %1555 = vmatpush1.msra.mxu0 %v1512
  %1556 = vmatprep.subr.mxu0 %v1511
  %1557 = vmatpush1.msra.mxu0 %v1510
  %1558 = vmatprep.subr.mxu0 %v1509
  %1559 = vmatpush1.msra.mxu0 %v1508
  %1560 = vmatprep.subr.mxu0 0.0
  %1561 = vmatpush2.msra.mxu0 0.0
  %1562 = vmatprep.subr.mxu0 0.0
  %1563 = vmatpush2.msra.mxu0 0.0
  %1564 = vmatprep.subr.mxu0 0.0
  %1565 = vmatpush2.msra.mxu0 0.0
  %1566 = vmatprep.subr.mxu0 0.0
  %1567 = vmatpush2.msra.mxu0 0.0
  %1568 = vmatprep.subr.mxu0 0.0
  %1569 = vmatpush2.msra.mxu0 0.0
  %1570 = vmatprep.subr.mxu0 0.0
  %1571 = vmatpush2.msra.mxu0 0.0
  %1572 = vmatprep.subr.mxu0 0.0
  %1573 = vmatpush2.msra.mxu0 0.0
  %1574 = vmatprep.subr.mxu0 0.0
  %1575 = vmatpush2.msra.mxu0 0.0
  %1576 = vmatprep.subr.mxu0 0.0
  %1577 = vmatpush2.msra.mxu0 0.0
  %1578 = vmatprep.subr.mxu0 0.0
  %1579 = vmatpush2.msra.mxu0 0.0
  %1580 = vmatprep.subr.mxu0 0.0
  %1581 = vmatpush2.msra.mxu0 0.0
  %1582 = vmatprep.subr.mxu0 0.0
  %1583 = vmatpush2.msra.mxu0 0.0
  %1584 = vmatprep.subr.mxu0 0.0
  %1585 = vmatpush2.msra.mxu0 0.0
  %1586 = vmatprep.subr.mxu0 0.0
  %1587 = vmatpush2.msra.mxu0 0.0
  %1588 = vmatprep.subr.mxu0 0.0
  %1589 = vmatpush2.msra.mxu0 0.0
  %1590 = vmatprep.subr.mxu0 0.0
  %1591 = vmatpush2.msra.mxu0 0.0
  %1592 = vmatprep.mubr.f32.mxu0 0.0
  %1593 = vmatmul.mubr.f32.gmra.mxu0 %v1517
  %v1594 = vpop.f32.mrf.mxu0
  %v1595 = vadd.f32 0.0, %v1594
  %v1596 = vpop.f32.mrf.mxu0
  %v1597 = vadd.f32 0.0, %v1596
  %1598 = vmatprep.mubr.f32.mxu0 0.0
  %1599 = vmatmul.mubr.f32.gmra.mxu0 %v1520
  %v1600 = vpop.f32.mrf.mxu0
  %v1601 = vadd.f32 0.0, %v1600
  %v1602 = vpop.f32.mrf.mxu0
  %v1603 = vadd.f32 0.0, %v1602
  %1604 = vmatprep.mubr.f32.mxu0 0.0
  %1605 = vmatmul.mubr.f32.gmra.mxu0 %v1523
  %v1606 = vpop.f32.mrf.mxu0
  %v1607 = vadd.f32 0.0, %v1606
  %v1608 = vpop.f32.mrf.mxu0
  %v1609 = vadd.f32 0.0, %v1608
  %1610 = vmatprep.mubr.f32.mxu0 0.0
  %1611 = vmatmul.mubr.f32.gmra.mxu0 %v1526
  %v1612 = vpop.f32.mrf.mxu0
  %v1613 = vadd.f32 0.0, %v1612
  %v1614 = vpop.f32.mrf.mxu0
  %v1615 = vadd.f32 0.0, %v1614
  %1616 = vdwg.mxu0
  %v1617 = vadd.f32 %v1029, %v1595
  %v1618 = vadd.f32 %v1031, %v1597
  %v1619 = vadd.f32 %v1035, %v1601
  %v1620 = vadd.f32 %v1037, %v1603
  %v1621 = vadd.f32 %v1041, %v1607
  %v1622 = vadd.f32 %v1043, %v1609
  %v1623 = vadd.f32 %v1047, %v1613
  %v1624 = vadd.f32 %v1049, %v1615
  %1626 = vset.pattern.permute.xlu0 0
  %1627 = vperm.xlu0 %1626, %v103
  %v1628 = vpop.permute.xlu0 %1627
  %v1631 = vsel %vm136, %v102, 0
  %1633 = vmatprep.subr.mxu0 0.0
  %1634 = vmatpush1.msra.mxu0 0.0
  %1635 = vmatprep.subr.mxu0 0.0
  %1636 = vmatpush1.msra.mxu0 0.0
  %1637 = vmatprep.subr.mxu0 0.0
  %1638 = vmatpush1.msra.mxu0 0.0
  %1639 = vmatprep.subr.mxu0 0.0
  %1640 = vmatpush1.msra.mxu0 0.0
  %1641 = vmatprep.subr.mxu0 0.0
  %1642 = vmatpush1.msra.mxu0 0.0
  %1643 = vmatprep.subr.mxu0 0.0
  %1644 = vmatpush1.msra.mxu0 0.0
  %1645 = vmatprep.subr.mxu0 0.0
  %1646 = vmatpush1.msra.mxu0 0.0
  %1647 = vmatprep.subr.mxu0 0.0
  %1648 = vmatpush1.msra.mxu0 0.0
  %1649 = vmatprep.subr.mxu0 0.0
  %1650 = vmatpush1.msra.mxu0 0.0
  %1651 = vmatprep.subr.mxu0 0.0
  %1652 = vmatpush1.msra.mxu0 0.0
  %1653 = vmatprep.subr.mxu0 0.0
  %1654 = vmatpush1.msra.mxu0 0.0
  %1655 = vmatprep.subr.mxu0 0.0
  %1656 = vmatpush1.msra.mxu0 0.0
  %1657 = vmatprep.subr.mxu0 %v1624
  %1658 = vmatpush1.msra.mxu0 %v1623
  %1659 = vmatprep.subr.mxu0 %v1622
  %1660 = vmatpush1.msra.mxu0 %v1621
  %1661 = vmatprep.subr.mxu0 %v1620
  %1662 = vmatpush1.msra.mxu0 %v1619
  %1663 = vmatprep.subr.mxu0 %v1618
  %1664 = vmatpush1.msra.mxu0 %v1617
  %1665 = vmatprep.subr.mxu0 0.0
  %1666 = vmatpush2.msra.mxu0 0.0
  %1667 = vmatprep.subr.mxu0 0.0
  %1668 = vmatpush2.msra.mxu0 0.0
  %1669 = vmatprep.subr.mxu0 0.0
  %1670 = vmatpush2.msra.mxu0 0.0
  %1671 = vmatprep.subr.mxu0 0.0
  %1672 = vmatpush2.msra.mxu0 0.0
  %1673 = vmatprep.subr.mxu0 0.0
  %1674 = vmatpush2.msra.mxu0 0.0
  %1675 = vmatprep.subr.mxu0 0.0
  %1676 = vmatpush2.msra.mxu0 0.0
  %1677 = vmatprep.subr.mxu0 0.0
  %1678 = vmatpush2.msra.mxu0 0.0
  %1679 = vmatprep.subr.mxu0 0.0
  %1680 = vmatpush2.msra.mxu0 0.0
  %1681 = vmatprep.subr.mxu0 0.0
  %1682 = vmatpush2.msra.mxu0 0.0
  %1683 = vmatprep.subr.mxu0 0.0
  %1684 = vmatpush2.msra.mxu0 0.0
  %1685 = vmatprep.subr.mxu0 0.0
  %1686 = vmatpush2.msra.mxu0 0.0
  %1687 = vmatprep.subr.mxu0 0.0
  %1688 = vmatpush2.msra.mxu0 0.0
  %1689 = vmatprep.subr.mxu0 0.0
  %1690 = vmatpush2.msra.mxu0 0.0
  %1691 = vmatprep.subr.mxu0 0.0
  %1692 = vmatpush2.msra.mxu0 0.0
  %1693 = vmatprep.subr.mxu0 0.0
  %1694 = vmatpush2.msra.mxu0 0.0
  %1695 = vmatprep.subr.mxu0 0.0
  %1696 = vmatpush2.msra.mxu0 0.0
  %1697 = vmatprep.mubr.f32.mxu0 0.0
  %1698 = vmatmul.mubr.f32.gmra.mxu0 %v1631
  %v1699 = vpop.f32.mrf.mxu0
  %v1700 = vadd.f32 %v1628, %v1699
  %v1701 = vpop.f32.mrf.mxu0
  %v1702 = vadd.f32 %v1628, %v1701
  %1703 = vdwg.mxu0
  %v1706 = vcombine.low %v1700, %v1702
  %1708 = vst [vmem:[%s18] sm:$0xff] %v1706
  %s1709 = scalar_lea.vmem %s3, 4
  %v1710 = vld [vmem:[%s1709] sm:$0xf]
  %v1712 = vsel %vm136, %v1710, 0
  %1714 = vmatprep.subr.mxu0 0.0
  %1715 = vmatpush1.msra.mxu0 0.0
  %1716 = vmatprep.subr.mxu0 0.0
  %1717 = vmatpush1.msra.mxu0 0.0
  %1718 = vmatprep.subr.mxu0 0.0
  %1719 = vmatpush1.msra.mxu0 0.0
  %1720 = vmatprep.subr.mxu0 0.0
  %1721 = vmatpush1.msra.mxu0 0.0
  %1722 = vmatprep.subr.mxu0 0.0
  %1723 = vmatpush1.msra.mxu0 0.0
  %1724 = vmatprep.subr.mxu0 0.0
  %1725 = vmatpush1.msra.mxu0 0.0
  %1726 = vmatprep.subr.mxu0 0.0
  %1727 = vmatpush1.msra.mxu0 0.0
  %1728 = vmatprep.subr.mxu0 0.0
  %1729 = vmatpush1.msra.mxu0 0.0
  %1730 = vmatprep.subr.mxu0 0.0
  %1731 = vmatpush1.msra.mxu0 0.0
  %1732 = vmatprep.subr.mxu0 0.0
  %1733 = vmatpush1.msra.mxu0 0.0
  %1734 = vmatprep.subr.mxu0 0.0
  %1735 = vmatpush1.msra.mxu0 0.0
  %1736 = vmatprep.subr.mxu0 0.0
  %1737 = vmatpush1.msra.mxu0 0.0
  %1738 = vmatprep.subr.mxu0 0.0
  %1739 = vmatpush1.msra.mxu0 %v62
  %1740 = vmatprep.subr.mxu0 0.0
  %1741 = vmatpush1.msra.mxu0 %v61
  %1742 = vmatprep.subr.mxu0 0.0
  %1743 = vmatpush1.msra.mxu0 %v60
  %1744 = vmatprep.subr.mxu0 0.0
  %1745 = vmatpush1.msra.mxu0 %v59
  %1746 = vmatprep.subr.mxu0 0.0
  %1747 = vmatpush2.msra.mxu0 0.0
  %1748 = vmatprep.subr.mxu0 0.0
  %1749 = vmatpush2.msra.mxu0 0.0
  %1750 = vmatprep.subr.mxu0 0.0
  %1751 = vmatpush2.msra.mxu0 0.0
  %1752 = vmatprep.subr.mxu0 0.0
  %1753 = vmatpush2.msra.mxu0 0.0
  %1754 = vmatprep.subr.mxu0 0.0
  %1755 = vmatpush2.msra.mxu0 0.0
  %1756 = vmatprep.subr.mxu0 0.0
  %1757 = vmatpush2.msra.mxu0 0.0
  %1758 = vmatprep.subr.mxu0 0.0
  %1759 = vmatpush2.msra.mxu0 0.0
  %1760 = vmatprep.subr.mxu0 0.0
  %1761 = vmatpush2.msra.mxu0 0.0
  %1762 = vmatprep.subr.mxu0 0.0
  %1763 = vmatpush2.msra.mxu0 0.0
  %1764 = vmatprep.subr.mxu0 0.0
  %1765 = vmatpush2.msra.mxu0 0.0
  %1766 = vmatprep.subr.mxu0 0.0
  %1767 = vmatpush2.msra.mxu0 0.0
  %1768 = vmatprep.subr.mxu0 0.0
  %1769 = vmatpush2.msra.mxu0 0.0
  %1770 = vmatprep.subr.mxu0 0.0
  %1771 = vmatpush2.msra.mxu0 0.0
  %1772 = vmatprep.subr.mxu0 0.0
  %1773 = vmatpush2.msra.mxu0 0.0
  %1774 = vmatprep.subr.mxu0 0.0
  %1775 = vmatpush2.msra.mxu0 0.0
  %1776 = vmatprep.subr.mxu0 0.0
  %1777 = vmatpush2.msra.mxu0 0.0
  %1778 = vmatprep.mubr.f32.mxu0 0.0
  %1779 = vmatmul.mubr.f32.gmra.mxu0 %v1712
  %v1780 = vpop.f32.mrf.mxu0
  %v1781 = vadd.f32 0.0, %v1780
  %v1782 = vpop.f32.mrf.mxu0
  %1783 = vdwg.mxu0
  %1785 = vrot.lane.b32.xlu0 %v1781, 96
  %v1786 = vpop.permute.xlu0 %1785
  %v1787 = vsel %vm136, %v1781, 0
  %v1789 = vsel %vm136, %v1786, 0
  %1791 = vmatprep.subr.mxu0 0.0
  %1792 = vmatpush1.xpose.msra.mxu0 0.0
  %1793 = vmatprep.subr.mxu0 0.0
  %1794 = vmatpush1.xpose.msra.mxu0 0.0
  %1795 = vmatprep.subr.mxu0 0.0
  %1796 = vmatpush1.xpose.msra.mxu0 0.0
  %1797 = vmatprep.subr.mxu0 0.0
  %1798 = vmatpush1.xpose.msra.mxu0 0.0
  %1799 = vmatprep.subr.mxu0 0.0
  %1800 = vmatpush1.xpose.msra.mxu0 0.0
  %1801 = vmatprep.subr.mxu0 0.0
  %1802 = vmatpush1.xpose.msra.mxu0 0.0
  %1803 = vmatprep.subr.mxu0 0.0
  %1804 = vmatpush1.xpose.msra.mxu0 0.0
  %1805 = vmatprep.subr.mxu0 0.0
  %1806 = vmatpush1.xpose.msra.mxu0 0.0
  %1807 = vmatprep.subr.mxu0 0.0
  %1808 = vmatpush1.xpose.msra.mxu0 0.0
  %1809 = vmatprep.subr.mxu0 0.0
  %1810 = vmatpush1.xpose.msra.mxu0 0.0
  %1811 = vmatprep.subr.mxu0 0.0
  %1812 = vmatpush1.xpose.msra.mxu0 0.0
  %1813 = vmatprep.subr.mxu0 0.0
  %1814 = vmatpush1.xpose.msra.mxu0 0.0
  %1815 = vmatprep.subr.mxu0 0.0
  %1816 = vmatpush1.xpose.msra.mxu0 0.0
  %1817 = vmatprep.subr.mxu0 0.0
  %1818 = vmatpush1.xpose.msra.mxu0 0.0
  %1819 = vmatprep.subr.mxu0 0.0
  %1820 = vmatpush1.xpose.msra.mxu0 0.0
  %1821 = vmatprep.subr.mxu0 0.0
  %1822 = vmatpush1.xpose.msra.mxu0 %v1789
  %1823 = vmatprep.subr.mxu0 0.0
  %1824 = vmatpush2.xpose.msra.mxu0 0.0
  %1825 = vmatprep.subr.mxu0 0.0
  %1826 = vmatpush2.xpose.msra.mxu0 0.0
  %1827 = vmatprep.subr.mxu0 0.0
  %1828 = vmatpush2.xpose.msra.mxu0 0.0
  %1829 = vmatprep.subr.mxu0 0.0
  %1830 = vmatpush2.xpose.msra.mxu0 0.0
  %1831 = vmatprep.subr.mxu0 0.0
  %1832 = vmatpush2.xpose.msra.mxu0 0.0
  %1833 = vmatprep.subr.mxu0 0.0
  %1834 = vmatpush2.xpose.msra.mxu0 0.0
  %1835 = vmatprep.subr.mxu0 0.0
  %1836 = vmatpush2.xpose.msra.mxu0 0.0
  %1837 = vmatprep.subr.mxu0 0.0
  %1838 = vmatpush2.xpose.msra.mxu0 0.0
  %1839 = vmatprep.subr.mxu0 0.0
  %1840 = vmatpush2.xpose.msra.mxu0 0.0
  %1841 = vmatprep.subr.mxu0 0.0
  %1842 = vmatpush2.xpose.msra.mxu0 0.0
  %1843 = vmatprep.subr.mxu0 0.0
  %1844 = vmatpush2.xpose.msra.mxu0 0.0
  %1845 = vmatprep.subr.mxu0 0.0
  %1846 = vmatpush2.xpose.msra.mxu0 0.0
  %1847 = vmatprep.subr.mxu0 0.0
  %1848 = vmatpush2.xpose.msra.mxu0 0.0
  %1849 = vmatprep.subr.mxu0 0.0
  %1850 = vmatpush2.xpose.msra.mxu0 0.0
  %1851 = vmatprep.subr.mxu0 0.0
  %1852 = vmatpush2.xpose.msra.mxu0 0.0
  %1853 = vmatprep.subr.mxu0 0.0
  %1854 = vmatpush2.xpose.msra.mxu0 0.0
  %1855 = vmatprep.mubr.f32.mxu0 0.0
  %1856 = vmatmul.mubr.f32.gmra.mxu0 %v1787
  %v1857 = vpop.f32.mrf.mxu0
  %v1858 = vadd.f32 0.0, %v1857
  %v1859 = vpop.f32.mrf.mxu0
  %1860 = vdwg.mxu0
  %v1861 = vsel %vm387, %v1858, -inf
  %1862 = vmax.xlane.f32.xlu0 %v1861
  %v1863 = vpop.xlane.xlu0 %1862
  %v1864 = vsub.f32 %v1858, %v1863
  %v1865 = vmul.f32 %v1864, 1.442695
  %v1866 = vpow.pop %v1865
  %v1867 = vsel %vm387, %v1866, 0.0
  %1868 = vadd.xlane.f32.xlu0 %v1867
  %v1869 = vpop.xlane.xlu0 %1868
  %v1870 = vrcp.pop %v1869
  %v1871 = vmul.f32 %v1866, %v1870
  %1872 = vrot.lane.b32.xlu0 %v1781, 64
  %v1873 = vpop.permute.xlu0 %1872
  %v1875 = vsel %vm401, %v1871, 0
  %v1877 = vsel %vm405, %v1873, 0
  %1879 = vmatprep.subr.mxu0 0.0
  %1880 = vmatpush1.msra.mxu0 0.0
  %1881 = vmatprep.subr.mxu0 0.0
  %1882 = vmatpush1.msra.mxu0 0.0
  %1883 = vmatprep.subr.mxu0 0.0
  %1884 = vmatpush1.msra.mxu0 0.0
  %1885 = vmatprep.subr.mxu0 0.0
  %1886 = vmatpush1.msra.mxu0 0.0
  %1887 = vmatprep.subr.mxu0 0.0
  %1888 = vmatpush1.msra.mxu0 0.0
  %1889 = vmatprep.subr.mxu0 0.0
  %1890 = vmatpush1.msra.mxu0 0.0
  %1891 = vmatprep.subr.mxu0 0.0
  %1892 = vmatpush1.msra.mxu0 0.0
  %1893 = vmatprep.subr.mxu0 0.0
  %1894 = vmatpush1.msra.mxu0 0.0
  %1895 = vmatprep.subr.mxu0 0.0
  %1896 = vmatpush1.msra.mxu0 0.0
  %1897 = vmatprep.subr.mxu0 0.0
  %1898 = vmatpush1.msra.mxu0 0.0
  %1899 = vmatprep.subr.mxu0 0.0
  %1900 = vmatpush1.msra.mxu0 0.0
  %1901 = vmatprep.subr.mxu0 0.0
  %1902 = vmatpush1.msra.mxu0 0.0
  %1903 = vmatprep.subr.mxu0 0.0
  %1904 = vmatpush1.msra.mxu0 0.0
  %1905 = vmatprep.subr.mxu0 0.0
  %1906 = vmatpush1.msra.mxu0 0.0
  %1907 = vmatprep.subr.mxu0 0.0
  %1908 = vmatpush1.msra.mxu0 0.0
  %1909 = vmatprep.subr.mxu0 0.0
  %1910 = vmatpush1.msra.mxu0 %v1877
  %1911 = vmatprep.subr.mxu0 0.0
  %1912 = vmatpush2.msra.mxu0 0.0
  %1913 = vmatprep.subr.mxu0 0.0
  %1914 = vmatpush2.msra.mxu0 0.0
  %1915 = vmatprep.subr.mxu0 0.0
  %1916 = vmatpush2.msra.mxu0 0.0
  %1917 = vmatprep.subr.mxu0 0.0
  %1918 = vmatpush2.msra.mxu0 0.0
  %1919 = vmatprep.subr.mxu0 0.0
  %1920 = vmatpush2.msra.mxu0 0.0
  %1921 = vmatprep.subr.mxu0 0.0
  %1922 = vmatpush2.msra.mxu0 0.0
  %1923 = vmatprep.subr.mxu0 0.0
  %1924 = vmatpush2.msra.mxu0 0.0
  %1925 = vmatprep.subr.mxu0 0.0
  %1926 = vmatpush2.msra.mxu0 0.0
  %1927 = vmatprep.subr.mxu0 0.0
  %1928 = vmatpush2.msra.mxu0 0.0
  %1929 = vmatprep.subr.mxu0 0.0
  %1930 = vmatpush2.msra.mxu0 0.0
  %1931 = vmatprep.subr.mxu0 0.0
  %1932 = vmatpush2.msra.mxu0 0.0
  %1933 = vmatprep.subr.mxu0 0.0
  %1934 = vmatpush2.msra.mxu0 0.0
  %1935 = vmatprep.subr.mxu0 0.0
  %1936 = vmatpush2.msra.mxu0 0.0
  %1937 = vmatprep.subr.mxu0 0.0
  %1938 = vmatpush2.msra.mxu0 0.0
  %1939 = vmatprep.subr.mxu0 0.0
  %1940 = vmatpush2.msra.mxu0 0.0
  %1941 = vmatprep.subr.mxu0 0.0
  %1942 = vmatpush2.msra.mxu0 0.0
  %1943 = vmatprep.mubr.f32.mxu0 0.0
  %1944 = vmatmul.mubr.f32.gmra.mxu0 %v1875
  %v1945 = vpop.f32.mrf.mxu0
  %v1946 = vadd.f32 0.0, %v1945
  %v1947 = vpop.f32.mrf.mxu0
  %1948 = vdwg.mxu0
  %v1950 = vsel %vm136, %v1946, 0
  %1952 = vmatprep.subr.mxu0 0.0
  %1953 = vmatpush1.msra.mxu0 0.0
  %1954 = vmatprep.subr.mxu0 0.0
  %1955 = vmatpush1.msra.mxu0 0.0
  %1956 = vmatprep.subr.mxu0 0.0
  %1957 = vmatpush1.msra.mxu0 0.0
  %1958 = vmatprep.subr.mxu0 0.0
  %1959 = vmatpush1.msra.mxu0 0.0
  %1960 = vmatprep.subr.mxu0 0.0
  %1961 = vmatpush1.msra.mxu0 0.0
  %1962 = vmatprep.subr.mxu0 0.0
  %1963 = vmatpush1.msra.mxu0 0.0
  %1964 = vmatprep.subr.mxu0 0.0
  %1965 = vmatpush1.msra.mxu0 0.0
  %1966 = vmatprep.subr.mxu0 0.0
  %1967 = vmatpush1.msra.mxu0 0.0
  %1968 = vmatprep.subr.mxu0 0.0
  %1969 = vmatpush1.msra.mxu0 0.0
  %1970 = vmatprep.subr.mxu0 0.0
  %1971 = vmatpush1.msra.mxu0 0.0
  %1972 = vmatprep.subr.mxu0 0.0
  %1973 = vmatpush1.msra.mxu0 0.0
  %1974 = vmatprep.subr.mxu0 0.0
  %1975 = vmatpush1.msra.mxu0 0.0
  %1976 = vmatprep.subr.mxu0 0.0
  %1977 = vmatpush1.msra.mxu0 %v66
  %1978 = vmatprep.subr.mxu0 0.0
  %1979 = vmatpush1.msra.mxu0 %v65
  %1980 = vmatprep.subr.mxu0 0.0
  %1981 = vmatpush1.msra.mxu0 %v64
  %1982 = vmatprep.subr.mxu0 0.0
  %1983 = vmatpush1.msra.mxu0 %v63
  %1984 = vmatprep.subr.mxu0 0.0
  %1985 = vmatpush2.msra.mxu0 0.0
  %1986 = vmatprep.subr.mxu0 0.0
  %1987 = vmatpush2.msra.mxu0 0.0
  %1988 = vmatprep.subr.mxu0 0.0
  %1989 = vmatpush2.msra.mxu0 0.0
  %1990 = vmatprep.subr.mxu0 0.0
  %1991 = vmatpush2.msra.mxu0 0.0
  %1992 = vmatprep.subr.mxu0 0.0
  %1993 = vmatpush2.msra.mxu0 0.0
  %1994 = vmatprep.subr.mxu0 0.0
  %1995 = vmatpush2.msra.mxu0 0.0
  %1996 = vmatprep.subr.mxu0 0.0
  %1997 = vmatpush2.msra.mxu0 0.0
  %1998 = vmatprep.subr.mxu0 0.0
  %1999 = vmatpush2.msra.mxu0 0.0
  %2000 = vmatprep.subr.mxu0 0.0
  %2001 = vmatpush2.msra.mxu0 0.0
  %2002 = vmatprep.subr.mxu0 0.0
  %2003 = vmatpush2.msra.mxu0 0.0
  %2004 = vmatprep.subr.mxu0 0.0
  %2005 = vmatpush2.msra.mxu0 0.0
  %2006 = vmatprep.subr.mxu0 0.0
  %2007 = vmatpush2.msra.mxu0 0.0
  %2008 = vmatprep.subr.mxu0 0.0
  %2009 = vmatpush2.msra.mxu0 0.0
  %2010 = vmatprep.subr.mxu0 0.0
  %2011 = vmatpush2.msra.mxu0 0.0
  %2012 = vmatprep.subr.mxu0 0.0
  %2013 = vmatpush2.msra.mxu0 0.0
  %2014 = vmatprep.subr.mxu0 0.0
  %2015 = vmatpush2.msra.mxu0 0.0
  %2016 = vmatprep.mubr.f32.mxu0 0.0
  %2017 = vmatmul.mubr.f32.gmra.mxu0 %v1950
  %v2018 = vpop.f32.mrf.mxu0
  %v2019 = vadd.f32 0.0, %v2018
  %v2020 = vpop.f32.mrf.mxu0
  %2021 = vdwg.mxu0
  %v2023 = vsel %vm136, %v2019, 0
  %2025 = vmatprep.subr.mxu0 0.0
  %2026 = vmatpush1.msra.mxu0 0.0
  %2027 = vmatprep.subr.mxu0 0.0
  %2028 = vmatpush1.msra.mxu0 0.0
  %2029 = vmatprep.subr.mxu0 0.0
  %2030 = vmatpush1.msra.mxu0 0.0
  %2031 = vmatprep.subr.mxu0 0.0
  %2032 = vmatpush1.msra.mxu0 0.0
  %2033 = vmatprep.subr.mxu0 0.0
  %2034 = vmatpush1.msra.mxu0 0.0
  %2035 = vmatprep.subr.mxu0 0.0
  %2036 = vmatpush1.msra.mxu0 0.0
  %2037 = vmatprep.subr.mxu0 0.0
  %2038 = vmatpush1.msra.mxu0 0.0
  %2039 = vmatprep.subr.mxu0 0.0
  %2040 = vmatpush1.msra.mxu0 0.0
  %2041 = vmatprep.subr.mxu0 0.0
  %2042 = vmatpush1.msra.mxu0 0.0
  %2043 = vmatprep.subr.mxu0 0.0
  %2044 = vmatpush1.msra.mxu0 0.0
  %2045 = vmatprep.subr.mxu0 0.0
  %2046 = vmatpush1.msra.mxu0 0.0
  %2047 = vmatprep.subr.mxu0 0.0
  %2048 = vmatpush1.msra.mxu0 0.0
  %2049 = vmatprep.subr.mxu0 0.0
  %2050 = vmatpush1.msra.mxu0 %v70
  %2051 = vmatprep.subr.mxu0 0.0
  %2052 = vmatpush1.msra.mxu0 %v69
  %2053 = vmatprep.subr.mxu0 0.0
  %2054 = vmatpush1.msra.mxu0 %v68
  %2055 = vmatprep.subr.mxu0 0.0
  %2056 = vmatpush1.msra.mxu0 %v67
  %2057 = vmatprep.subr.mxu0 0.0
  %2058 = vmatpush2.msra.mxu0 0.0
  %2059 = vmatprep.subr.mxu0 0.0
  %2060 = vmatpush2.msra.mxu0 0.0
  %2061 = vmatprep.subr.mxu0 0.0
  %2062 = vmatpush2.msra.mxu0 0.0
  %2063 = vmatprep.subr.mxu0 0.0
  %2064 = vmatpush2.msra.mxu0 0.0
  %2065 = vmatprep.subr.mxu0 0.0
  %2066 = vmatpush2.msra.mxu0 0.0
  %2067 = vmatprep.subr.mxu0 0.0
  %2068 = vmatpush2.msra.mxu0 0.0
  %2069 = vmatprep.subr.mxu0 0.0
  %2070 = vmatpush2.msra.mxu0 0.0
  %2071 = vmatprep.subr.mxu0 0.0
  %2072 = vmatpush2.msra.mxu0 0.0
  %2073 = vmatprep.subr.mxu0 0.0
  %2074 = vmatpush2.msra.mxu0 0.0
  %2075 = vmatprep.subr.mxu0 0.0
  %2076 = vmatpush2.msra.mxu0 0.0
  %2077 = vmatprep.subr.mxu0 0.0
  %2078 = vmatpush2.msra.mxu0 0.0
  %2079 = vmatprep.subr.mxu0 0.0
  %2080 = vmatpush2.msra.mxu0 0.0
  %2081 = vmatprep.subr.mxu0 0.0
  %2082 = vmatpush2.msra.mxu0 0.0
  %2083 = vmatprep.subr.mxu0 0.0
  %2084 = vmatpush2.msra.mxu0 0.0
  %2085 = vmatprep.subr.mxu0 0.0
  %2086 = vmatpush2.msra.mxu0 0.0
  %2087 = vmatprep.subr.mxu0 0.0
  %2088 = vmatpush2.msra.mxu0 0.0
  %2089 = vmatprep.mubr.f32.mxu0 0.0
  %2090 = vmatmul.mubr.f32.gmra.mxu0 %v2023
  %v2091 = vpop.f32.mrf.mxu0
  %v2092 = vadd.f32 0.0, %v2091
  %v2093 = vpop.f32.mrf.mxu0
  %2094 = vdwg.mxu0
  %v2095 = vadd.f32 %v83, %v2092
  %v2096 = vrot.slane %v2019, 1
  %v2097 = vsel %vm136, %v2096, 0
  %2099 = vmatprep.subr.mxu0 0.0
  %2100 = vmatpush1.msra.mxu0 0.0
  %2101 = vmatprep.subr.mxu0 0.0
  %2102 = vmatpush1.msra.mxu0 0.0
  %2103 = vmatprep.subr.mxu0 0.0
  %2104 = vmatpush1.msra.mxu0 0.0
  %2105 = vmatprep.subr.mxu0 0.0
  %2106 = vmatpush1.msra.mxu0 0.0
  %2107 = vmatprep.subr.mxu0 0.0
  %2108 = vmatpush1.msra.mxu0 0.0
  %2109 = vmatprep.subr.mxu0 0.0
  %2110 = vmatpush1.msra.mxu0 0.0
  %2111 = vmatprep.subr.mxu0 0.0
  %2112 = vmatpush1.msra.mxu0 0.0
  %2113 = vmatprep.subr.mxu0 0.0
  %2114 = vmatpush1.msra.mxu0 0.0
  %2115 = vmatprep.subr.mxu0 0.0
  %2116 = vmatpush1.msra.mxu0 0.0
  %2117 = vmatprep.subr.mxu0 0.0
  %2118 = vmatpush1.msra.mxu0 0.0
  %2119 = vmatprep.subr.mxu0 0.0
  %2120 = vmatpush1.msra.mxu0 0.0
  %2121 = vmatprep.subr.mxu0 0.0
  %2122 = vmatpush1.msra.mxu0 0.0
  %2123 = vmatprep.subr.mxu0 0.0
  %2124 = vmatpush1.msra.mxu0 %v74
  %2125 = vmatprep.subr.mxu0 0.0
  %2126 = vmatpush1.msra.mxu0 %v73
  %2127 = vmatprep.subr.mxu0 0.0
  %2128 = vmatpush1.msra.mxu0 %v72
  %2129 = vmatprep.subr.mxu0 0.0
  %2130 = vmatpush1.msra.mxu0 %v71
  %2131 = vmatprep.subr.mxu0 0.0
  %2132 = vmatpush2.msra.mxu0 0.0
  %2133 = vmatprep.subr.mxu0 0.0
  %2134 = vmatpush2.msra.mxu0 0.0
  %2135 = vmatprep.subr.mxu0 0.0
  %2136 = vmatpush2.msra.mxu0 0.0
  %2137 = vmatprep.subr.mxu0 0.0
  %2138 = vmatpush2.msra.mxu0 0.0
  %2139 = vmatprep.subr.mxu0 0.0
  %2140 = vmatpush2.msra.mxu0 0.0
  %2141 = vmatprep.subr.mxu0 0.0
  %2142 = vmatpush2.msra.mxu0 0.0
  %2143 = vmatprep.subr.mxu0 0.0
  %2144 = vmatpush2.msra.mxu0 0.0
  %2145 = vmatprep.subr.mxu0 0.0
  %2146 = vmatpush2.msra.mxu0 0.0
  %2147 = vmatprep.subr.mxu0 0.0
  %2148 = vmatpush2.msra.mxu0 0.0
  %2149 = vmatprep.subr.mxu0 0.0
  %2150 = vmatpush2.msra.mxu0 0.0
  %2151 = vmatprep.subr.mxu0 0.0
  %2152 = vmatpush2.msra.mxu0 0.0
  %2153 = vmatprep.subr.mxu0 0.0
  %2154 = vmatpush2.msra.mxu0 0.0
  %2155 = vmatprep.subr.mxu0 0.0
  %2156 = vmatpush2.msra.mxu0 0.0
  %2157 = vmatprep.subr.mxu0 0.0
  %2158 = vmatpush2.msra.mxu0 0.0
  %2159 = vmatprep.subr.mxu0 0.0
  %2160 = vmatpush2.msra.mxu0 0.0
  %2161 = vmatprep.subr.mxu0 0.0
  %2162 = vmatpush2.msra.mxu0 0.0
  %2163 = vmatprep.mubr.f32.mxu0 0.0
  %2164 = vmatmul.mubr.f32.gmra.mxu0 %v2097
  %v2165 = vpop.f32.mrf.mxu0
  %v2166 = vadd.f32 0.0, %v2165
  %v2167 = vpop.f32.mrf.mxu0
  %2168 = vdwg.mxu0
  %v2169 = vadd.f32 %v2095, %v2166
  %v2170 = vrot.slane %v2019, 2
  %v2171 = vsel %vm136, %v2170, 0
  %2173 = vmatprep.subr.mxu0 0.0
  %2174 = vmatpush1.msra.mxu0 0.0
  %2175 = vmatprep.subr.mxu0 0.0
  %2176 = vmatpush1.msra.mxu0 0.0
  %2177 = vmatprep.subr.mxu0 0.0
  %2178 = vmatpush1.msra.mxu0 0.0
  %2179 = vmatprep.subr.mxu0 0.0
  %2180 = vmatpush1.msra.mxu0 0.0
  %2181 = vmatprep.subr.mxu0 0.0
  %2182 = vmatpush1.msra.mxu0 0.0
  %2183 = vmatprep.subr.mxu0 0.0
  %2184 = vmatpush1.msra.mxu0 0.0
  %2185 = vmatprep.subr.mxu0 0.0
  %2186 = vmatpush1.msra.mxu0 0.0
  %2187 = vmatprep.subr.mxu0 0.0
  %2188 = vmatpush1.msra.mxu0 0.0
  %2189 = vmatprep.subr.mxu0 0.0
  %2190 = vmatpush1.msra.mxu0 0.0
  %2191 = vmatprep.subr.mxu0 0.0
  %2192 = vmatpush1.msra.mxu0 0.0
  %2193 = vmatprep.subr.mxu0 0.0
  %2194 = vmatpush1.msra.mxu0 0.0
  %2195 = vmatprep.subr.mxu0 0.0
  %2196 = vmatpush1.msra.mxu0 0.0
  %2197 = vmatprep.subr.mxu0 0.0
  %2198 = vmatpush1.msra.mxu0 %v78
  %2199 = vmatprep.subr.mxu0 0.0
  %2200 = vmatpush1.msra.mxu0 %v77
  %2201 = vmatprep.subr.mxu0 0.0
  %2202 = vmatpush1.msra.mxu0 %v76
  %2203 = vmatprep.subr.mxu0 0.0
  %2204 = vmatpush1.msra.mxu0 %v75
  %2205 = vmatprep.subr.mxu0 0.0
  %2206 = vmatpush2.msra.mxu0 0.0
  %2207 = vmatprep.subr.mxu0 0.0
  %2208 = vmatpush2.msra.mxu0 0.0
  %2209 = vmatprep.subr.mxu0 0.0
  %2210 = vmatpush2.msra.mxu0 0.0
  %2211 = vmatprep.subr.mxu0 0.0
  %2212 = vmatpush2.msra.mxu0 0.0
  %2213 = vmatprep.subr.mxu0 0.0
  %2214 = vmatpush2.msra.mxu0 0.0
  %2215 = vmatprep.subr.mxu0 0.0
  %2216 = vmatpush2.msra.mxu0 0.0
  %2217 = vmatprep.subr.mxu0 0.0
  %2218 = vmatpush2.msra.mxu0 0.0
  %2219 = vmatprep.subr.mxu0 0.0
  %2220 = vmatpush2.msra.mxu0 0.0
  %2221 = vmatprep.subr.mxu0 0.0
  %2222 = vmatpush2.msra.mxu0 0.0
  %2223 = vmatprep.subr.mxu0 0.0
  %2224 = vmatpush2.msra.mxu0 0.0
  %2225 = vmatprep.subr.mxu0 0.0
  %2226 = vmatpush2.msra.mxu0 0.0
  %2227 = vmatprep.subr.mxu0 0.0
  %2228 = vmatpush2.msra.mxu0 0.0
  %2229 = vmatprep.subr.mxu0 0.0
  %2230 = vmatpush2.msra.mxu0 0.0
  %2231 = vmatprep.subr.mxu0 0.0
  %2232 = vmatpush2.msra.mxu0 0.0
  %2233 = vmatprep.subr.mxu0 0.0
  %2234 = vmatpush2.msra.mxu0 0.0
  %2235 = vmatprep.subr.mxu0 0.0
  %2236 = vmatpush2.msra.mxu0 0.0
  %2237 = vmatprep.mubr.f32.mxu0 0.0
  %2238 = vmatmul.mubr.f32.gmra.mxu0 %v2171
  %v2239 = vpop.f32.mrf.mxu0
  %v2240 = vadd.f32 0.0, %v2239
  %v2241 = vpop.f32.mrf.mxu0
  %2242 = vdwg.mxu0
  %v2243 = vadd.f32 %v2169, %v2240
  %v2244 = vrot.slane %v2019, 3
  %v2245 = vsel %vm136, %v2244, 0
  %2247 = vmatprep.subr.mxu0 0.0
  %2248 = vmatpush1.msra.mxu0 0.0
  %2249 = vmatprep.subr.mxu0 0.0
  %2250 = vmatpush1.msra.mxu0 0.0
  %2251 = vmatprep.subr.mxu0 0.0
  %2252 = vmatpush1.msra.mxu0 0.0
  %2253 = vmatprep.subr.mxu0 0.0
  %2254 = vmatpush1.msra.mxu0 0.0
  %2255 = vmatprep.subr.mxu0 0.0
  %2256 = vmatpush1.msra.mxu0 0.0
  %2257 = vmatprep.subr.mxu0 0.0
  %2258 = vmatpush1.msra.mxu0 0.0
  %2259 = vmatprep.subr.mxu0 0.0
  %2260 = vmatpush1.msra.mxu0 0.0
  %2261 = vmatprep.subr.mxu0 0.0
  %2262 = vmatpush1.msra.mxu0 0.0
  %2263 = vmatprep.subr.mxu0 0.0
  %2264 = vmatpush1.msra.mxu0 0.0
  %2265 = vmatprep.subr.mxu0 0.0
  %2266 = vmatpush1.msra.mxu0 0.0
  %2267 = vmatprep.subr.mxu0 0.0
  %2268 = vmatpush1.msra.mxu0 0.0
  %2269 = vmatprep.subr.mxu0 0.0
  %2270 = vmatpush1.msra.mxu0 0.0
  %2271 = vmatprep.subr.mxu0 0.0
  %2272 = vmatpush1.msra.mxu0 %v82
  %2273 = vmatprep.subr.mxu0 0.0
  %2274 = vmatpush1.msra.mxu0 %v81
  %2275 = vmatprep.subr.mxu0 0.0
  %2276 = vmatpush1.msra.mxu0 %v80
  %2277 = vmatprep.subr.mxu0 0.0
  %2278 = vmatpush1.msra.mxu0 %v79
  %2279 = vmatprep.subr.mxu0 0.0
  %2280 = vmatpush2.msra.mxu0 0.0
  %2281 = vmatprep.subr.mxu0 0.0
  %2282 = vmatpush2.msra.mxu0 0.0
  %2283 = vmatprep.subr.mxu0 0.0
  %2284 = vmatpush2.msra.mxu0 0.0
  %2285 = vmatprep.subr.mxu0 0.0
  %2286 = vmatpush2.msra.mxu0 0.0
  %2287 = vmatprep.subr.mxu0 0.0
  %2288 = vmatpush2.msra.mxu0 0.0
  %2289 = vmatprep.subr.mxu0 0.0
  %2290 = vmatpush2.msra.mxu0 0.0
  %2291 = vmatprep.subr.mxu0 0.0
  %2292 = vmatpush2.msra.mxu0 0.0
  %2293 = vmatprep.subr.mxu0 0.0
  %2294 = vmatpush2.msra.mxu0 0.0
  %2295 = vmatprep.subr.mxu0 0.0
  %2296 = vmatpush2.msra.mxu0 0.0
  %2297 = vmatprep.subr.mxu0 0.0
  %2298 = vmatpush2.msra.mxu0 0.0
  %2299 = vmatprep.subr.mxu0 0.0
  %2300 = vmatpush2.msra.mxu0 0.0
  %2301 = vmatprep.subr.mxu0 0.0
  %2302 = vmatpush2.msra.mxu0 0.0
  %2303 = vmatprep.subr.mxu0 0.0
  %2304 = vmatpush2.msra.mxu0 0.0
  %2305 = vmatprep.subr.mxu0 0.0
  %2306 = vmatpush2.msra.mxu0 0.0
  %2307 = vmatprep.subr.mxu0 0.0
  %2308 = vmatpush2.msra.mxu0 0.0
  %2309 = vmatprep.subr.mxu0 0.0
  %2310 = vmatpush2.msra.mxu0 0.0
  %2311 = vmatprep.mubr.f32.mxu0 0.0
  %2312 = vmatmul.mubr.f32.gmra.mxu0 %v2245
  %v2313 = vpop.f32.mrf.mxu0
  %v2314 = vadd.f32 0.0, %v2313
  %v2315 = vpop.f32.mrf.mxu0
  %2316 = vdwg.mxu0
  %v2317 = vadd.f32 %v2243, %v2314
  %v2319 = vlaneseq
  %v2320 = vshrl.u32 %v2319, 7
  %v2321 = vsub.s32 0, %v2320
  %v2322 = vrot.slane %v2317, %v2321
  %v2324 = vsel %vm853, %v2322, 0.0
  %2326 = vrot.lane.b32.xlu0 %v2324, 32
  %v2327 = vpop.permute.xlu0 %2326
  %v2329 = vsel %vm855, %v2322, %v2327
  %2331 = vrot.lane.b32.xlu0 %v2329, 32
  %v2332 = vpop.permute.xlu0 %2331
  %v2334 = vsel %vm861, %v2322, %v2332
  %2336 = vrot.lane.b32.xlu0 %v2334, 32
  %v2337 = vpop.permute.xlu0 %2336
  %v2339 = vsel %vm867, %v2322, %v2337
  %2341 = vrot.lane.b32.xlu0 %v2339, 32
  %v2342 = vpop.permute.xlu0 %2341
  %v2344 = vsel %vm877, %v2342, 0.0
  %2345 = vadd.xlane.f32.xlu0 %v2344
  %v2346 = vpop.xlane.xlu0 %2345
  %v2347 = vmul.f32 %v2346, %v881
  %v2348 = vsub.f32 %v2339, %v2347
  %v2349 = vmul.f32 %v2348, %v2348
  %2351 = vrot.lane.b32.xlu0 %v2349, 32
  %v2352 = vpop.permute.xlu0 %2351
  %v2354 = vsel %vm877, %v2352, 0.0
  %2355 = vadd.xlane.f32.xlu0 %v2354
  %v2356 = vpop.xlane.xlu0 %2355
  %v2357 = vmul.f32 %v2356, %v881
  %v2358 = vadd.f32 %v2357, 1e-05
  %v2359 = vrsqrt.pop %v2358
  %v2360 = vmul.f32 %v2348, %v2359
  %v2361 = vmul.f32 %v2360, %v902
  %v2362 = vadd.f32 %v2361, %v911
  %s2363 = scalar_lea.vmem %s2, 8
  %v2364 = vld [vmem:[%s2363] sm:$0xff]
  %2365 = vst.msk [vmem:[#allocation2] sm:$0xff] %vm136, %v2364
  %2367 = vrot.lane.b32.xlu0 %v2362, 32
  %v2368 = vpop.permute.xlu0 %2367
  %2370 = vst.msk [vmem:[#allocation2 + $0x8] sm:$0xf] %vm877, %v2368
  %v2371 = vld [vmem:[#allocation2] sm:$0xff]
  %v2372 = vld [vmem:[#allocation2 + $0x8] sm:$0xf]
  %s2373 = scalar_lea.vmem %s0, 8
  %v2374 = vld [vmem:[%s2373] sm:$0xff]
  %2375 = vset.pattern.permute.xlu0 1
  %2376 = vperm.xlu0 %2375, %v216
  %v2377 = vpop.permute.xlu0 %2376
  %2379 = vset.pattern.permute.xlu0 1
  %2380 = vperm.xlu0 %2379, %v221
  %v2381 = vpop.permute.xlu0 %2380
  %2383 = vset.pattern.permute.xlu0 1
  %2384 = vperm.xlu0 %2383, %v226
  %v2385 = vpop.permute.xlu0 %2384
  %2387 = vset.pattern.permute.xlu0 1
  %2388 = vperm.xlu0 %2387, %v231
  %v2389 = vpop.permute.xlu0 %2388
  %v2392 = vcombine.high %v2374, %v2374
  %v2393 = vsel %vm405, %v2374, 0
  %v2395 = vsel %vm405, %v2392, 0
  %2397 = vmatprep.subr.mxu0 0.0
  %2398 = vmatpush1.msra.mxu0 0.0
  %2399 = vmatprep.subr.mxu0 0.0
  %2400 = vmatpush1.msra.mxu0 0.0
  %2401 = vmatprep.subr.mxu0 0.0
  %2402 = vmatpush1.msra.mxu0 0.0
  %2403 = vmatprep.subr.mxu0 0.0
  %2404 = vmatpush1.msra.mxu0 0.0
  %2405 = vmatprep.subr.mxu0 0.0
  %2406 = vmatpush1.msra.mxu0 0.0
  %2407 = vmatprep.subr.mxu0 0.0
  %2408 = vmatpush1.msra.mxu0 0.0
  %2409 = vmatprep.subr.mxu0 0.0
  %2410 = vmatpush1.msra.mxu0 0.0
  %2411 = vmatprep.subr.mxu0 0.0
  %2412 = vmatpush1.msra.mxu0 0.0
  %2413 = vmatprep.subr.mxu0 0.0
  %2414 = vmatpush1.msra.mxu0 0.0
  %2415 = vmatprep.subr.mxu0 0.0
  %2416 = vmatpush1.msra.mxu0 0.0
  %2417 = vmatprep.subr.mxu0 0.0
  %2418 = vmatpush1.msra.mxu0 0.0
  %2419 = vmatprep.subr.mxu0 0.0
  %2420 = vmatpush1.msra.mxu0 0.0
  %2421 = vmatprep.subr.mxu0 0.0
  %2422 = vmatpush1.msra.mxu0 0.0
  %2423 = vmatprep.subr.mxu0 0.0
  %2424 = vmatpush1.msra.mxu0 0.0
  %2425 = vmatprep.subr.mxu0 0.0
  %2426 = vmatpush1.msra.mxu0 0.0
  %2427 = vmatprep.subr.mxu0 %v2395
  %2428 = vmatpush1.msra.mxu0 %v2393
  %2429 = vmatprep.subr.mxu0 0.0
  %2430 = vmatpush2.msra.mxu0 0.0
  %2431 = vmatprep.subr.mxu0 0.0
  %2432 = vmatpush2.msra.mxu0 0.0
  %2433 = vmatprep.subr.mxu0 0.0
  %2434 = vmatpush2.msra.mxu0 0.0
  %2435 = vmatprep.subr.mxu0 0.0
  %2436 = vmatpush2.msra.mxu0 0.0
  %2437 = vmatprep.subr.mxu0 0.0
  %2438 = vmatpush2.msra.mxu0 0.0
  %2439 = vmatprep.subr.mxu0 0.0
  %2440 = vmatpush2.msra.mxu0 0.0
  %2441 = vmatprep.subr.mxu0 0.0
  %2442 = vmatpush2.msra.mxu0 0.0
  %2443 = vmatprep.subr.mxu0 0.0
  %2444 = vmatpush2.msra.mxu0 0.0
  %2445 = vmatprep.subr.mxu0 0.0
  %2446 = vmatpush2.msra.mxu0 0.0
  %2447 = vmatprep.subr.mxu0 0.0
  %2448 = vmatpush2.msra.mxu0 0.0
  %2449 = vmatprep.subr.mxu0 0.0
  %2450 = vmatpush2.msra.mxu0 0.0
  %2451 = vmatprep.subr.mxu0 0.0
  %2452 = vmatpush2.msra.mxu0 0.0
  %2453 = vmatprep.subr.mxu0 0.0
  %2454 = vmatpush2.msra.mxu0 0.0
  %2455 = vmatprep.subr.mxu0 0.0
  %2456 = vmatpush2.msra.mxu0 0.0
  %2457 = vmatprep.subr.mxu0 0.0
  %2458 = vmatpush2.msra.mxu0 0.0
  %2459 = vmatprep.subr.mxu0 0.0
  %2460 = vmatpush2.msra.mxu0 0.0
  %2461 = vmatprep.mubr.f32.mxu0 0.0
  %2462 = vmatmul.mubr.f32.gmra.mxu0 %v947
  %v2463 = vpop.f32.mrf.mxu0
  %v2464 = vadd.f32 %v2377, %v2463
  %v2465 = vpop.f32.mrf.mxu0
  %v2466 = vadd.f32 %v2377, %v2465
  %2467 = vmatprep.mubr.f32.mxu0 0.0
  %2468 = vmatmul.mubr.f32.gmra.mxu0 %v950
  %v2469 = vpop.f32.mrf.mxu0
  %v2470 = vadd.f32 %v2381, %v2469
  %v2471 = vpop.f32.mrf.mxu0
  %v2472 = vadd.f32 %v2381, %v2471
  %2473 = vmatprep.mubr.f32.mxu0 0.0
  %2474 = vmatmul.mubr.f32.gmra.mxu0 %v953
  %v2475 = vpop.f32.mrf.mxu0
  %v2476 = vadd.f32 %v2385, %v2475
  %v2477 = vpop.f32.mrf.mxu0
  %v2478 = vadd.f32 %v2385, %v2477
  %2479 = vmatprep.mubr.f32.mxu0 0.0
  %2480 = vmatmul.mubr.f32.gmra.mxu0 %v956
  %v2481 = vpop.f32.mrf.mxu0
  %v2482 = vadd.f32 %v2389, %v2481
  %v2483 = vpop.f32.mrf.mxu0
  %v2484 = vadd.f32 %v2389, %v2483
  %2485 = vdwg.mxu0
  %2486 = vmatprep.subr.mxu0 0.0
  %2487 = vmatpush1.msra.mxu0 0.0
  %2488 = vmatprep.subr.mxu0 0.0
  %2489 = vmatpush1.msra.mxu0 0.0
  %2490 = vmatprep.subr.mxu0 0.0
  %2491 = vmatpush1.msra.mxu0 0.0
  %2492 = vmatprep.subr.mxu0 0.0
  %2493 = vmatpush1.msra.mxu0 0.0
  %2494 = vmatprep.subr.mxu0 0.0
  %2495 = vmatpush1.msra.mxu0 0.0
  %2496 = vmatprep.subr.mxu0 0.0
  %2497 = vmatpush1.msra.mxu0 0.0
  %2498 = vmatprep.subr.mxu0 0.0
  %2499 = vmatpush1.msra.mxu0 0.0
  %2500 = vmatprep.subr.mxu0 0.0
  %2501 = vmatpush1.msra.mxu0 0.0
  %2502 = vmatprep.subr.mxu0 0.0
  %2503 = vmatpush1.msra.mxu0 0.0
  %2504 = vmatprep.subr.mxu0 0.0
  %2505 = vmatpush1.msra.mxu0 0.0
  %2506 = vmatprep.subr.mxu0 0.0
  %2507 = vmatpush1.msra.mxu0 0.0
  %2508 = vmatprep.subr.mxu0 0.0
  %2509 = vmatpush1.msra.mxu0 0.0
  %2510 = vmatprep.subr.mxu0 %v2484
  %2511 = vmatpush1.msra.mxu0 %v2482
  %2512 = vmatprep.subr.mxu0 %v2478
  %2513 = vmatpush1.msra.mxu0 %v2476
  %2514 = vmatprep.subr.mxu0 %v2472
  %2515 = vmatpush1.msra.mxu0 %v2470
  %2516 = vmatprep.subr.mxu0 %v2466
  %2517 = vmatpush1.msra.mxu0 %v2464
  %2518 = vmatprep.subr.mxu0 0.0
  %2519 = vmatpush2.msra.mxu0 0.0
  %2520 = vmatprep.subr.mxu0 0.0
  %2521 = vmatpush2.msra.mxu0 0.0
  %2522 = vmatprep.subr.mxu0 0.0
  %2523 = vmatpush2.msra.mxu0 0.0
  %2524 = vmatprep.subr.mxu0 0.0
  %2525 = vmatpush2.msra.mxu0 0.0
  %2526 = vmatprep.subr.mxu0 0.0
  %2527 = vmatpush2.msra.mxu0 0.0
  %2528 = vmatprep.subr.mxu0 0.0
  %2529 = vmatpush2.msra.mxu0 0.0
  %2530 = vmatprep.subr.mxu0 0.0
  %2531 = vmatpush2.msra.mxu0 0.0
  %2532 = vmatprep.subr.mxu0 0.0
  %2533 = vmatpush2.msra.mxu0 0.0
  %2534 = vmatprep.subr.mxu0 0.0
  %2535 = vmatpush2.msra.mxu0 0.0
  %2536 = vmatprep.subr.mxu0 0.0
  %2537 = vmatpush2.msra.mxu0 0.0
  %2538 = vmatprep.subr.mxu0 0.0
  %2539 = vmatpush2.msra.mxu0 0.0
  %2540 = vmatprep.subr.mxu0 0.0
  %2541 = vmatpush2.msra.mxu0 0.0
  %2542 = vmatprep.subr.mxu0 0.0
  %2543 = vmatpush2.msra.mxu0 0.0
  %2544 = vmatprep.subr.mxu0 0.0
  %2545 = vmatpush2.msra.mxu0 0.0
  %2546 = vmatprep.subr.mxu0 0.0
  %2547 = vmatpush2.msra.mxu0 0.0
  %2548 = vmatprep.subr.mxu0 0.0
  %2549 = vmatpush2.msra.mxu0 0.0
  %2550 = vmatprep.mubr.f32.mxu0 0.0
  %2551 = vmatmul.mubr.f32.gmra.mxu0 %v1052
  %v2552 = vpop.f32.mrf.mxu0
  %v2553 = vadd.f32 0.0, %v2552
  %v2554 = vpop.f32.mrf.mxu0
  %v2555 = vadd.f32 0.0, %v2554
  %2556 = vmatprep.mubr.f32.mxu0 0.0
  %2557 = vmatmul.mubr.f32.gmra.mxu0 %v1055
  %v2558 = vpop.f32.mrf.mxu0
  %v2559 = vadd.f32 0.0, %v2558
  %v2560 = vpop.f32.mrf.mxu0
  %v2561 = vadd.f32 0.0, %v2560
  %2562 = vmatprep.mubr.f32.mxu0 0.0
  %2563 = vmatmul.mubr.f32.gmra.mxu0 %v1058
  %v2564 = vpop.f32.mrf.mxu0
  %v2565 = vadd.f32 0.0, %v2564
  %v2566 = vpop.f32.mrf.mxu0
  %v2567 = vadd.f32 0.0, %v2566
  %2568 = vmatprep.mubr.f32.mxu0 0.0
  %2569 = vmatmul.mubr.f32.gmra.mxu0 %v1061
  %v2570 = vpop.f32.mrf.mxu0
  %v2571 = vadd.f32 0.0, %v2570
  %v2572 = vpop.f32.mrf.mxu0
  %v2573 = vadd.f32 0.0, %v2572
  %2574 = vdwg.mxu0
  %v2576 = vsel %vm136, %v2371, 0
  %v2579 = vsel %vm136, %v2372, 0
  %2581 = vmatprep.subr.mxu0 0.0
  %2582 = vmatpush1.msra.mxu0 0.0
  %2583 = vmatprep.subr.mxu0 0.0
  %2584 = vmatpush1.msra.mxu0 0.0
  %2585 = vmatprep.subr.mxu0 0.0
  %2586 = vmatpush1.msra.mxu0 0.0
  %2587 = vmatprep.subr.mxu0 0.0
  %2588 = vmatpush1.msra.mxu0 0.0
  %2589 = vmatprep.subr.mxu0 0.0
  %2590 = vmatpush1.msra.mxu0 0.0
  %2591 = vmatprep.subr.mxu0 0.0
  %2592 = vmatpush1.msra.mxu0 0.0
  %2593 = vmatprep.subr.mxu0 0.0
  %2594 = vmatpush1.msra.mxu0 0.0
  %2595 = vmatprep.subr.mxu0 0.0
  %2596 = vmatpush1.msra.mxu0 0.0
  %2597 = vmatprep.subr.mxu0 0.0
  %2598 = vmatpush1.msra.mxu0 0.0
  %2599 = vmatprep.subr.mxu0 0.0
  %2600 = vmatpush1.msra.mxu0 0.0
  %2601 = vmatprep.subr.mxu0 0.0
  %2602 = vmatpush1.msra.mxu0 0.0
  %2603 = vmatprep.subr.mxu0 0.0
  %2604 = vmatpush1.msra.mxu0 0.0
  %2605 = vmatprep.subr.mxu0 0.0
  %2606 = vmatpush1.msra.mxu0 %v97
  %2607 = vmatprep.subr.mxu0 0.0
  %2608 = vmatpush1.msra.mxu0 %v96
  %2609 = vmatprep.subr.mxu0 0.0
  %2610 = vmatpush1.msra.mxu0 %v95
  %2611 = vmatprep.subr.mxu0 0.0
  %2612 = vmatpush1.msra.mxu0 %v94
  %2613 = vmatprep.subr.mxu0 0.0
  %2614 = vmatpush2.msra.mxu0 0.0
  %2615 = vmatprep.subr.mxu0 0.0
  %2616 = vmatpush2.msra.mxu0 0.0
  %2617 = vmatprep.subr.mxu0 0.0
  %2618 = vmatpush2.msra.mxu0 0.0
  %2619 = vmatprep.subr.mxu0 0.0
  %2620 = vmatpush2.msra.mxu0 0.0
  %2621 = vmatprep.subr.mxu0 0.0
  %2622 = vmatpush2.msra.mxu0 0.0
  %2623 = vmatprep.subr.mxu0 0.0
  %2624 = vmatpush2.msra.mxu0 0.0
  %2625 = vmatprep.subr.mxu0 0.0
  %2626 = vmatpush2.msra.mxu0 0.0
  %2627 = vmatprep.subr.mxu0 0.0
  %2628 = vmatpush2.msra.mxu0 0.0
  %2629 = vmatprep.subr.mxu0 0.0
  %2630 = vmatpush2.msra.mxu0 0.0
  %2631 = vmatprep.subr.mxu0 0.0
  %2632 = vmatpush2.msra.mxu0 0.0
  %2633 = vmatprep.subr.mxu0 0.0
  %2634 = vmatpush2.msra.mxu0 0.0
  %2635 = vmatprep.subr.mxu0 0.0
  %2636 = vmatpush2.msra.mxu0 0.0
  %2637 = vmatprep.subr.mxu0 0.0
  %2638 = vmatpush2.msra.mxu0 0.0
  %2639 = vmatprep.subr.mxu0 0.0
  %2640 = vmatpush2.msra.mxu0 0.0
  %2641 = vmatprep.subr.mxu0 0.0
  %2642 = vmatpush2.msra.mxu0 0.0
  %2643 = vmatprep.subr.mxu0 0.0
  %2644 = vmatpush2.msra.mxu0 0.0
  %2645 = vmatprep.mubr.f32.mxu0 0.0
  %2646 = vmatmul.mubr.f32.gmra.mxu0 %v2576
  %v2647 = vpop.f32.mrf.mxu0
  %v2648 = vadd.f32 0.0, %v2647
  %v2649 = vpop.f32.mrf.mxu0
  %2650 = vmatprep.mubr.f32.mxu0 0.0
  %2651 = vmatmul.mubr.f32.gmra.mxu0 %v2579
  %v2652 = vpop.f32.mrf.mxu0
  %v2653 = vadd.f32 0.0, %v2652
  %v2654 = vpop.f32.mrf.mxu0
  %2655 = vdwg.mxu0
  %v2657 = vsel %vm136, %v2648, 0
  %v2660 = vsel %vm136, %v2653, 0
  %2662 = vmatprep.subr.mxu0 0.0
  %2663 = vmatpush1.msra.mxu0 0.0
  %2664 = vmatprep.subr.mxu0 0.0
  %2665 = vmatpush1.msra.mxu0 0.0
  %2666 = vmatprep.subr.mxu0 0.0
  %2667 = vmatpush1.msra.mxu0 0.0
  %2668 = vmatprep.subr.mxu0 0.0
  %2669 = vmatpush1.msra.mxu0 0.0
  %2670 = vmatprep.subr.mxu0 0.0
  %2671 = vmatpush1.msra.mxu0 0.0
  %2672 = vmatprep.subr.mxu0 0.0
  %2673 = vmatpush1.msra.mxu0 0.0
  %2674 = vmatprep.subr.mxu0 0.0
  %2675 = vmatpush1.msra.mxu0 0.0
  %2676 = vmatprep.subr.mxu0 0.0
  %2677 = vmatpush1.msra.mxu0 0.0
  %2678 = vmatprep.subr.mxu0 0.0
  %2679 = vmatpush1.msra.mxu0 0.0
  %2680 = vmatprep.subr.mxu0 0.0
  %2681 = vmatpush1.msra.mxu0 0.0
  %2682 = vmatprep.subr.mxu0 0.0
  %2683 = vmatpush1.msra.mxu0 0.0
  %2684 = vmatprep.subr.mxu0 0.0
  %2685 = vmatpush1.msra.mxu0 0.0
  %2686 = vmatprep.subr.mxu0 %v2573
  %2687 = vmatpush1.msra.mxu0 %v2571
  %2688 = vmatprep.subr.mxu0 %v2567
  %2689 = vmatpush1.msra.mxu0 %v2565
  %2690 = vmatprep.subr.mxu0 %v2561
  %2691 = vmatpush1.msra.mxu0 %v2559
  %2692 = vmatprep.subr.mxu0 %v2555
  %2693 = vmatpush1.msra.mxu0 %v2553
  %2694 = vmatprep.subr.mxu0 0.0
  %2695 = vmatpush2.msra.mxu0 0.0
  %2696 = vmatprep.subr.mxu0 0.0
  %2697 = vmatpush2.msra.mxu0 0.0
  %2698 = vmatprep.subr.mxu0 0.0
  %2699 = vmatpush2.msra.mxu0 0.0
  %2700 = vmatprep.subr.mxu0 0.0
  %2701 = vmatpush2.msra.mxu0 0.0
  %2702 = vmatprep.subr.mxu0 0.0
  %2703 = vmatpush2.msra.mxu0 0.0
  %2704 = vmatprep.subr.mxu0 0.0
  %2705 = vmatpush2.msra.mxu0 0.0
  %2706 = vmatprep.subr.mxu0 0.0
  %2707 = vmatpush2.msra.mxu0 0.0
  %2708 = vmatprep.subr.mxu0 0.0
  %2709 = vmatpush2.msra.mxu0 0.0
  %2710 = vmatprep.subr.mxu0 0.0
  %2711 = vmatpush2.msra.mxu0 0.0
  %2712 = vmatprep.subr.mxu0 0.0
  %2713 = vmatpush2.msra.mxu0 0.0
  %2714 = vmatprep.subr.mxu0 0.0
  %2715 = vmatpush2.msra.mxu0 0.0
  %2716 = vmatprep.subr.mxu0 0.0
  %2717 = vmatpush2.msra.mxu0 0.0
  %2718 = vmatprep.subr.mxu0 0.0
  %2719 = vmatpush2.msra.mxu0 0.0
  %2720 = vmatprep.subr.mxu0 0.0
  %2721 = vmatpush2.msra.mxu0 0.0
  %2722 = vmatprep.subr.mxu0 0.0
  %2723 = vmatpush2.msra.mxu0 0.0
  %2724 = vmatprep.subr.mxu0 0.0
  %2725 = vmatpush2.msra.mxu0 0.0
  %2726 = vmatprep.mubr.f32.mxu0 0.0
  %2727 = vmatmul.mubr.f32.gmra.mxu0 %v2657
  %v2728 = vpop.f32.mrf.mxu0
  %v2729 = vadd.f32 0.0, %v2728
  %v2730 = vpop.f32.mrf.mxu0
  %v2731 = vadd.f32 0.0, %v2730
  %2732 = vmatprep.mubr.f32.mxu0 0.0
  %2733 = vmatmul.mubr.f32.gmra.mxu0 %v2660
  %v2734 = vpop.f32.mrf.mxu0
  %v2735 = vadd.f32 0.0, %v2734
  %v2736 = vpop.f32.mrf.mxu0
  %v2737 = vadd.f32 0.0, %v2736
  %2738 = vdwg.mxu0
  %v2739 = vsel %vm405, %v2735, -inf
  %v2740 = vmax.f32 %v2729, %v2739
  %v2741 = vrot.slane %v2740, 4
  %v2742 = vmax.f32 %v2740, %v2741
  %v2743 = vrot.slane %v2742, 2
  %v2744 = vmax.f32 %v2742, %v2743
  %v2745 = vrot.slane %v2744, 1
  %v2746 = vmax.f32 %v2744, %v2745
  %v2747 = vsel %vm405, %v2737, -inf
  %v2748 = vmax.f32 %v2731, %v2747
  %v2749 = vrot.slane %v2748, 4
  %v2750 = vmax.f32 %v2748, %v2749
  %v2751 = vrot.slane %v2750, 2
  %v2752 = vmax.f32 %v2750, %v2751
  %v2753 = vrot.slane %v2752, 1
  %v2754 = vmax.f32 %v2752, %v2753
  %v2755 = vsub.f32 %v2729, %v2746
  %v2756 = vsub.f32 %v2731, %v2754
  %v2757 = vsub.f32 %v2735, %v2746
  %v2758 = vsub.f32 %v2737, %v2754
  %v2759 = vmul.f32 %v2755, 1.442695
  %v2760 = vpow.pop %v2759
  %v2761 = vmul.f32 %v2756, 1.442695
  %v2762 = vpow.pop %v2761
  %v2763 = vmul.f32 %v2757, 1.442695
  %v2764 = vpow.pop %v2763
  %v2765 = vmul.f32 %v2758, 1.442695
  %v2766 = vpow.pop %v2765
  %v2767 = vsel %vm405, %v2764, 0.0
  %v2768 = vadd.f32 %v2760, %v2767
  %v2769 = vrot.slane %v2768, 4
  %v2770 = vadd.f32 %v2768, %v2769
  %v2771 = vrot.slane %v2770, 2
  %v2772 = vadd.f32 %v2770, %v2771
  %v2773 = vrot.slane %v2772, 1
  %v2774 = vadd.f32 %v2772, %v2773
  %v2775 = vsel %vm405, %v2766, 0.0
  %v2776 = vadd.f32 %v2762, %v2775
  %v2777 = vrot.slane %v2776, 4
  %v2778 = vadd.f32 %v2776, %v2777
  %v2779 = vrot.slane %v2778, 2
  %v2780 = vadd.f32 %v2778, %v2779
  %v2781 = vrot.slane %v2780, 1
  %v2782 = vadd.f32 %v2780, %v2781
  %v2783 = vrcp.pop %v2774
  %v2784 = vrcp.pop %v2782
  %2785 = vrot.lane.b32.xlu0 %v2648, 96
  %v2786 = vpop.permute.xlu0 %2785
  %2787 = vrot.lane.b32.xlu0 %v2653, 96
  %v2788 = vpop.permute.xlu0 %2787
  %2791 = vxpose.xlu0.b32.start [1/16] %v2786, 128
  %2792 = vxpose.xlu0.b32.cont [2/16] %v2788, 128
  %2793 = vxpose.xlu0.b32.cont [3/16] 0.0, 128
  %2794 = vxpose.xlu0.b32.cont [4/16] 0.0, 128
  %2795 = vxpose.xlu0.b32.cont [5/16] 0.0, 128
  %2796 = vxpose.xlu0.b32.cont [6/16] 0.0, 128
  %2797 = vxpose.xlu0.b32.cont [7/16] 0.0, 128
  %2798 = vxpose.xlu0.b32.cont [8/16] 0.0, 128
  %2799 = vxpose.xlu0.b32.cont [9/16] 0.0, 128
  %2800 = vxpose.xlu0.b32.cont [10/16] 0.0, 128
  %2801 = vxpose.xlu0.b32.cont [11/16] 0.0, 128
  %2802 = vxpose.xlu0.b32.cont [12/16] 0.0, 128
  %2803 = vxpose.xlu0.b32.cont [13/16] 0.0, 128
  %2804 = vxpose.xlu0.b32.cont [14/16] 0.0, 128
  %2805 = vxpose.xlu0.b32.cont [15/16] 0.0, 128
  %2806 = vxpose.xlu0.b32.end [16/16] 0.0, 128
  %v2807 = vpop.trf.xlu0
  %v2808 = vpop.trf.xlu0
  %v2809 = vpop.trf.xlu0
  %v2810 = vpop.trf.xlu0
  %v2811 = vpop.trf.xlu0
  %v2812 = vpop.trf.xlu0
  %v2813 = vpop.trf.xlu0
  %v2814 = vpop.trf.xlu0
  %v2815 = vpop.trf.xlu0
  %v2816 = vpop.trf.xlu0
  %v2817 = vpop.trf.xlu0
  %v2818 = vpop.trf.xlu0
  %v2819 = vpop.trf.xlu0
  %v2820 = vpop.trf.xlu0
  %v2821 = vpop.trf.xlu0
  %v2822 = vpop.trf.xlu0
  %v2824 = vsel %vm1400, %v2807, 0
  %v2827 = vsel %vm1400, %v2808, 0
  %v2830 = vsel %vm1400, %v2809, 0
  %v2833 = vsel %vm1400, %v2810, 0
  %v2836 = vsel %vm405, %v2764, 0
  %v2839 = vsel %vm405, %v2766, 0
  %2841 = vmatprep.subr.mxu0 0.0
  %2842 = vmatpush1.msra.mxu0 0.0
  %2843 = vmatprep.subr.mxu0 0.0
  %2844 = vmatpush1.msra.mxu0 0.0
  %2845 = vmatprep.subr.mxu0 0.0
  %2846 = vmatpush1.msra.mxu0 0.0
  %2847 = vmatprep.subr.mxu0 0.0
  %2848 = vmatpush1.msra.mxu0 0.0
  %2849 = vmatprep.subr.mxu0 0.0
  %2850 = vmatpush1.msra.mxu0 0.0
  %2851 = vmatprep.subr.mxu0 0.0
  %2852 = vmatpush1.msra.mxu0 0.0
  %2853 = vmatprep.subr.mxu0 0.0
  %2854 = vmatpush1.msra.mxu0 0.0
  %2855 = vmatprep.subr.mxu0 0.0
  %2856 = vmatpush1.msra.mxu0 0.0
  %2857 = vmatprep.subr.mxu0 0.0
  %2858 = vmatpush1.msra.mxu0 0.0
  %2859 = vmatprep.subr.mxu0 0.0
  %2860 = vmatpush1.msra.mxu0 0.0
  %2861 = vmatprep.subr.mxu0 0.0
  %2862 = vmatpush1.msra.mxu0 0.0
  %2863 = vmatprep.subr.mxu0 0.0
  %2864 = vmatpush1.msra.mxu0 0.0
  %2865 = vmatprep.subr.mxu0 0.0
  %2866 = vmatpush1.msra.mxu0 0.0
  %2867 = vmatprep.subr.mxu0 0.0
  %2868 = vmatpush1.msra.mxu0 0.0
  %2869 = vmatprep.subr.mxu0 %v2839
  %2870 = vmatpush1.msra.mxu0 %v2836
  %2871 = vmatprep.subr.mxu0 %v2762
  %2872 = vmatpush1.msra.mxu0 %v2760
  %2873 = vmatprep.subr.mxu0 0.0
  %2874 = vmatpush2.msra.mxu0 0.0
  %2875 = vmatprep.subr.mxu0 0.0
  %2876 = vmatpush2.msra.mxu0 0.0
  %2877 = vmatprep.subr.mxu0 0.0
  %2878 = vmatpush2.msra.mxu0 0.0
  %2879 = vmatprep.subr.mxu0 0.0
  %2880 = vmatpush2.msra.mxu0 0.0
  %2881 = vmatprep.subr.mxu0 0.0
  %2882 = vmatpush2.msra.mxu0 0.0
  %2883 = vmatprep.subr.mxu0 0.0
  %2884 = vmatpush2.msra.mxu0 0.0
  %2885 = vmatprep.subr.mxu0 0.0
  %2886 = vmatpush2.msra.mxu0 0.0
  %2887 = vmatprep.subr.mxu0 0.0
  %2888 = vmatpush2.msra.mxu0 0.0
  %2889 = vmatprep.subr.mxu0 0.0
  %2890 = vmatpush2.msra.mxu0 0.0
  %2891 = vmatprep.subr.mxu0 0.0
  %2892 = vmatpush2.msra.mxu0 0.0
  %2893 = vmatprep.subr.mxu0 0.0
  %2894 = vmatpush2.msra.mxu0 0.0
  %2895 = vmatprep.subr.mxu0 0.0
  %2896 = vmatpush2.msra.mxu0 0.0
  %2897 = vmatprep.subr.mxu0 0.0
  %2898 = vmatpush2.msra.mxu0 0.0
  %2899 = vmatprep.subr.mxu0 0.0
  %2900 = vmatpush2.msra.mxu0 0.0
  %2901 = vmatprep.subr.mxu0 0.0
  %2902 = vmatpush2.msra.mxu0 0.0
  %2903 = vmatprep.subr.mxu0 0.0
  %2904 = vmatpush2.msra.mxu0 0.0
  %2905 = vmatprep.mubr.f32.mxu0 0.0
  %2906 = vmatmul.mubr.f32.gmra.mxu0 %v2824
  %v2907 = vpop.f32.mrf.mxu0
  %v2908 = vadd.f32 0.0, %v2907
  %v2909 = vpop.f32.mrf.mxu0
  %v2910 = vadd.f32 0.0, %v2909
  %2911 = vmatprep.mubr.f32.mxu0 0.0
  %2912 = vmatmul.mubr.f32.gmra.mxu0 %v2827
  %v2913 = vpop.f32.mrf.mxu0
  %v2914 = vadd.f32 0.0, %v2913
  %v2915 = vpop.f32.mrf.mxu0
  %v2916 = vadd.f32 0.0, %v2915
  %2917 = vmatprep.mubr.f32.mxu0 0.0
  %2918 = vmatmul.mubr.f32.gmra.mxu0 %v2830
  %v2919 = vpop.f32.mrf.mxu0
  %v2920 = vadd.f32 0.0, %v2919
  %v2921 = vpop.f32.mrf.mxu0
  %v2922 = vadd.f32 0.0, %v2921
  %2923 = vmatprep.mubr.f32.mxu0 0.0
  %2924 = vmatmul.mubr.f32.gmra.mxu0 %v2833
  %v2925 = vpop.f32.mrf.mxu0
  %v2926 = vadd.f32 0.0, %v2925
  %v2927 = vpop.f32.mrf.mxu0
  %v2928 = vadd.f32 0.0, %v2927
  %2929 = vdwg.mxu0
  %v2930 = vmul.f32 %v2908, %v2783
  %v2931 = vmul.f32 %v2910, %v2784
  %v2932 = vmul.f32 %v2914, %v2783
  %v2933 = vmul.f32 %v2916, %v2784
  %v2934 = vmul.f32 %v2920, %v2783
  %v2935 = vmul.f32 %v2922, %v2784
  %v2936 = vmul.f32 %v2926, %v2783
  %v2937 = vmul.f32 %v2928, %v2784
  %2938 = vmatprep.subr.mxu0 0.0
  %2939 = vmatpush1.msra.mxu0 0.0
  %2940 = vmatprep.subr.mxu0 0.0
  %2941 = vmatpush1.msra.mxu0 0.0
  %2942 = vmatprep.subr.mxu0 0.0
  %2943 = vmatpush1.msra.mxu0 0.0
  %2944 = vmatprep.subr.mxu0 0.0
  %2945 = vmatpush1.msra.mxu0 0.0
  %2946 = vmatprep.subr.mxu0 0.0
  %2947 = vmatpush1.msra.mxu0 0.0
  %2948 = vmatprep.subr.mxu0 0.0
  %2949 = vmatpush1.msra.mxu0 0.0
  %2950 = vmatprep.subr.mxu0 0.0
  %2951 = vmatpush1.msra.mxu0 0.0
  %2952 = vmatprep.subr.mxu0 0.0
  %2953 = vmatpush1.msra.mxu0 0.0
  %2954 = vmatprep.subr.mxu0 0.0
  %2955 = vmatpush1.msra.mxu0 0.0
  %2956 = vmatprep.subr.mxu0 0.0
  %2957 = vmatpush1.msra.mxu0 0.0
  %2958 = vmatprep.subr.mxu0 0.0
  %2959 = vmatpush1.msra.mxu0 0.0
  %2960 = vmatprep.subr.mxu0 0.0
  %2961 = vmatpush1.msra.mxu0 0.0
  %2962 = vmatprep.subr.mxu0 %v2937
  %2963 = vmatpush1.msra.mxu0 %v2936
  %2964 = vmatprep.subr.mxu0 %v2935
  %2965 = vmatpush1.msra.mxu0 %v2934
  %2966 = vmatprep.subr.mxu0 %v2933
  %2967 = vmatpush1.msra.mxu0 %v2932
  %2968 = vmatprep.subr.mxu0 %v2931
  %2969 = vmatpush1.msra.mxu0 %v2930
  %2970 = vmatprep.subr.mxu0 0.0
  %2971 = vmatpush2.msra.mxu0 0.0
  %2972 = vmatprep.subr.mxu0 0.0
  %2973 = vmatpush2.msra.mxu0 0.0
  %2974 = vmatprep.subr.mxu0 0.0
  %2975 = vmatpush2.msra.mxu0 0.0
  %2976 = vmatprep.subr.mxu0 0.0
  %2977 = vmatpush2.msra.mxu0 0.0
  %2978 = vmatprep.subr.mxu0 0.0
  %2979 = vmatpush2.msra.mxu0 0.0
  %2980 = vmatprep.subr.mxu0 0.0
  %2981 = vmatpush2.msra.mxu0 0.0
  %2982 = vmatprep.subr.mxu0 0.0
  %2983 = vmatpush2.msra.mxu0 0.0
  %2984 = vmatprep.subr.mxu0 0.0
  %2985 = vmatpush2.msra.mxu0 0.0
  %2986 = vmatprep.subr.mxu0 0.0
  %2987 = vmatpush2.msra.mxu0 0.0
  %2988 = vmatprep.subr.mxu0 0.0
  %2989 = vmatpush2.msra.mxu0 0.0
  %2990 = vmatprep.subr.mxu0 0.0
  %2991 = vmatpush2.msra.mxu0 0.0
  %2992 = vmatprep.subr.mxu0 0.0
  %2993 = vmatpush2.msra.mxu0 0.0
  %2994 = vmatprep.subr.mxu0 0.0
  %2995 = vmatpush2.msra.mxu0 0.0
  %2996 = vmatprep.subr.mxu0 0.0
  %2997 = vmatpush2.msra.mxu0 0.0
  %2998 = vmatprep.subr.mxu0 0.0
  %2999 = vmatpush2.msra.mxu0 0.0
  %3000 = vmatprep.subr.mxu0 0.0
  %3001 = vmatpush2.msra.mxu0 0.0
  %3002 = vmatprep.mubr.f32.mxu0 0.0
  %3003 = vmatmul.mubr.f32.gmra.mxu0 %v1517
  %v3004 = vpop.f32.mrf.mxu0
  %v3005 = vadd.f32 0.0, %v3004
  %v3006 = vpop.f32.mrf.mxu0
  %v3007 = vadd.f32 0.0, %v3006
  %3008 = vmatprep.mubr.f32.mxu0 0.0
  %3009 = vmatmul.mubr.f32.gmra.mxu0 %v1520
  %v3010 = vpop.f32.mrf.mxu0
  %v3011 = vadd.f32 0.0, %v3010
  %v3012 = vpop.f32.mrf.mxu0
  %v3013 = vadd.f32 0.0, %v3012
  %3014 = vmatprep.mubr.f32.mxu0 0.0
  %3015 = vmatmul.mubr.f32.gmra.mxu0 %v1523
  %v3016 = vpop.f32.mrf.mxu0
  %v3017 = vadd.f32 0.0, %v3016
  %v3018 = vpop.f32.mrf.mxu0
  %v3019 = vadd.f32 0.0, %v3018
  %3020 = vmatprep.mubr.f32.mxu0 0.0
  %3021 = vmatmul.mubr.f32.gmra.mxu0 %v1526
  %v3022 = vpop.f32.mrf.mxu0
  %v3023 = vadd.f32 0.0, %v3022
  %v3024 = vpop.f32.mrf.mxu0
  %v3025 = vadd.f32 0.0, %v3024
  %3026 = vdwg.mxu0
  %v3027 = vadd.f32 %v2464, %v3005
  %v3028 = vadd.f32 %v2466, %v3007
  %v3029 = vadd.f32 %v2470, %v3011
  %v3030 = vadd.f32 %v2472, %v3013
  %v3031 = vadd.f32 %v2476, %v3017
  %v3032 = vadd.f32 %v2478, %v3019
  %v3033 = vadd.f32 %v2482, %v3023
  %v3034 = vadd.f32 %v2484, %v3025
  %3035 = vmatprep.subr.mxu0 0.0
  %3036 = vmatpush1.msra.mxu0 0.0
  %3037 = vmatprep.subr.mxu0 0.0
  %3038 = vmatpush1.msra.mxu0 0.0
  %3039 = vmatprep.subr.mxu0 0.0
  %3040 = vmatpush1.msra.mxu0 0.0
  %3041 = vmatprep.subr.mxu0 0.0
  %3042 = vmatpush1.msra.mxu0 0.0
  %3043 = vmatprep.subr.mxu0 0.0
  %3044 = vmatpush1.msra.mxu0 0.0
  %3045 = vmatprep.subr.mxu0 0.0
  %3046 = vmatpush1.msra.mxu0 0.0
  %3047 = vmatprep.subr.mxu0 0.0
  %3048 = vmatpush1.msra.mxu0 0.0
  %3049 = vmatprep.subr.mxu0 0.0
  %3050 = vmatpush1.msra.mxu0 0.0
  %3051 = vmatprep.subr.mxu0 0.0
  %3052 = vmatpush1.msra.mxu0 0.0
  %3053 = vmatprep.subr.mxu0 0.0
  %3054 = vmatpush1.msra.mxu0 0.0
  %3055 = vmatprep.subr.mxu0 0.0
  %3056 = vmatpush1.msra.mxu0 0.0
  %3057 = vmatprep.subr.mxu0 0.0
  %3058 = vmatpush1.msra.mxu0 0.0
  %3059 = vmatprep.subr.mxu0 %v3034
  %3060 = vmatpush1.msra.mxu0 %v3033
  %3061 = vmatprep.subr.mxu0 %v3032
  %3062 = vmatpush1.msra.mxu0 %v3031
  %3063 = vmatprep.subr.mxu0 %v3030
  %3064 = vmatpush1.msra.mxu0 %v3029
  %3065 = vmatprep.subr.mxu0 %v3028
  %3066 = vmatpush1.msra.mxu0 %v3027
  %3067 = vmatprep.subr.mxu0 0.0
  %3068 = vmatpush2.msra.mxu0 0.0
  %3069 = vmatprep.subr.mxu0 0.0
  %3070 = vmatpush2.msra.mxu0 0.0
  %3071 = vmatprep.subr.mxu0 0.0
  %3072 = vmatpush2.msra.mxu0 0.0
  %3073 = vmatprep.subr.mxu0 0.0
  %3074 = vmatpush2.msra.mxu0 0.0
  %3075 = vmatprep.subr.mxu0 0.0
  %3076 = vmatpush2.msra.mxu0 0.0
  %3077 = vmatprep.subr.mxu0 0.0
  %3078 = vmatpush2.msra.mxu0 0.0
  %3079 = vmatprep.subr.mxu0 0.0
  %3080 = vmatpush2.msra.mxu0 0.0
  %3081 = vmatprep.subr.mxu0 0.0
  %3082 = vmatpush2.msra.mxu0 0.0
  %3083 = vmatprep.subr.mxu0 0.0
  %3084 = vmatpush2.msra.mxu0 0.0
  %3085 = vmatprep.subr.mxu0 0.0
  %3086 = vmatpush2.msra.mxu0 0.0
  %3087 = vmatprep.subr.mxu0 0.0
  %3088 = vmatpush2.msra.mxu0 0.0
  %3089 = vmatprep.subr.mxu0 0.0
  %3090 = vmatpush2.msra.mxu0 0.0
  %3091 = vmatprep.subr.mxu0 0.0
  %3092 = vmatpush2.msra.mxu0 0.0
  %3093 = vmatprep.subr.mxu0 0.0
  %3094 = vmatpush2.msra.mxu0 0.0
  %3095 = vmatprep.subr.mxu0 0.0
  %3096 = vmatpush2.msra.mxu0 0.0
  %3097 = vmatprep.subr.mxu0 0.0
  %3098 = vmatpush2.msra.mxu0 0.0
  %3099 = vmatprep.mubr.f32.mxu0 0.0
  %3100 = vmatmul.mubr.f32.gmra.mxu0 %v1631
  %v3101 = vpop.f32.mrf.mxu0
  %v3102 = vadd.f32 %v1628, %v3101
  %v3103 = vpop.f32.mrf.mxu0
  %v3104 = vadd.f32 %v1628, %v3103
  %3105 = vdwg.mxu0
  %v3108 = vcombine.low %v3102, %v3104
  %s3110 = scalar_lea.vmem %s18, 8
  %3111 = vst [vmem:[%s3110] sm:$0xff] %v3108
  // Predicated region
  $region74: #{ip_adapter_forward.1} parent=0 // pred_check
    _
  $region75: #{ip_adapter_forward.1} parent=0 // pred_check_branch
    %3113 = sbr.rel (0) target = $region77
  $region76: #{ip_adapter_forward.1} parent=0 // pred_region
    _
  $region77: #{ip_adapter_forward.1} parent=0 // pred_fallthru
    _
  // Predicated region
  $region78: #{ip_adapter_forward.1} parent=0 // pred_check
    _
  $region79: #{ip_adapter_forward.1} parent=0 // pred_check_branch
    %3115 = sbr.rel (0) target = $region81
  $region80: #{ip_adapter_forward.1} parent=0 // pred_region
    _
  $region81: #{ip_adapter_forward.1} parent=0 // pred_fallthru
    _

</llo_original>
